<compile_context>
chip_gen: v7x
topology: tpu7x:2x2x1
jax: 0.10.0
libtpu: 0.0.40
codegen_flags: <defaults>
</compile_context>

<pallas_src>
import math
import functools

import jax
import jax.numpy as jnp
from jax.experimental import pallas as pl
from jax.experimental.pallas import tpu as pltpu

_NEG = -1e30
_LANE = 128


# ----------------------------------------------------------------------------
# In-kernel helpers (traced inside the Pallas kernel body).
# ----------------------------------------------------------------------------
def _topk_mask(score, valid, kk):
    """Greedy kk-step argmax: returns sel [N,1] with exactly kk ones among
    `valid` nodes (ties broken toward the lowest index).  kk is static."""
    N = score.shape[0]
    idx = jax.lax.broadcasted_iota(jnp.int32, (N, 1), 0)
    sel = jnp.zeros_like(score)
    rem = jnp.where(valid > 0.5, score, _NEG)
    for _ in range(kk):                       # small static trip count -> unrolled
        m = jnp.max(rem, axis=0, keepdims=True)
        cand = rem >= m
        first = jnp.min(jnp.where(cand, idx, N), axis=0, keepdims=True)
        onehot = idx == first
        sel = jnp.where(onehot, 1.0, sel)
        rem = jnp.where(onehot, _NEG, rem)
    return sel


def _mynn_conv(x, A, M, sel, w3d_ref, bias):
    """MyNNConv on the dense adjacency restricted to `sel`-valid nodes.

    Matches the reference: node-specific weights from nn(pos) (folded in the
    wrapper since pos == identity rows), add_remaining_self_loops(fill=1) on
    the filtered sub-graph, softmax of edge weights over incoming edges, and
    MEAN aggregation of alpha * x_j (MyNNConv uses aggr='mean'), plus bias.

    w3d_ref: [Cin, N, Cout] VMEM ref with wflat[n].reshape(Cin, Cout) laid out
    so w3d_ref[i] is the [N, Cout] slab of input-channel i.
    """
    N, Cin = x.shape
    Cout = bias.shape[1]

    # per-node transform: xt[n, o] = sum_i x[n, i] * W[i, n, o]
    xt = x[:, 0:1] * w3d_ref[0]
    for i in range(1, Cin):
        xt = xt + x[:, i:i + 1] * w3d_ref[i]                         # [N, Cout]

    rows = jax.lax.broadcasted_iota(jnp.int32, (N, N), 0)
    cols = jax.lax.broadcasted_iota(jnp.int32, (N, N), 1)
    eye = rows == cols

    valid_t = sel > 0.5                                              # [N,1] targets
    # source-orientation validity [1,N] without a transpose op:
    sel_src = jnp.sum(jnp.where(eye, sel, 0.0), axis=0, keepdims=True)
    valid_pair = jnp.logical_and(valid_t, sel_src > 0.5)             # [N,N]

    has_edge = jnp.logical_and(M > 0.5, valid_pair)
    # add_remaining_self_loops(edge_index, edge_weight, fill_value=1)
    m2 = jnp.logical_or(has_edge, jnp.logical_and(eye, valid_t))
    a2 = jnp.where(jnp.logical_and(eye, jnp.logical_not(has_edge)), 1.0, A)

    # softmax of edge weights over incoming edges of each target node (f32)
    logits = jnp.where(m2, a2, _NEG)
    mx = jnp.max(logits, axis=1, keepdims=True)
    e = jnp.where(m2, jnp.exp(logits - mx), 0.0)
    s = jnp.sum(e, axis=1, keepdims=True)
    s = jnp.where(s > 0.0, s, 1.0)                 # dropped target rows: no 0/0
    alpha = e * pl.reciprocal(s, approx=True)      # [N, N]

    # mean aggregation of alpha * x_j over incoming edges, then bias
    deg = jnp.maximum(jnp.sum(m2.astype(jnp.float32), axis=1, keepdims=True), 1.0)
    out = jnp.dot(alpha, xt, preferred_element_type=jnp.float32)
    return out * pl.reciprocal(deg, approx=True) + bias


def _topk_pool(h, sel_prev, pwn, kk):
    """TopKPooling(ratio, multiplier=1, nonlinearity=sigmoid), masked form.
    `pwn` is the pooling weight pre-divided by its L2 norm (wrapper)."""
    raw = jnp.sum(h * pwn, axis=1, keepdims=True)                    # [N,1]
    score = pl.reciprocal(1.0 + jnp.exp(-raw), approx=True)          # sigmoid
    sel = _topk_mask(score, sel_prev, kk)
    return h * score, sel


def _readout(xs, sel, kk):
    """[global_max_pool, global_mean_pool] over the kk selected nodes."""
    keep = sel > 0.5
    gmp = jnp.max(jnp.where(keep, xs, _NEG), axis=0, keepdims=True)   # [1,C]
    gap = jnp.sum(jnp.where(keep, xs, 0.0), axis=0, keepdims=True) * (1.0 / kk)
    return gmp, gap


# ----------------------------------------------------------------------------
# Fused per-graph kernel: conv1 -> pool1 -> conv2 -> pool2 -> readout -> head.
# ----------------------------------------------------------------------------
def _brain_gnn_kernel(kk1, kk2,
                      x_ref, a_ref, m_ref,
                      w1_ref, bias1_ref, pw1_ref,
                      w2_ref, bias2_ref, pw2_ref,
                      fc1w_ref, fc1b_ref,
                      fc2w_ref, fc2b_ref,
                      fc3w_ref, fc3b_ref,
                      out_ref):
    x = x_ref[0]                                    # [N, indim]
    A = a_ref[0]                                    # [N, N]
    M = m_ref[0]                                    # [N, N]
    N = x.shape[0]

    sel0 = jnp.ones((N, 1), jnp.float32)

    # conv1 -> pool1 -> readout1
    h1 = _mynn_conv(x, A, M, sel0, w1_ref, bias1_ref[...])
    h1p, sel1 = _topk_pool(h1, sel0, pw1_ref[...], kk1)
    gmp1, gap1 = _readout(h1p, sel1, kk1)

    # conv2 (on the pooled sub-graph) -> pool2 -> readout2
    h2 = _mynn_conv(h1p, A, M, sel1, w2_ref, bias2_ref[...])
    h2p, sel2 = _topk_pool(h2, sel1, pw2_ref[...], kk2)
    gmp2, gap2 = _readout(h2p, sel2, kk2)

    # feature order matches torch.cat([gmp1, gap1, gmp2, gap2], dim=1)
    feat = jnp.concatenate([gmp1, gap1, gmp2, gap2], axis=1)    # [1, 2*(d1+d2)]

    # fc1 -> relu -> bn1 -> (dropout: eval) -> fc2 -> relu -> bn2 -> fc3.
    # bn1/bn2 (eval, running stats) are algebraically folded into fc2/fc3 in
    # the wrapper, so the kernel runs fc1 -> relu -> fc2' -> relu -> fc3'.
    # TODO(synk): dropout(p=0.1) is identity in eval mode; training-mode RNG
    #             dropout and batch-statistics BatchNorm are not implemented.
    h = jnp.dot(feat, fc1w_ref[...], preferred_element_type=jnp.float32) + fc1b_ref[...]
    h = jnp.maximum(h, 0.0)
    h = jnp.dot(h, fc2w_ref[...], preferred_element_type=jnp.float32) + fc2b_ref[...]
    h = jnp.maximum(h, 0.0)
    logits = jnp.dot(h, fc3w_ref[...], preferred_element_type=jnp.float32) + fc3b_ref[...]

    # log_softmax over the lane-padded logits (pad columns carry -1e30 bias, so
    # exp() underflows to 0 and the normalization only sees the real classes).
    mx = jnp.max(logits, axis=1, keepdims=True)
    z = logits - mx
    lse = jnp.log(jnp.sum(jnp.exp(z), axis=1, keepdims=True))
    out_ref[0] = z - lse


# ----------------------------------------------------------------------------
# Wrapper
# ----------------------------------------------------------------------------
def brain_gnn_forward(params, x, A, M, ratio=0.5):
    B, N, indim = x.shape
    dim1 = params['conv1_bias'].shape[1]
    dim2 = params['conv2_bias'].shape[1]
    nclass = params['fc3_b'].shape[1]
    kk1 = int(math.ceil(ratio * N))
    kk2 = int(math.ceil(ratio * kk1))

    # --- weight-only folds (done once, outside the per-graph grid) ---------
    # nn(pos) with pos == identity rows: wflat = relu(W1^T) @ W2^T + b2,
    # repacked as [Cin, R, Cout] so the kernel indexes input channels on the
    # leading axis.
    def nn_fold(w1t, w2t, b2, cin, cout):
        h = jnp.maximum(w1t, 0.0)                                     # [R, k]
        wflat = jnp.dot(h, w2t) + b2                                  # [R, cin*cout]
        return jnp.transpose(wflat.reshape(N, cin, cout), (1, 0, 2))  # [cin, R, cout]

    w1_3d = nn_fold(params['n1_w1t'], params['n1_w2t'], params['n1_b2'], indim, dim1)
    w2_3d = nn_fold(params['n2_w1t'], params['n2_w2t'], params['n2_b2'], dim1, dim2)

    # TopKPooling score uses (x @ w) / ||w||: pre-normalize w.
    def l2n(w):
        return w * jax.lax.rsqrt(jnp.sum(w * w))

    pw1 = l2n(params['pool1_w'])
    pw2 = l2n(params['pool2_w'])

    # Eval-mode BatchNorm folded into the *following* Linear layer:
    #   fc(bn(a)) = a @ (s[:,None]*W^T) + (b_fc + t @ W^T),  s = g/sqrt(v+eps),
    #   t = beta - rm*s.  Exact rewrite of relu->bn->fc in the reference.
    def bn_fold(bn, w_t, b, eps=1e-5):
        g, beta, rm, rv = bn[0], bn[1], bn[2], bn[3]
        s = g * jax.lax.rsqrt(rv + eps)
        t = beta - rm * s
        return w_t * s[:, None], b + jnp.dot(t[None, :], w_t)

    fc2w, fc2b = bn_fold(params['bn1'], params['fc2_wt'], params['fc2_b'])
    fc3w, fc3b = bn_fold(params['bn2'], params['fc3_wt'], params['fc3_b'])

    # lane-pad the classifier so the kernel's output tile is 128-lane dense
    ncpad = ((nclass + _LANE - 1) // _LANE) * _LANE
    fc3w = jnp.pad(fc3w, ((0, 0), (0, ncpad - nclass)))
    fc3b = jnp.pad(fc3b, ((0, 0), (0, ncpad - nclass)), constant_values=_NEG)

    weights = [
        w1_3d, params['conv1_bias'], pw1,
        w2_3d, params['conv2_bias'], pw2,
        params['fc1_wt'], params['fc1_b'],
        fc2w, fc2b,
        fc3w, fc3b,
    ]

    def bspec(a):                 # batched input: one graph per grid step
        nd = a.ndim
        return pl.BlockSpec((1,) + a.shape[1:],
                            lambda b, _nd=nd: (b,) + (0,) * (_nd - 1))

    def wspec(a):                 # non-batched weight: same block every step
        nd = a.ndim
        return pl.BlockSpec(a.shape, lambda b, _nd=nd: (0,) * _nd)

    out = pl.pallas_call(
        functools.partial(_brain_gnn_kernel, kk1, kk2),
        out_shape=jax.ShapeDtypeStruct((B, 1, ncpad), jnp.float32),
        grid=(B,),
        in_specs=[bspec(x), bspec(A), bspec(M)] + [wspec(w) for w in weights],
        out_specs=pl.BlockSpec((1, 1, ncpad), lambda b: (b, 0, 0)),
        compiler_params=pltpu.CompilerParams(
            dimension_semantics=("parallel",),
            vmem_limit_bytes=32 * 1024 * 1024),
    )(x, A, M, *weights)

    # TODO(synk): self.s1 / self.s2 attribute side effects and loss()/topk_loss()
    #             are not part of the returned forward value and are omitted.
    # TODO(synk): the edge_dim > 1 branch (edge_lin + sigmoid) is not needed for
    #             edge_dim == 1 and is not implemented.
    return out.reshape(B, ncpad)[:, :nclass]


def init_params(key, R, indim, dim1, dim2, dim3, k, nclass):
    keys = jax.random.split(key, 16)

    def w(i, shape, scale=0.1):
        return scale * jax.random.normal(keys[i], shape, dtype=jnp.float32)

    def bn(dim):   # rows: gamma, beta, running_mean, running_var
        return jnp.stack([jnp.ones(dim, jnp.float32), jnp.zeros(dim, jnp.float32),
                          jnp.zeros(dim, jnp.float32), jnp.ones(dim, jnp.float32)])

    return {
        # n1: Linear(R, k, bias=False) -> ReLU -> Linear(k, dim1*indim)
        'n1_w1t': w(0, (R, k)),
        'n1_w2t': w(1, (k, indim * dim1)),
        'n1_b2': w(2, (1, indim * dim1)),
        'conv1_bias': w(3, (1, dim1)),
        'pool1_w': w(4, (1, dim1)),
        # n2: Linear(R, k, bias=False) -> ReLU -> Linear(k, dim2*dim1)
        'n2_w1t': w(5, (R, k)),
        'n2_w2t': w(6, (k, dim1 * dim2)),
        'n2_b2': w(7, (1, dim1 * dim2)),
        'conv2_bias': w(8, (1, dim2)),
        'pool2_w': w(9, (1, dim2)),
        # head
        'fc1_wt': w(10, ((dim1 + dim2) * 2, dim2)),
        'fc1_b': w(11, (1, dim2)),
        'bn1': bn(dim2),
        'fc2_wt': w(12, (dim2, dim3)),
        'fc2_b': w(13, (1, dim3)),
        'bn2': bn(dim3),
        'fc3_wt': w(14, (dim3, nclass)),
        'fc3_b': w(15, (1, nclass)),
    }


if __name__ == "__main__":
    # net_params: in_dim (= R = indim) = 16, n_classes = 2, edge_dim = 1
    B, R = 2, 16
    indim = R
    dim1, dim2, dim3, k, nclass = 32, 32, 512, 32, 2

    key = jax.random.PRNGKey(0)
    kx, km, ka, kp = jax.random.split(key, 4)

    x = jax.random.normal(kx, (B, R, indim), dtype=jnp.float32)
    M = (jax.random.uniform(km, (B, R, R)) < 0.3).astype(jnp.float32)  # edge mask
    A = jax.random.uniform(ka, (B, R, R), dtype=jnp.float32)           # edge weights

    params = init_params(kp, R, indim, dim1, dim2, dim3, k, nclass)

    out = brain_gnn_forward(params, x, A, M)
    out = jax.block_until_ready(out)
    assert out.shape == (B, nclass)
    assert bool(jnp.all(jnp.isfinite(out)))
    # log_softmax rows should exponentiate to ~1
    assert bool(jnp.all(jnp.abs(jnp.sum(jnp.exp(out), axis=1) - 1.0) < 1e-3))
    print("KERNEL_OK")
</pallas_src>

<mosaic_0001>
module attributes {stable_mosaic.version = 11 : i64} {
  func.func @_brain_gnn_kernel(%arg0: i32, %arg1: memref<1x16x16xf32, #tpu.memory_space<vmem>>, %arg2: memref<1x16x16xf32, #tpu.memory_space<vmem>>, %arg3: memref<1x16x16xf32, #tpu.memory_space<vmem>>, %arg4: memref<16x16x32xf32, #tpu.memory_space<vmem>>, %arg5: memref<1x32xf32, #tpu.memory_space<vmem>>, %arg6: memref<1x32xf32, #tpu.memory_space<vmem>>, %arg7: memref<32x16x32xf32, #tpu.memory_space<vmem>>, %arg8: memref<1x32xf32, #tpu.memory_space<vmem>>, %arg9: memref<1x32xf32, #tpu.memory_space<vmem>>, %arg10: memref<128x32xf32, #tpu.memory_space<vmem>>, %arg11: memref<1x32xf32, #tpu.memory_space<vmem>>, %arg12: memref<32x512xf32, #tpu.memory_space<vmem>>, %arg13: memref<1x512xf32, #tpu.memory_space<vmem>>, %arg14: memref<512x128xf32, #tpu.memory_space<vmem>>, %arg15: memref<1x128xf32, #tpu.memory_space<vmem>>, %arg16: memref<1x1x128xf32, #tpu.memory_space<vmem>>) attributes {dimension_semantics = [#tpu.dimension_semantics<parallel>], iteration_bounds = array<i64: 2>, scalar_prefetch = 0 : i64, scratch_operands = 0 : i64, tpu.core_type = #tpu.core_type<tc>, window_params = [{transform_indices = @transform_0, window_bounds = array<i64: 1, 16, 16>}, {transform_indices = @transform_1, window_bounds = array<i64: 1, 16, 16>}, {transform_indices = @transform_2, window_bounds = array<i64: 1, 16, 16>}, {pipeline_mode = #tpu.pipeline_mode<synchronous>, transform_indices = @transform_3, window_bounds = array<i64: 16, 16, 32>}, {pipeline_mode = #tpu.pipeline_mode<synchronous>, transform_indices = @transform_4, window_bounds = array<i64: 1, 32>}, {pipeline_mode = #tpu.pipeline_mode<synchronous>, transform_indices = @transform_5, window_bounds = array<i64: 1, 32>}, {pipeline_mode = #tpu.pipeline_mode<synchronous>, transform_indices = @transform_6, window_bounds = array<i64: 32, 16, 32>}, {pipeline_mode = #tpu.pipeline_mode<synchronous>, transform_indices = @transform_7, window_bounds = array<i64: 1, 32>}, {pipeline_mode = #tpu.pipeline_mode<synchronous>, transform_indices = @transform_8, window_bounds = array<i64: 1, 32>}, {pipeline_mode = #tpu.pipeline_mode<synchronous>, transform_indices = @transform_9, window_bounds = array<i64: 128, 32>}, {pipeline_mode = #tpu.pipeline_mode<synchronous>, transform_indices = @transform_10, window_bounds = array<i64: 1, 32>}, {pipeline_mode = #tpu.pipeline_mode<synchronous>, transform_indices = @transform_11, window_bounds = array<i64: 32, 512>}, {pipeline_mode = #tpu.pipeline_mode<synchronous>, transform_indices = @transform_12, window_bounds = array<i64: 1, 512>}, {pipeline_mode = #tpu.pipeline_mode<synchronous>, transform_indices = @transform_13, window_bounds = array<i64: 512, 128>}, {pipeline_mode = #tpu.pipeline_mode<synchronous>, transform_indices = @transform_14, window_bounds = array<i64: 1, 128>}, {transform_indices = @transform_15, window_bounds = array<i64: 1, 1, 128>}]} {
    %c0 = arith.constant 0 : index
    %c0_0 = arith.constant 0 : index
    %c0_1 = arith.constant 0 : index
    %0 = vector.load %arg1[%c0, %c0_0, %c0_1] : memref<1x16x16xf32, #tpu.memory_space<vmem>>, vector<1x16x16xf32>
    %1 = vector.shape_cast %0 : vector<1x16x16xf32> to vector<16x16xf32>
    %c0_2 = arith.constant 0 : index
    %c0_3 = arith.constant 0 : index
    %c0_4 = arith.constant 0 : index
    %2 = vector.load %arg2[%c0_2, %c0_3, %c0_4] : memref<1x16x16xf32, #tpu.memory_space<vmem>>, vector<1x16x16xf32>
    %3 = vector.shape_cast %2 : vector<1x16x16xf32> to vector<16x16xf32>
    %c0_5 = arith.constant 0 : index
    %c0_6 = arith.constant 0 : index
    %c0_7 = arith.constant 0 : index
    %4 = vector.load %arg3[%c0_5, %c0_6, %c0_7] : memref<1x16x16xf32, #tpu.memory_space<vmem>>, vector<1x16x16xf32>
    %5 = vector.shape_cast %4 : vector<1x16x16xf32> to vector<16x16xf32>
    %cst = arith.constant 1.000000e+00 : f32
    %6 = vector.broadcast %cst : f32 to vector<16x1xf32>
    %c0_8 = arith.constant 0 : index
    %c0_9 = arith.constant 0 : index
    %7 = vector.load %arg5[%c0_8, %c0_9] : memref<1x32xf32, #tpu.memory_space<vmem>>, vector<1x32xf32>
    %8 = vector.extract_strided_slice %1 {offsets = [0, 0], sizes = [16, 1], strides = [1, 1]} : vector<16x16xf32> to vector<16x1xf32>
    %c0_10 = arith.constant 0 : index
    %c0_11 = arith.constant 0 : index
    %c0_12 = arith.constant 0 : index
    %9 = vector.load %arg4[%c0_10, %c0_11, %c0_12] : memref<16x16x32xf32, #tpu.memory_space<vmem>>, vector<1x16x32xf32>
    %10 = vector.shape_cast %9 : vector<1x16x32xf32> to vector<16x32xf32>
    %11 = vector.broadcast %8 : vector<16x1xf32> to vector<16x32xf32>
    %12 = arith.mulf %11, %10 : vector<16x32xf32>
    %13 = vector.extract_strided_slice %1 {offsets = [0, 1], sizes = [16, 1], strides = [1, 1]} : vector<16x16xf32> to vector<16x1xf32>
    %c1 = arith.constant 1 : index
    %c0_13 = arith.constant 0 : index
    %c0_14 = arith.constant 0 : index
    %14 = vector.load %arg4[%c1, %c0_13, %c0_14] : memref<16x16x32xf32, #tpu.memory_space<vmem>>, vector<1x16x32xf32>
    %15 = vector.shape_cast %14 : vector<1x16x32xf32> to vector<16x32xf32>
    %16 = vector.broadcast %13 : vector<16x1xf32> to vector<16x32xf32>
    %17 = arith.mulf %16, %15 : vector<16x32xf32>
    %18 = arith.addf %12, %17 : vector<16x32xf32>
    %19 = vector.extract_strided_slice %1 {offsets = [0, 2], sizes = [16, 1], strides = [1, 1]} : vector<16x16xf32> to vector<16x1xf32>
    %c2 = arith.constant 2 : index
    %c0_15 = arith.constant 0 : index
    %c0_16 = arith.constant 0 : index
    %20 = vector.load %arg4[%c2, %c0_15, %c0_16] : memref<16x16x32xf32, #tpu.memory_space<vmem>>, vector<1x16x32xf32>
    %21 = vector.shape_cast %20 : vector<1x16x32xf32> to vector<16x32xf32>
    %22 = vector.broadcast %19 : vector<16x1xf32> to vector<16x32xf32>
    %23 = arith.mulf %22, %21 : vector<16x32xf32>
    %24 = arith.addf %18, %23 : vector<16x32xf32>
    %25 = vector.extract_strided_slice %1 {offsets = [0, 3], sizes = [16, 1], strides = [1, 1]} : vector<16x16xf32> to vector<16x1xf32>
    %c3 = arith.constant 3 : index
    %c0_17 = arith.constant 0 : index
    %c0_18 = arith.constant 0 : index
    %26 = vector.load %arg4[%c3, %c0_17, %c0_18] : memref<16x16x32xf32, #tpu.memory_space<vmem>>, vector<1x16x32xf32>
    %27 = vector.shape_cast %26 : vector<1x16x32xf32> to vector<16x32xf32>
    %28 = vector.broadcast %25 : vector<16x1xf32> to vector<16x32xf32>
    %29 = arith.mulf %28, %27 : vector<16x32xf32>
    %30 = arith.addf %24, %29 : vector<16x32xf32>
    %31 = vector.extract_strided_slice %1 {offsets = [0, 4], sizes = [16, 1], strides = [1, 1]} : vector<16x16xf32> to vector<16x1xf32>
    %c4 = arith.constant 4 : index
    %c0_19 = arith.constant 0 : index
    %c0_20 = arith.constant 0 : index
    %32 = vector.load %arg4[%c4, %c0_19, %c0_20] : memref<16x16x32xf32, #tpu.memory_space<vmem>>, vector<1x16x32xf32>
    %33 = vector.shape_cast %32 : vector<1x16x32xf32> to vector<16x32xf32>
    %34 = vector.broadcast %31 : vector<16x1xf32> to vector<16x32xf32>
    %35 = arith.mulf %34, %33 : vector<16x32xf32>
    %36 = arith.addf %30, %35 : vector<16x32xf32>
    %37 = vector.extract_strided_slice %1 {offsets = [0, 5], sizes = [16, 1], strides = [1, 1]} : vector<16x16xf32> to vector<16x1xf32>
    %c5 = arith.constant 5 : index
    %c0_21 = arith.constant 0 : index
    %c0_22 = arith.constant 0 : index
    %38 = vector.load %arg4[%c5, %c0_21, %c0_22] : memref<16x16x32xf32, #tpu.memory_space<vmem>>, vector<1x16x32xf32>
    %39 = vector.shape_cast %38 : vector<1x16x32xf32> to vector<16x32xf32>
    %40 = vector.broadcast %37 : vector<16x1xf32> to vector<16x32xf32>
    %41 = arith.mulf %40, %39 : vector<16x32xf32>
    %42 = arith.addf %36, %41 : vector<16x32xf32>
    %43 = vector.extract_strided_slice %1 {offsets = [0, 6], sizes = [16, 1], strides = [1, 1]} : vector<16x16xf32> to vector<16x1xf32>
    %c6 = arith.constant 6 : index
    %c0_23 = arith.constant 0 : index
    %c0_24 = arith.constant 0 : index
    %44 = vector.load %arg4[%c6, %c0_23, %c0_24] : memref<16x16x32xf32, #tpu.memory_space<vmem>>, vector<1x16x32xf32>
    %45 = vector.shape_cast %44 : vector<1x16x32xf32> to vector<16x32xf32>
    %46 = vector.broadcast %43 : vector<16x1xf32> to vector<16x32xf32>
    %47 = arith.mulf %46, %45 : vector<16x32xf32>
    %48 = arith.addf %42, %47 : vector<16x32xf32>
    %49 = vector.extract_strided_slice %1 {offsets = [0, 7], sizes = [16, 1], strides = [1, 1]} : vector<16x16xf32> to vector<16x1xf32>
    %c7 = arith.constant 7 : index
    %c0_25 = arith.constant 0 : index
    %c0_26 = arith.constant 0 : index
    %50 = vector.load %arg4[%c7, %c0_25, %c0_26] : memref<16x16x32xf32, #tpu.memory_space<vmem>>, vector<1x16x32xf32>
    %51 = vector.shape_cast %50 : vector<1x16x32xf32> to vector<16x32xf32>
    %52 = vector.broadcast %49 : vector<16x1xf32> to vector<16x32xf32>
    %53 = arith.mulf %52, %51 : vector<16x32xf32>
    %54 = arith.addf %48, %53 : vector<16x32xf32>
    %55 = vector.extract_strided_slice %1 {offsets = [0, 8], sizes = [16, 1], strides = [1, 1]} : vector<16x16xf32> to vector<16x1xf32>
    %c8 = arith.constant 8 : index
    %c0_27 = arith.constant 0 : index
    %c0_28 = arith.constant 0 : index
    %56 = vector.load %arg4[%c8, %c0_27, %c0_28] : memref<16x16x32xf32, #tpu.memory_space<vmem>>, vector<1x16x32xf32>
    %57 = vector.shape_cast %56 : vector<1x16x32xf32> to vector<16x32xf32>
    %58 = vector.broadcast %55 : vector<16x1xf32> to vector<16x32xf32>
    %59 = arith.mulf %58, %57 : vector<16x32xf32>
    %60 = arith.addf %54, %59 : vector<16x32xf32>
    %61 = vector.extract_strided_slice %1 {offsets = [0, 9], sizes = [16, 1], strides = [1, 1]} : vector<16x16xf32> to vector<16x1xf32>
    %c9 = arith.constant 9 : index
    %c0_29 = arith.constant 0 : index
    %c0_30 = arith.constant 0 : index
    %62 = vector.load %arg4[%c9, %c0_29, %c0_30] : memref<16x16x32xf32, #tpu.memory_space<vmem>>, vector<1x16x32xf32>
    %63 = vector.shape_cast %62 : vector<1x16x32xf32> to vector<16x32xf32>
    %64 = vector.broadcast %61 : vector<16x1xf32> to vector<16x32xf32>
    %65 = arith.mulf %64, %63 : vector<16x32xf32>
    %66 = arith.addf %60, %65 : vector<16x32xf32>
    %67 = vector.extract_strided_slice %1 {offsets = [0, 10], sizes = [16, 1], strides = [1, 1]} : vector<16x16xf32> to vector<16x1xf32>
    %c10 = arith.constant 10 : index
    %c0_31 = arith.constant 0 : index
    %c0_32 = arith.constant 0 : index
    %68 = vector.load %arg4[%c10, %c0_31, %c0_32] : memref<16x16x32xf32, #tpu.memory_space<vmem>>, vector<1x16x32xf32>
    %69 = vector.shape_cast %68 : vector<1x16x32xf32> to vector<16x32xf32>
    %70 = vector.broadcast %67 : vector<16x1xf32> to vector<16x32xf32>
    %71 = arith.mulf %70, %69 : vector<16x32xf32>
    %72 = arith.addf %66, %71 : vector<16x32xf32>
    %73 = vector.extract_strided_slice %1 {offsets = [0, 11], sizes = [16, 1], strides = [1, 1]} : vector<16x16xf32> to vector<16x1xf32>
    %c11 = arith.constant 11 : index
    %c0_33 = arith.constant 0 : index
    %c0_34 = arith.constant 0 : index
    %74 = vector.load %arg4[%c11, %c0_33, %c0_34] : memref<16x16x32xf32, #tpu.memory_space<vmem>>, vector<1x16x32xf32>
    %75 = vector.shape_cast %74 : vector<1x16x32xf32> to vector<16x32xf32>
    %76 = vector.broadcast %73 : vector<16x1xf32> to vector<16x32xf32>
    %77 = arith.mulf %76, %75 : vector<16x32xf32>
    %78 = arith.addf %72, %77 : vector<16x32xf32>
    %79 = vector.extract_strided_slice %1 {offsets = [0, 12], sizes = [16, 1], strides = [1, 1]} : vector<16x16xf32> to vector<16x1xf32>
    %c12 = arith.constant 12 : index
    %c0_35 = arith.constant 0 : index
    %c0_36 = arith.constant 0 : index
    %80 = vector.load %arg4[%c12, %c0_35, %c0_36] : memref<16x16x32xf32, #tpu.memory_space<vmem>>, vector<1x16x32xf32>
    %81 = vector.shape_cast %80 : vector<1x16x32xf32> to vector<16x32xf32>
    %82 = vector.broadcast %79 : vector<16x1xf32> to vector<16x32xf32>
    %83 = arith.mulf %82, %81 : vector<16x32xf32>
    %84 = arith.addf %78, %83 : vector<16x32xf32>
    %85 = vector.extract_strided_slice %1 {offsets = [0, 13], sizes = [16, 1], strides = [1, 1]} : vector<16x16xf32> to vector<16x1xf32>
    %c13 = arith.constant 13 : index
    %c0_37 = arith.constant 0 : index
    %c0_38 = arith.constant 0 : index
    %86 = vector.load %arg4[%c13, %c0_37, %c0_38] : memref<16x16x32xf32, #tpu.memory_space<vmem>>, vector<1x16x32xf32>
    %87 = vector.shape_cast %86 : vector<1x16x32xf32> to vector<16x32xf32>
    %88 = vector.broadcast %85 : vector<16x1xf32> to vector<16x32xf32>
    %89 = arith.mulf %88, %87 : vector<16x32xf32>
    %90 = arith.addf %84, %89 : vector<16x32xf32>
    %91 = vector.extract_strided_slice %1 {offsets = [0, 14], sizes = [16, 1], strides = [1, 1]} : vector<16x16xf32> to vector<16x1xf32>
    %c14 = arith.constant 14 : index
    %c0_39 = arith.constant 0 : index
    %c0_40 = arith.constant 0 : index
    %92 = vector.load %arg4[%c14, %c0_39, %c0_40] : memref<16x16x32xf32, #tpu.memory_space<vmem>>, vector<1x16x32xf32>
    %93 = vector.shape_cast %92 : vector<1x16x32xf32> to vector<16x32xf32>
    %94 = vector.broadcast %91 : vector<16x1xf32> to vector<16x32xf32>
    %95 = arith.mulf %94, %93 : vector<16x32xf32>
    %96 = arith.addf %90, %95 : vector<16x32xf32>
    %97 = vector.extract_strided_slice %1 {offsets = [0, 15], sizes = [16, 1], strides = [1, 1]} : vector<16x16xf32> to vector<16x1xf32>
    %c15 = arith.constant 15 : index
    %c0_41 = arith.constant 0 : index
    %c0_42 = arith.constant 0 : index
    %98 = vector.load %arg4[%c15, %c0_41, %c0_42] : memref<16x16x32xf32, #tpu.memory_space<vmem>>, vector<1x16x32xf32>
    %99 = vector.shape_cast %98 : vector<1x16x32xf32> to vector<16x32xf32>
    %100 = vector.broadcast %97 : vector<16x1xf32> to vector<16x32xf32>
    %101 = arith.mulf %100, %99 : vector<16x32xf32>
    %102 = arith.addf %96, %101 : vector<16x32xf32>
    %103 = tpu.iota {dimensions = array<i32: 0>} : vector<16x16xi32>
    %104 = tpu.iota {dimensions = array<i32: 1>} : vector<16x16xi32>
    %105 = arith.cmpi eq, %103, %104 : vector<16x16xi32>
    %cst_43 = arith.constant 5.000000e-01 : f32
    %106 = vector.broadcast %cst_43 : f32 to vector<16x1xf32>
    %107 = arith.cmpf ogt, %6, %106 : vector<16x1xf32>
    %cst_44 = arith.constant 0.000000e+00 : f32
    %108 = vector.shape_cast %6 : vector<16x1xf32> to vector<16x1xf32>
    %109 = vector.broadcast %108 : vector<16x1xf32> to vector<16x16xf32>
    %110 = vector.broadcast %cst_44 : f32 to vector<16x16xf32>
    %111 = arith.select %105, %109, %110 : vector<16x16xi1>, vector<16x16xf32>
    %cst_45 = arith.constant dense<0.000000e+00> : vector<16xf32>
    %112 = vector.multi_reduction <add>, %111, %cst_45 [0] : vector<16x16xf32> to vector<16xf32>
    %113 = vector.shape_cast %112 : vector<16xf32> to vector<1x16xf32>
    %cst_46 = arith.constant 5.000000e-01 : f32
    %114 = vector.broadcast %cst_46 : f32 to vector<1x16xf32>
    %115 = arith.cmpf ogt, %113, %114 : vector<1x16xf32>
    %116 = vector.broadcast %107 : vector<16x1xi1> to vector<16x16xi1>
    %117 = vector.broadcast %115 : vector<1x16xi1> to vector<16x16xi1>
    %118 = arith.andi %116, %117 : vector<16x16xi1>
    %cst_47 = arith.constant 5.000000e-01 : f32
    %119 = vector.broadcast %cst_47 : f32 to vector<16x16xf32>
    %120 = arith.cmpf ogt, %5, %119 : vector<16x16xf32>
    %121 = arith.andi %120, %118 : vector<16x16xi1>
    %122 = vector.broadcast %107 : vector<16x1xi1> to vector<16x16xi1>
    %123 = arith.andi %105, %122 : vector<16x16xi1>
    %124 = arith.ori %121, %123 : vector<16x16xi1>
    %cst_48 = arith.constant dense<true> : vector<16x16xi1>
    %125 = arith.xori %121, %cst_48 : vector<16x16xi1>
    %126 = arith.andi %105, %125 : vector<16x16xi1>
    %cst_49 = arith.constant 1.000000e+00 : f32
    %127 = vector.broadcast %cst_49 : f32 to vector<16x16xf32>
    %128 = arith.select %126, %127, %3 : vector<16x16xi1>, vector<16x16xf32>
    %cst_50 = arith.constant -1.000000e+30 : f32
    %129 = vector.broadcast %cst_50 : f32 to vector<16x16xf32>
    %130 = arith.select %124, %128, %129 : vector<16x16xi1>, vector<16x16xf32>
    %cst_51 = arith.constant dense<0xFF800000> : vector<16xf32>
    %131 = vector.multi_reduction <maximumf>, %130, %cst_51 [1] : vector<16x16xf32> to vector<16xf32>
    %132 = vector.shape_cast %131 : vector<16xf32> to vector<16x1xf32>
    %133 = vector.broadcast %132 : vector<16x1xf32> to vector<16x16xf32>
    %134 = arith.subf %130, %133 : vector<16x16xf32>
    %135 = math.exp %134 : vector<16x16xf32>
    %cst_52 = arith.constant 0.000000e+00 : f32
    %136 = vector.broadcast %cst_52 : f32 to vector<16x16xf32>
    %137 = arith.select %124, %135, %136 : vector<16x16xi1>, vector<16x16xf32>
    %cst_53 = arith.constant dense<0.000000e+00> : vector<16xf32>
    %138 = vector.multi_reduction <add>, %137, %cst_53 [1] : vector<16x16xf32> to vector<16xf32>
    %139 = vector.shape_cast %138 : vector<16xf32> to vector<16x1xf32>
    %cst_54 = arith.constant 0.000000e+00 : f32
    %140 = vector.broadcast %cst_54 : f32 to vector<16x1xf32>
    %141 = arith.cmpf ogt, %139, %140 : vector<16x1xf32>
    %cst_55 = arith.constant 1.000000e+00 : f32
    %142 = vector.broadcast %cst_55 : f32 to vector<16x1xf32>
    %143 = arith.select %141, %139, %142 : vector<16x1xi1>, vector<16x1xf32>
    %144 = tpu.reciprocal %143 {approx = true} : vector<16x1xf32> -> vector<16x1xf32>
    %145 = vector.broadcast %144 : vector<16x1xf32> to vector<16x16xf32>
    %146 = arith.mulf %137, %145 : vector<16x16xf32>
    %147 = arith.extui %124 : vector<16x16xi1> to vector<16x16xi32>
    %148 = arith.sitofp %147 : vector<16x16xi32> to vector<16x16xf32>
    %cst_56 = arith.constant dense<0.000000e+00> : vector<16xf32>
    %149 = vector.multi_reduction <add>, %148, %cst_56 [1] : vector<16x16xf32> to vector<16xf32>
    %150 = vector.shape_cast %149 : vector<16xf32> to vector<16x1xf32>
    %cst_57 = arith.constant 1.000000e+00 : f32
    %151 = vector.broadcast %cst_57 : f32 to vector<16x1xf32>
    %152 = arith.maximumf %150, %151 : vector<16x1xf32>
    %cst_58 = arith.constant dense<0.000000e+00> : vector<16x32xf32>
    %153 = tpu.matmul %146, %102, %cst_58 {dimension_numbers = #tpu.dot_dimension_numbers<[1], [0], [0], [1], [0, 0, 1, 1], [], []>} : vector<16x16xf32>, vector<16x32xf32>, vector<16x32xf32> -> vector<16x32xf32>
    %154 = tpu.reciprocal %152 {approx = true} : vector<16x1xf32> -> vector<16x1xf32>
    %155 = vector.broadcast %154 : vector<16x1xf32> to vector<16x32xf32>
    %156 = arith.mulf %153, %155 : vector<16x32xf32>
    %157 = vector.broadcast %7 : vector<1x32xf32> to vector<16x32xf32>
    %158 = arith.addf %156, %157 : vector<16x32xf32>
    %c0_59 = arith.constant 0 : index
    %c0_60 = arith.constant 0 : index
    %159 = vector.load %arg6[%c0_59, %c0_60] : memref<1x32xf32, #tpu.memory_space<vmem>>, vector<1x32xf32>
    %160 = vector.broadcast %159 : vector<1x32xf32> to vector<16x32xf32>
    %161 = arith.mulf %158, %160 : vector<16x32xf32>
    %cst_61 = arith.constant dense<0.000000e+00> : vector<16xf32>
    %162 = vector.multi_reduction <add>, %161, %cst_61 [1] : vector<16x32xf32> to vector<16xf32>
    %163 = vector.shape_cast %162 : vector<16xf32> to vector<16x1xf32>
    %cst_62 = arith.constant 0.000000e+00 : f32
    %164 = vector.broadcast %cst_62 : f32 to vector<16x1xf32>
    %165 = arith.subf %164, %163 : vector<16x1xf32>
    %166 = math.exp %165 : vector<16x1xf32>
    %cst_63 = arith.constant 1.000000e+00 : f32
    %167 = vector.broadcast %cst_63 : f32 to vector<16x1xf32>
    %168 = arith.addf %167, %166 : vector<16x1xf32>
    %169 = tpu.reciprocal %168 {approx = true} : vector<16x1xf32> -> vector<16x1xf32>
    %170 = tpu.iota {dimensions = array<i32: 0>} : vector<16x1xi32>
    %cst_64 = arith.constant 0.000000e+00 : f32
    %171 = vector.broadcast %cst_64 : f32 to vector<16x1xf32>
    %cst_65 = arith.constant 5.000000e-01 : f32
    %172 = vector.broadcast %cst_65 : f32 to vector<16x1xf32>
    %173 = arith.cmpf ogt, %6, %172 : vector<16x1xf32>
    %cst_66 = arith.constant -1.000000e+30 : f32
    %174 = vector.broadcast %cst_66 : f32 to vector<16x1xf32>
    %175 = arith.select %173, %169, %174 : vector<16x1xi1>, vector<16x1xf32>
    %cst_67 = arith.constant dense<0xFF800000> : vector<1xf32>
    %176 = vector.multi_reduction <maximumf>, %175, %cst_67 [0] : vector<16x1xf32> to vector<1xf32>
    %177 = vector.shape_cast %176 : vector<1xf32> to vector<1x1xf32>
    %178 = vector.broadcast %177 : vector<1x1xf32> to vector<16x1xf32>
    %179 = arith.cmpf oge, %175, %178 : vector<16x1xf32>
    %c16_i32 = arith.constant 16 : i32
    %180 = vector.broadcast %c16_i32 : i32 to vector<16x1xi32>
    %181 = arith.select %179, %170, %180 : vector<16x1xi1>, vector<16x1xi32>
    %cst_68 = arith.constant dense<2147483647> : vector<1xi32>
    %182 = vector.multi_reduction <minsi>, %181, %cst_68 [0] : vector<16x1xi32> to vector<1xi32>
    %183 = vector.shape_cast %182 : vector<1xi32> to vector<1x1xi32>
    %184 = vector.broadcast %183 : vector<1x1xi32> to vector<16x1xi32>
    %185 = arith.cmpi eq, %170, %184 : vector<16x1xi32>
    %cst_69 = arith.constant 1.000000e+00 : f32
    %186 = vector.broadcast %cst_69 : f32 to vector<16x1xf32>
    %187 = arith.select %185, %186, %171 : vector<16x1xi1>, vector<16x1xf32>
    %cst_70 = arith.constant -1.000000e+30 : f32
    %188 = vector.broadcast %cst_70 : f32 to vector<16x1xf32>
    %189 = arith.select %185, %188, %175 : vector<16x1xi1>, vector<16x1xf32>
    %cst_71 = arith.constant dense<0xFF800000> : vector<1xf32>
    %190 = vector.multi_reduction <maximumf>, %189, %cst_71 [0] : vector<16x1xf32> to vector<1xf32>
    %191 = vector.shape_cast %190 : vector<1xf32> to vector<1x1xf32>
    %192 = vector.broadcast %191 : vector<1x1xf32> to vector<16x1xf32>
    %193 = arith.cmpf oge, %189, %192 : vector<16x1xf32>
    %c16_i32_72 = arith.constant 16 : i32
    %194 = vector.broadcast %c16_i32_72 : i32 to vector<16x1xi32>
    %195 = arith.select %193, %170, %194 : vector<16x1xi1>, vector<16x1xi32>
    %cst_73 = arith.constant dense<2147483647> : vector<1xi32>
    %196 = vector.multi_reduction <minsi>, %195, %cst_73 [0] : vector<16x1xi32> to vector<1xi32>
    %197 = vector.shape_cast %196 : vector<1xi32> to vector<1x1xi32>
    %198 = vector.broadcast %197 : vector<1x1xi32> to vector<16x1xi32>
    %199 = arith.cmpi eq, %170, %198 : vector<16x1xi32>
    %cst_74 = arith.constant 1.000000e+00 : f32
    %200 = vector.broadcast %cst_74 : f32 to vector<16x1xf32>
    %201 = arith.select %199, %200, %187 : vector<16x1xi1>, vector<16x1xf32>
    %cst_75 = arith.constant -1.000000e+30 : f32
    %202 = vector.broadcast %cst_75 : f32 to vector<16x1xf32>
    %203 = arith.select %199, %202, %189 : vector<16x1xi1>, vector<16x1xf32>
    %cst_76 = arith.constant dense<0xFF800000> : vector<1xf32>
    %204 = vector.multi_reduction <maximumf>, %203, %cst_76 [0] : vector<16x1xf32> to vector<1xf32>
    %205 = vector.shape_cast %204 : vector<1xf32> to vector<1x1xf32>
    %206 = vector.broadcast %205 : vector<1x1xf32> to vector<16x1xf32>
    %207 = arith.cmpf oge, %203, %206 : vector<16x1xf32>
    %c16_i32_77 = arith.constant 16 : i32
    %208 = vector.broadcast %c16_i32_77 : i32 to vector<16x1xi32>
    %209 = arith.select %207, %170, %208 : vector<16x1xi1>, vector<16x1xi32>
    %cst_78 = arith.constant dense<2147483647> : vector<1xi32>
    %210 = vector.multi_reduction <minsi>, %209, %cst_78 [0] : vector<16x1xi32> to vector<1xi32>
    %211 = vector.shape_cast %210 : vector<1xi32> to vector<1x1xi32>
    %212 = vector.broadcast %211 : vector<1x1xi32> to vector<16x1xi32>
    %213 = arith.cmpi eq, %170, %212 : vector<16x1xi32>
    %cst_79 = arith.constant 1.000000e+00 : f32
    %214 = vector.broadcast %cst_79 : f32 to vector<16x1xf32>
    %215 = arith.select %213, %214, %201 : vector<16x1xi1>, vector<16x1xf32>
    %cst_80 = arith.constant -1.000000e+30 : f32
    %216 = vector.broadcast %cst_80 : f32 to vector<16x1xf32>
    %217 = arith.select %213, %216, %203 : vector<16x1xi1>, vector<16x1xf32>
    %cst_81 = arith.constant dense<0xFF800000> : vector<1xf32>
    %218 = vector.multi_reduction <maximumf>, %217, %cst_81 [0] : vector<16x1xf32> to vector<1xf32>
    %219 = vector.shape_cast %218 : vector<1xf32> to vector<1x1xf32>
    %220 = vector.broadcast %219 : vector<1x1xf32> to vector<16x1xf32>
    %221 = arith.cmpf oge, %217, %220 : vector<16x1xf32>
    %c16_i32_82 = arith.constant 16 : i32
    %222 = vector.broadcast %c16_i32_82 : i32 to vector<16x1xi32>
    %223 = arith.select %221, %170, %222 : vector<16x1xi1>, vector<16x1xi32>
    %cst_83 = arith.constant dense<2147483647> : vector<1xi32>
    %224 = vector.multi_reduction <minsi>, %223, %cst_83 [0] : vector<16x1xi32> to vector<1xi32>
    %225 = vector.shape_cast %224 : vector<1xi32> to vector<1x1xi32>
    %226 = vector.broadcast %225 : vector<1x1xi32> to vector<16x1xi32>
    %227 = arith.cmpi eq, %170, %226 : vector<16x1xi32>
    %cst_84 = arith.constant 1.000000e+00 : f32
    %228 = vector.broadcast %cst_84 : f32 to vector<16x1xf32>
    %229 = arith.select %227, %228, %215 : vector<16x1xi1>, vector<16x1xf32>
    %cst_85 = arith.constant -1.000000e+30 : f32
    %230 = vector.broadcast %cst_85 : f32 to vector<16x1xf32>
    %231 = arith.select %227, %230, %217 : vector<16x1xi1>, vector<16x1xf32>
    %cst_86 = arith.constant dense<0xFF800000> : vector<1xf32>
    %232 = vector.multi_reduction <maximumf>, %231, %cst_86 [0] : vector<16x1xf32> to vector<1xf32>
    %233 = vector.shape_cast %232 : vector<1xf32> to vector<1x1xf32>
    %234 = vector.broadcast %233 : vector<1x1xf32> to vector<16x1xf32>
    %235 = arith.cmpf oge, %231, %234 : vector<16x1xf32>
    %c16_i32_87 = arith.constant 16 : i32
    %236 = vector.broadcast %c16_i32_87 : i32 to vector<16x1xi32>
    %237 = arith.select %235, %170, %236 : vector<16x1xi1>, vector<16x1xi32>
    %cst_88 = arith.constant dense<2147483647> : vector<1xi32>
    %238 = vector.multi_reduction <minsi>, %237, %cst_88 [0] : vector<16x1xi32> to vector<1xi32>
    %239 = vector.shape_cast %238 : vector<1xi32> to vector<1x1xi32>
    %240 = vector.broadcast %239 : vector<1x1xi32> to vector<16x1xi32>
    %241 = arith.cmpi eq, %170, %240 : vector<16x1xi32>
    %cst_89 = arith.constant 1.000000e+00 : f32
    %242 = vector.broadcast %cst_89 : f32 to vector<16x1xf32>
    %243 = arith.select %241, %242, %229 : vector<16x1xi1>, vector<16x1xf32>
    %cst_90 = arith.constant -1.000000e+30 : f32
    %244 = vector.broadcast %cst_90 : f32 to vector<16x1xf32>
    %245 = arith.select %241, %244, %231 : vector<16x1xi1>, vector<16x1xf32>
    %cst_91 = arith.constant dense<0xFF800000> : vector<1xf32>
    %246 = vector.multi_reduction <maximumf>, %245, %cst_91 [0] : vector<16x1xf32> to vector<1xf32>
    %247 = vector.shape_cast %246 : vector<1xf32> to vector<1x1xf32>
    %248 = vector.broadcast %247 : vector<1x1xf32> to vector<16x1xf32>
    %249 = arith.cmpf oge, %245, %248 : vector<16x1xf32>
    %c16_i32_92 = arith.constant 16 : i32
    %250 = vector.broadcast %c16_i32_92 : i32 to vector<16x1xi32>
    %251 = arith.select %249, %170, %250 : vector<16x1xi1>, vector<16x1xi32>
    %cst_93 = arith.constant dense<2147483647> : vector<1xi32>
    %252 = vector.multi_reduction <minsi>, %251, %cst_93 [0] : vector<16x1xi32> to vector<1xi32>
    %253 = vector.shape_cast %252 : vector<1xi32> to vector<1x1xi32>
    %254 = vector.broadcast %253 : vector<1x1xi32> to vector<16x1xi32>
    %255 = arith.cmpi eq, %170, %254 : vector<16x1xi32>
    %cst_94 = arith.constant 1.000000e+00 : f32
    %256 = vector.broadcast %cst_94 : f32 to vector<16x1xf32>
    %257 = arith.select %255, %256, %243 : vector<16x1xi1>, vector<16x1xf32>
    %cst_95 = arith.constant -1.000000e+30 : f32
    %258 = vector.broadcast %cst_95 : f32 to vector<16x1xf32>
    %259 = arith.select %255, %258, %245 : vector<16x1xi1>, vector<16x1xf32>
    %cst_96 = arith.constant dense<0xFF800000> : vector<1xf32>
    %260 = vector.multi_reduction <maximumf>, %259, %cst_96 [0] : vector<16x1xf32> to vector<1xf32>
    %261 = vector.shape_cast %260 : vector<1xf32> to vector<1x1xf32>
    %262 = vector.broadcast %261 : vector<1x1xf32> to vector<16x1xf32>
    %263 = arith.cmpf oge, %259, %262 : vector<16x1xf32>
    %c16_i32_97 = arith.constant 16 : i32
    %264 = vector.broadcast %c16_i32_97 : i32 to vector<16x1xi32>
    %265 = arith.select %263, %170, %264 : vector<16x1xi1>, vector<16x1xi32>
    %cst_98 = arith.constant dense<2147483647> : vector<1xi32>
    %266 = vector.multi_reduction <minsi>, %265, %cst_98 [0] : vector<16x1xi32> to vector<1xi32>
    %267 = vector.shape_cast %266 : vector<1xi32> to vector<1x1xi32>
    %268 = vector.broadcast %267 : vector<1x1xi32> to vector<16x1xi32>
    %269 = arith.cmpi eq, %170, %268 : vector<16x1xi32>
    %cst_99 = arith.constant 1.000000e+00 : f32
    %270 = vector.broadcast %cst_99 : f32 to vector<16x1xf32>
    %271 = arith.select %269, %270, %257 : vector<16x1xi1>, vector<16x1xf32>
    %cst_100 = arith.constant -1.000000e+30 : f32
    %272 = vector.broadcast %cst_100 : f32 to vector<16x1xf32>
    %273 = arith.select %269, %272, %259 : vector<16x1xi1>, vector<16x1xf32>
    %cst_101 = arith.constant dense<0xFF800000> : vector<1xf32>
    %274 = vector.multi_reduction <maximumf>, %273, %cst_101 [0] : vector<16x1xf32> to vector<1xf32>
    %275 = vector.shape_cast %274 : vector<1xf32> to vector<1x1xf32>
    %276 = vector.broadcast %275 : vector<1x1xf32> to vector<16x1xf32>
    %277 = arith.cmpf oge, %273, %276 : vector<16x1xf32>
    %c16_i32_102 = arith.constant 16 : i32
    %278 = vector.broadcast %c16_i32_102 : i32 to vector<16x1xi32>
    %279 = arith.select %277, %170, %278 : vector<16x1xi1>, vector<16x1xi32>
    %cst_103 = arith.constant dense<2147483647> : vector<1xi32>
    %280 = vector.multi_reduction <minsi>, %279, %cst_103 [0] : vector<16x1xi32> to vector<1xi32>
    %281 = vector.shape_cast %280 : vector<1xi32> to vector<1x1xi32>
    %282 = vector.broadcast %281 : vector<1x1xi32> to vector<16x1xi32>
    %283 = arith.cmpi eq, %170, %282 : vector<16x1xi32>
    %cst_104 = arith.constant 1.000000e+00 : f32
    %284 = vector.broadcast %cst_104 : f32 to vector<16x1xf32>
    %285 = arith.select %283, %284, %271 : vector<16x1xi1>, vector<16x1xf32>
    %286 = vector.broadcast %169 : vector<16x1xf32> to vector<16x32xf32>
    %287 = arith.mulf %158, %286 : vector<16x32xf32>
    %cst_105 = arith.constant 5.000000e-01 : f32
    %288 = vector.broadcast %cst_105 : f32 to vector<16x1xf32>
    %289 = arith.cmpf ogt, %285, %288 : vector<16x1xf32>
    %cst_106 = arith.constant -1.000000e+30 : f32
    %290 = vector.shape_cast %289 : vector<16x1xi1> to vector<16x1xi1>
    %291 = vector.broadcast %290 : vector<16x1xi1> to vector<16x32xi1>
    %292 = vector.broadcast %cst_106 : f32 to vector<16x32xf32>
    %293 = arith.select %291, %287, %292 : vector<16x32xi1>, vector<16x32xf32>
    %cst_107 = arith.constant dense<0xFF800000> : vector<32xf32>
    %294 = vector.multi_reduction <maximumf>, %293, %cst_107 [0] : vector<16x32xf32> to vector<32xf32>
    %295 = vector.shape_cast %294 : vector<32xf32> to vector<1x32xf32>
    %cst_108 = arith.constant 0.000000e+00 : f32
    %296 = vector.shape_cast %289 : vector<16x1xi1> to vector<16x1xi1>
    %297 = vector.broadcast %296 : vector<16x1xi1> to vector<16x32xi1>
    %298 = vector.broadcast %cst_108 : f32 to vector<16x32xf32>
    %299 = arith.select %297, %287, %298 : vector<16x32xi1>, vector<16x32xf32>
    %cst_109 = arith.constant dense<0.000000e+00> : vector<32xf32>
    %300 = vector.multi_reduction <add>, %299, %cst_109 [0] : vector<16x32xf32> to vector<32xf32>
    %301 = vector.shape_cast %300 : vector<32xf32> to vector<1x32xf32>
    %cst_110 = arith.constant 1.250000e-01 : f32
    %302 = vector.broadcast %cst_110 : f32 to vector<1x32xf32>
    %303 = arith.mulf %301, %302 : vector<1x32xf32>
    %c0_111 = arith.constant 0 : index
    %c0_112 = arith.constant 0 : index
    %304 = vector.load %arg8[%c0_111, %c0_112] : memref<1x32xf32, #tpu.memory_space<vmem>>, vector<1x32xf32>
    %305 = vector.extract_strided_slice %287 {offsets = [0, 0], sizes = [16, 1], strides = [1, 1]} : vector<16x32xf32> to vector<16x1xf32>
    %c0_113 = arith.constant 0 : index
    %c0_114 = arith.constant 0 : index
    %c0_115 = arith.constant 0 : index
    %306 = vector.load %arg7[%c0_113, %c0_114, %c0_115] : memref<32x16x32xf32, #tpu.memory_space<vmem>>, vector<1x16x32xf32>
    %307 = vector.shape_cast %306 : vector<1x16x32xf32> to vector<16x32xf32>
    %308 = vector.broadcast %305 : vector<16x1xf32> to vector<16x32xf32>
    %309 = arith.mulf %308, %307 : vector<16x32xf32>
    %310 = vector.extract_strided_slice %287 {offsets = [0, 1], sizes = [16, 1], strides = [1, 1]} : vector<16x32xf32> to vector<16x1xf32>
    %c1_116 = arith.constant 1 : index
    %c0_117 = arith.constant 0 : index
    %c0_118 = arith.constant 0 : index
    %311 = vector.load %arg7[%c1_116, %c0_117, %c0_118] : memref<32x16x32xf32, #tpu.memory_space<vmem>>, vector<1x16x32xf32>
    %312 = vector.shape_cast %311 : vector<1x16x32xf32> to vector<16x32xf32>
    %313 = vector.broadcast %310 : vector<16x1xf32> to vector<16x32xf32>
    %314 = arith.mulf %313, %312 : vector<16x32xf32>
    %315 = arith.addf %309, %314 : vector<16x32xf32>
    %316 = vector.extract_strided_slice %287 {offsets = [0, 2], sizes = [16, 1], strides = [1, 1]} : vector<16x32xf32> to vector<16x1xf32>
    %c2_119 = arith.constant 2 : index
    %c0_120 = arith.constant 0 : index
    %c0_121 = arith.constant 0 : index
    %317 = vector.load %arg7[%c2_119, %c0_120, %c0_121] : memref<32x16x32xf32, #tpu.memory_space<vmem>>, vector<1x16x32xf32>
    %318 = vector.shape_cast %317 : vector<1x16x32xf32> to vector<16x32xf32>
    %319 = vector.broadcast %316 : vector<16x1xf32> to vector<16x32xf32>
    %320 = arith.mulf %319, %318 : vector<16x32xf32>
    %321 = arith.addf %315, %320 : vector<16x32xf32>
    %322 = vector.extract_strided_slice %287 {offsets = [0, 3], sizes = [16, 1], strides = [1, 1]} : vector<16x32xf32> to vector<16x1xf32>
    %c3_122 = arith.constant 3 : index
    %c0_123 = arith.constant 0 : index
    %c0_124 = arith.constant 0 : index
    %323 = vector.load %arg7[%c3_122, %c0_123, %c0_124] : memref<32x16x32xf32, #tpu.memory_space<vmem>>, vector<1x16x32xf32>
    %324 = vector.shape_cast %323 : vector<1x16x32xf32> to vector<16x32xf32>
    %325 = vector.broadcast %322 : vector<16x1xf32> to vector<16x32xf32>
    %326 = arith.mulf %325, %324 : vector<16x32xf32>
    %327 = arith.addf %321, %326 : vector<16x32xf32>
    %328 = vector.extract_strided_slice %287 {offsets = [0, 4], sizes = [16, 1], strides = [1, 1]} : vector<16x32xf32> to vector<16x1xf32>
    %c4_125 = arith.constant 4 : index
    %c0_126 = arith.constant 0 : index
    %c0_127 = arith.constant 0 : index
    %329 = vector.load %arg7[%c4_125, %c0_126, %c0_127] : memref<32x16x32xf32, #tpu.memory_space<vmem>>, vector<1x16x32xf32>
    %330 = vector.shape_cast %329 : vector<1x16x32xf32> to vector<16x32xf32>
    %331 = vector.broadcast %328 : vector<16x1xf32> to vector<16x32xf32>
    %332 = arith.mulf %331, %330 : vector<16x32xf32>
    %333 = arith.addf %327, %332 : vector<16x32xf32>
    %334 = vector.extract_strided_slice %287 {offsets = [0, 5], sizes = [16, 1], strides = [1, 1]} : vector<16x32xf32> to vector<16x1xf32>
    %c5_128 = arith.constant 5 : index
    %c0_129 = arith.constant 0 : index
    %c0_130 = arith.constant 0 : index
    %335 = vector.load %arg7[%c5_128, %c0_129, %c0_130] : memref<32x16x32xf32, #tpu.memory_space<vmem>>, vector<1x16x32xf32>
    %336 = vector.shape_cast %335 : vector<1x16x32xf32> to vector<16x32xf32>
    %337 = vector.broadcast %334 : vector<16x1xf32> to vector<16x32xf32>
    %338 = arith.mulf %337, %336 : vector<16x32xf32>
    %339 = arith.addf %333, %338 : vector<16x32xf32>
    %340 = vector.extract_strided_slice %287 {offsets = [0, 6], sizes = [16, 1], strides = [1, 1]} : vector<16x32xf32> to vector<16x1xf32>
    %c6_131 = arith.constant 6 : index
    %c0_132 = arith.constant 0 : index
    %c0_133 = arith.constant 0 : index
    %341 = vector.load %arg7[%c6_131, %c0_132, %c0_133] : memref<32x16x32xf32, #tpu.memory_space<vmem>>, vector<1x16x32xf32>
    %342 = vector.shape_cast %341 : vector<1x16x32xf32> to vector<16x32xf32>
    %343 = vector.broadcast %340 : vector<16x1xf32> to vector<16x32xf32>
    %344 = arith.mulf %343, %342 : vector<16x32xf32>
    %345 = arith.addf %339, %344 : vector<16x32xf32>
    %346 = vector.extract_strided_slice %287 {offsets = [0, 7], sizes = [16, 1], strides = [1, 1]} : vector<16x32xf32> to vector<16x1xf32>
    %c7_134 = arith.constant 7 : index
    %c0_135 = arith.constant 0 : index
    %c0_136 = arith.constant 0 : index
    %347 = vector.load %arg7[%c7_134, %c0_135, %c0_136] : memref<32x16x32xf32, #tpu.memory_space<vmem>>, vector<1x16x32xf32>
    %348 = vector.shape_cast %347 : vector<1x16x32xf32> to vector<16x32xf32>
    %349 = vector.broadcast %346 : vector<16x1xf32> to vector<16x32xf32>
    %350 = arith.mulf %349, %348 : vector<16x32xf32>
    %351 = arith.addf %345, %350 : vector<16x32xf32>
    %352 = vector.extract_strided_slice %287 {offsets = [0, 8], sizes = [16, 1], strides = [1, 1]} : vector<16x32xf32> to vector<16x1xf32>
    %c8_137 = arith.constant 8 : index
    %c0_138 = arith.constant 0 : index
    %c0_139 = arith.constant 0 : index
    %353 = vector.load %arg7[%c8_137, %c0_138, %c0_139] : memref<32x16x32xf32, #tpu.memory_space<vmem>>, vector<1x16x32xf32>
    %354 = vector.shape_cast %353 : vector<1x16x32xf32> to vector<16x32xf32>
    %355 = vector.broadcast %352 : vector<16x1xf32> to vector<16x32xf32>
    %356 = arith.mulf %355, %354 : vector<16x32xf32>
    %357 = arith.addf %351, %356 : vector<16x32xf32>
    %358 = vector.extract_strided_slice %287 {offsets = [0, 9], sizes = [16, 1], strides = [1, 1]} : vector<16x32xf32> to vector<16x1xf32>
    %c9_140 = arith.constant 9 : index
    %c0_141 = arith.constant 0 : index
    %c0_142 = arith.constant 0 : index
    %359 = vector.load %arg7[%c9_140, %c0_141, %c0_142] : memref<32x16x32xf32, #tpu.memory_space<vmem>>, vector<1x16x32xf32>
    %360 = vector.shape_cast %359 : vector<1x16x32xf32> to vector<16x32xf32>
    %361 = vector.broadcast %358 : vector<16x1xf32> to vector<16x32xf32>
    %362 = arith.mulf %361, %360 : vector<16x32xf32>
    %363 = arith.addf %357, %362 : vector<16x32xf32>
    %364 = vector.extract_strided_slice %287 {offsets = [0, 10], sizes = [16, 1], strides = [1, 1]} : vector<16x32xf32> to vector<16x1xf32>
    %c10_143 = arith.constant 10 : index
    %c0_144 = arith.constant 0 : index
    %c0_145 = arith.constant 0 : index
    %365 = vector.load %arg7[%c10_143, %c0_144, %c0_145] : memref<32x16x32xf32, #tpu.memory_space<vmem>>, vector<1x16x32xf32>
    %366 = vector.shape_cast %365 : vector<1x16x32xf32> to vector<16x32xf32>
    %367 = vector.broadcast %364 : vector<16x1xf32> to vector<16x32xf32>
    %368 = arith.mulf %367, %366 : vector<16x32xf32>
    %369 = arith.addf %363, %368 : vector<16x32xf32>
    %370 = vector.extract_strided_slice %287 {offsets = [0, 11], sizes = [16, 1], strides = [1, 1]} : vector<16x32xf32> to vector<16x1xf32>
    %c11_146 = arith.constant 11 : index
    %c0_147 = arith.constant 0 : index
    %c0_148 = arith.constant 0 : index
    %371 = vector.load %arg7[%c11_146, %c0_147, %c0_148] : memref<32x16x32xf32, #tpu.memory_space<vmem>>, vector<1x16x32xf32>
    %372 = vector.shape_cast %371 : vector<1x16x32xf32> to vector<16x32xf32>
    %373 = vector.broadcast %370 : vector<16x1xf32> to vector<16x32xf32>
    %374 = arith.mulf %373, %372 : vector<16x32xf32>
    %375 = arith.addf %369, %374 : vector<16x32xf32>
    %376 = vector.extract_strided_slice %287 {offsets = [0, 12], sizes = [16, 1], strides = [1, 1]} : vector<16x32xf32> to vector<16x1xf32>
    %c12_149 = arith.constant 12 : index
    %c0_150 = arith.constant 0 : index
    %c0_151 = arith.constant 0 : index
    %377 = vector.load %arg7[%c12_149, %c0_150, %c0_151] : memref<32x16x32xf32, #tpu.memory_space<vmem>>, vector<1x16x32xf32>
    %378 = vector.shape_cast %377 : vector<1x16x32xf32> to vector<16x32xf32>
    %379 = vector.broadcast %376 : vector<16x1xf32> to vector<16x32xf32>
    %380 = arith.mulf %379, %378 : vector<16x32xf32>
    %381 = arith.addf %375, %380 : vector<16x32xf32>
    %382 = vector.extract_strided_slice %287 {offsets = [0, 13], sizes = [16, 1], strides = [1, 1]} : vector<16x32xf32> to vector<16x1xf32>
    %c13_152 = arith.constant 13 : index
    %c0_153 = arith.constant 0 : index
    %c0_154 = arith.constant 0 : index
    %383 = vector.load %arg7[%c13_152, %c0_153, %c0_154] : memref<32x16x32xf32, #tpu.memory_space<vmem>>, vector<1x16x32xf32>
    %384 = vector.shape_cast %383 : vector<1x16x32xf32> to vector<16x32xf32>
    %385 = vector.broadcast %382 : vector<16x1xf32> to vector<16x32xf32>
    %386 = arith.mulf %385, %384 : vector<16x32xf32>
    %387 = arith.addf %381, %386 : vector<16x32xf32>
    %388 = vector.extract_strided_slice %287 {offsets = [0, 14], sizes = [16, 1], strides = [1, 1]} : vector<16x32xf32> to vector<16x1xf32>
    %c14_155 = arith.constant 14 : index
    %c0_156 = arith.constant 0 : index
    %c0_157 = arith.constant 0 : index
    %389 = vector.load %arg7[%c14_155, %c0_156, %c0_157] : memref<32x16x32xf32, #tpu.memory_space<vmem>>, vector<1x16x32xf32>
    %390 = vector.shape_cast %389 : vector<1x16x32xf32> to vector<16x32xf32>
    %391 = vector.broadcast %388 : vector<16x1xf32> to vector<16x32xf32>
    %392 = arith.mulf %391, %390 : vector<16x32xf32>
    %393 = arith.addf %387, %392 : vector<16x32xf32>
    %394 = vector.extract_strided_slice %287 {offsets = [0, 15], sizes = [16, 1], strides = [1, 1]} : vector<16x32xf32> to vector<16x1xf32>
    %c15_158 = arith.constant 15 : index
    %c0_159 = arith.constant 0 : index
    %c0_160 = arith.constant 0 : index
    %395 = vector.load %arg7[%c15_158, %c0_159, %c0_160] : memref<32x16x32xf32, #tpu.memory_space<vmem>>, vector<1x16x32xf32>
    %396 = vector.shape_cast %395 : vector<1x16x32xf32> to vector<16x32xf32>
    %397 = vector.broadcast %394 : vector<16x1xf32> to vector<16x32xf32>
    %398 = arith.mulf %397, %396 : vector<16x32xf32>
    %399 = arith.addf %393, %398 : vector<16x32xf32>
    %400 = vector.extract_strided_slice %287 {offsets = [0, 16], sizes = [16, 1], strides = [1, 1]} : vector<16x32xf32> to vector<16x1xf32>
    %c16 = arith.constant 16 : index
    %c0_161 = arith.constant 0 : index
    %c0_162 = arith.constant 0 : index
    %401 = vector.load %arg7[%c16, %c0_161, %c0_162] : memref<32x16x32xf32, #tpu.memory_space<vmem>>, vector<1x16x32xf32>
    %402 = vector.shape_cast %401 : vector<1x16x32xf32> to vector<16x32xf32>
    %403 = vector.broadcast %400 : vector<16x1xf32> to vector<16x32xf32>
    %404 = arith.mulf %403, %402 : vector<16x32xf32>
    %405 = arith.addf %399, %404 : vector<16x32xf32>
    %406 = vector.extract_strided_slice %287 {offsets = [0, 17], sizes = [16, 1], strides = [1, 1]} : vector<16x32xf32> to vector<16x1xf32>
    %c17 = arith.constant 17 : index
    %c0_163 = arith.constant 0 : index
    %c0_164 = arith.constant 0 : index
    %407 = vector.load %arg7[%c17, %c0_163, %c0_164] : memref<32x16x32xf32, #tpu.memory_space<vmem>>, vector<1x16x32xf32>
    %408 = vector.shape_cast %407 : vector<1x16x32xf32> to vector<16x32xf32>
    %409 = vector.broadcast %406 : vector<16x1xf32> to vector<16x32xf32>
    %410 = arith.mulf %409, %408 : vector<16x32xf32>
    %411 = arith.addf %405, %410 : vector<16x32xf32>
    %412 = vector.extract_strided_slice %287 {offsets = [0, 18], sizes = [16, 1], strides = [1, 1]} : vector<16x32xf32> to vector<16x1xf32>
    %c18 = arith.constant 18 : index
    %c0_165 = arith.constant 0 : index
    %c0_166 = arith.constant 0 : index
    %413 = vector.load %arg7[%c18, %c0_165, %c0_166] : memref<32x16x32xf32, #tpu.memory_space<vmem>>, vector<1x16x32xf32>
    %414 = vector.shape_cast %413 : vector<1x16x32xf32> to vector<16x32xf32>
    %415 = vector.broadcast %412 : vector<16x1xf32> to vector<16x32xf32>
    %416 = arith.mulf %415, %414 : vector<16x32xf32>
    %417 = arith.addf %411, %416 : vector<16x32xf32>
    %418 = vector.extract_strided_slice %287 {offsets = [0, 19], sizes = [16, 1], strides = [1, 1]} : vector<16x32xf32> to vector<16x1xf32>
    %c19 = arith.constant 19 : index
    %c0_167 = arith.constant 0 : index
    %c0_168 = arith.constant 0 : index
    %419 = vector.load %arg7[%c19, %c0_167, %c0_168] : memref<32x16x32xf32, #tpu.memory_space<vmem>>, vector<1x16x32xf32>
    %420 = vector.shape_cast %419 : vector<1x16x32xf32> to vector<16x32xf32>
    %421 = vector.broadcast %418 : vector<16x1xf32> to vector<16x32xf32>
    %422 = arith.mulf %421, %420 : vector<16x32xf32>
    %423 = arith.addf %417, %422 : vector<16x32xf32>
    %424 = vector.extract_strided_slice %287 {offsets = [0, 20], sizes = [16, 1], strides = [1, 1]} : vector<16x32xf32> to vector<16x1xf32>
    %c20 = arith.constant 20 : index
    %c0_169 = arith.constant 0 : index
    %c0_170 = arith.constant 0 : index
    %425 = vector.load %arg7[%c20, %c0_169, %c0_170] : memref<32x16x32xf32, #tpu.memory_space<vmem>>, vector<1x16x32xf32>
    %426 = vector.shape_cast %425 : vector<1x16x32xf32> to vector<16x32xf32>
    %427 = vector.broadcast %424 : vector<16x1xf32> to vector<16x32xf32>
    %428 = arith.mulf %427, %426 : vector<16x32xf32>
    %429 = arith.addf %423, %428 : vector<16x32xf32>
    %430 = vector.extract_strided_slice %287 {offsets = [0, 21], sizes = [16, 1], strides = [1, 1]} : vector<16x32xf32> to vector<16x1xf32>
    %c21 = arith.constant 21 : index
    %c0_171 = arith.constant 0 : index
    %c0_172 = arith.constant 0 : index
    %431 = vector.load %arg7[%c21, %c0_171, %c0_172] : memref<32x16x32xf32, #tpu.memory_space<vmem>>, vector<1x16x32xf32>
    %432 = vector.shape_cast %431 : vector<1x16x32xf32> to vector<16x32xf32>
    %433 = vector.broadcast %430 : vector<16x1xf32> to vector<16x32xf32>
    %434 = arith.mulf %433, %432 : vector<16x32xf32>
    %435 = arith.addf %429, %434 : vector<16x32xf32>
    %436 = vector.extract_strided_slice %287 {offsets = [0, 22], sizes = [16, 1], strides = [1, 1]} : vector<16x32xf32> to vector<16x1xf32>
    %c22 = arith.constant 22 : index
    %c0_173 = arith.constant 0 : index
    %c0_174 = arith.constant 0 : index
    %437 = vector.load %arg7[%c22, %c0_173, %c0_174] : memref<32x16x32xf32, #tpu.memory_space<vmem>>, vector<1x16x32xf32>
    %438 = vector.shape_cast %437 : vector<1x16x32xf32> to vector<16x32xf32>
    %439 = vector.broadcast %436 : vector<16x1xf32> to vector<16x32xf32>
    %440 = arith.mulf %439, %438 : vector<16x32xf32>
    %441 = arith.addf %435, %440 : vector<16x32xf32>
    %442 = vector.extract_strided_slice %287 {offsets = [0, 23], sizes = [16, 1], strides = [1, 1]} : vector<16x32xf32> to vector<16x1xf32>
    %c23 = arith.constant 23 : index
    %c0_175 = arith.constant 0 : index
    %c0_176 = arith.constant 0 : index
    %443 = vector.load %arg7[%c23, %c0_175, %c0_176] : memref<32x16x32xf32, #tpu.memory_space<vmem>>, vector<1x16x32xf32>
    %444 = vector.shape_cast %443 : vector<1x16x32xf32> to vector<16x32xf32>
    %445 = vector.broadcast %442 : vector<16x1xf32> to vector<16x32xf32>
    %446 = arith.mulf %445, %444 : vector<16x32xf32>
    %447 = arith.addf %441, %446 : vector<16x32xf32>
    %448 = vector.extract_strided_slice %287 {offsets = [0, 24], sizes = [16, 1], strides = [1, 1]} : vector<16x32xf32> to vector<16x1xf32>
    %c24 = arith.constant 24 : index
    %c0_177 = arith.constant 0 : index
    %c0_178 = arith.constant 0 : index
    %449 = vector.load %arg7[%c24, %c0_177, %c0_178] : memref<32x16x32xf32, #tpu.memory_space<vmem>>, vector<1x16x32xf32>
    %450 = vector.shape_cast %449 : vector<1x16x32xf32> to vector<16x32xf32>
    %451 = vector.broadcast %448 : vector<16x1xf32> to vector<16x32xf32>
    %452 = arith.mulf %451, %450 : vector<16x32xf32>
    %453 = arith.addf %447, %452 : vector<16x32xf32>
    %454 = vector.extract_strided_slice %287 {offsets = [0, 25], sizes = [16, 1], strides = [1, 1]} : vector<16x32xf32> to vector<16x1xf32>
    %c25 = arith.constant 25 : index
    %c0_179 = arith.constant 0 : index
    %c0_180 = arith.constant 0 : index
    %455 = vector.load %arg7[%c25, %c0_179, %c0_180] : memref<32x16x32xf32, #tpu.memory_space<vmem>>, vector<1x16x32xf32>
    %456 = vector.shape_cast %455 : vector<1x16x32xf32> to vector<16x32xf32>
    %457 = vector.broadcast %454 : vector<16x1xf32> to vector<16x32xf32>
    %458 = arith.mulf %457, %456 : vector<16x32xf32>
    %459 = arith.addf %453, %458 : vector<16x32xf32>
    %460 = vector.extract_strided_slice %287 {offsets = [0, 26], sizes = [16, 1], strides = [1, 1]} : vector<16x32xf32> to vector<16x1xf32>
    %c26 = arith.constant 26 : index
    %c0_181 = arith.constant 0 : index
    %c0_182 = arith.constant 0 : index
    %461 = vector.load %arg7[%c26, %c0_181, %c0_182] : memref<32x16x32xf32, #tpu.memory_space<vmem>>, vector<1x16x32xf32>
    %462 = vector.shape_cast %461 : vector<1x16x32xf32> to vector<16x32xf32>
    %463 = vector.broadcast %460 : vector<16x1xf32> to vector<16x32xf32>
    %464 = arith.mulf %463, %462 : vector<16x32xf32>
    %465 = arith.addf %459, %464 : vector<16x32xf32>
    %466 = vector.extract_strided_slice %287 {offsets = [0, 27], sizes = [16, 1], strides = [1, 1]} : vector<16x32xf32> to vector<16x1xf32>
    %c27 = arith.constant 27 : index
    %c0_183 = arith.constant 0 : index
    %c0_184 = arith.constant 0 : index
    %467 = vector.load %arg7[%c27, %c0_183, %c0_184] : memref<32x16x32xf32, #tpu.memory_space<vmem>>, vector<1x16x32xf32>
    %468 = vector.shape_cast %467 : vector<1x16x32xf32> to vector<16x32xf32>
    %469 = vector.broadcast %466 : vector<16x1xf32> to vector<16x32xf32>
    %470 = arith.mulf %469, %468 : vector<16x32xf32>
    %471 = arith.addf %465, %470 : vector<16x32xf32>
    %472 = vector.extract_strided_slice %287 {offsets = [0, 28], sizes = [16, 1], strides = [1, 1]} : vector<16x32xf32> to vector<16x1xf32>
    %c28 = arith.constant 28 : index
    %c0_185 = arith.constant 0 : index
    %c0_186 = arith.constant 0 : index
    %473 = vector.load %arg7[%c28, %c0_185, %c0_186] : memref<32x16x32xf32, #tpu.memory_space<vmem>>, vector<1x16x32xf32>
    %474 = vector.shape_cast %473 : vector<1x16x32xf32> to vector<16x32xf32>
    %475 = vector.broadcast %472 : vector<16x1xf32> to vector<16x32xf32>
    %476 = arith.mulf %475, %474 : vector<16x32xf32>
    %477 = arith.addf %471, %476 : vector<16x32xf32>
    %478 = vector.extract_strided_slice %287 {offsets = [0, 29], sizes = [16, 1], strides = [1, 1]} : vector<16x32xf32> to vector<16x1xf32>
    %c29 = arith.constant 29 : index
    %c0_187 = arith.constant 0 : index
    %c0_188 = arith.constant 0 : index
    %479 = vector.load %arg7[%c29, %c0_187, %c0_188] : memref<32x16x32xf32, #tpu.memory_space<vmem>>, vector<1x16x32xf32>
    %480 = vector.shape_cast %479 : vector<1x16x32xf32> to vector<16x32xf32>
    %481 = vector.broadcast %478 : vector<16x1xf32> to vector<16x32xf32>
    %482 = arith.mulf %481, %480 : vector<16x32xf32>
    %483 = arith.addf %477, %482 : vector<16x32xf32>
    %484 = vector.extract_strided_slice %287 {offsets = [0, 30], sizes = [16, 1], strides = [1, 1]} : vector<16x32xf32> to vector<16x1xf32>
    %c30 = arith.constant 30 : index
    %c0_189 = arith.constant 0 : index
    %c0_190 = arith.constant 0 : index
    %485 = vector.load %arg7[%c30, %c0_189, %c0_190] : memref<32x16x32xf32, #tpu.memory_space<vmem>>, vector<1x16x32xf32>
    %486 = vector.shape_cast %485 : vector<1x16x32xf32> to vector<16x32xf32>
    %487 = vector.broadcast %484 : vector<16x1xf32> to vector<16x32xf32>
    %488 = arith.mulf %487, %486 : vector<16x32xf32>
    %489 = arith.addf %483, %488 : vector<16x32xf32>
    %490 = vector.extract_strided_slice %287 {offsets = [0, 31], sizes = [16, 1], strides = [1, 1]} : vector<16x32xf32> to vector<16x1xf32>
    %c31 = arith.constant 31 : index
    %c0_191 = arith.constant 0 : index
    %c0_192 = arith.constant 0 : index
    %491 = vector.load %arg7[%c31, %c0_191, %c0_192] : memref<32x16x32xf32, #tpu.memory_space<vmem>>, vector<1x16x32xf32>
    %492 = vector.shape_cast %491 : vector<1x16x32xf32> to vector<16x32xf32>
    %493 = vector.broadcast %490 : vector<16x1xf32> to vector<16x32xf32>
    %494 = arith.mulf %493, %492 : vector<16x32xf32>
    %495 = arith.addf %489, %494 : vector<16x32xf32>
    %496 = tpu.iota {dimensions = array<i32: 0>} : vector<16x16xi32>
    %497 = tpu.iota {dimensions = array<i32: 1>} : vector<16x16xi32>
    %498 = arith.cmpi eq, %496, %497 : vector<16x16xi32>
    %cst_193 = arith.constant 5.000000e-01 : f32
    %499 = vector.broadcast %cst_193 : f32 to vector<16x1xf32>
    %500 = arith.cmpf ogt, %285, %499 : vector<16x1xf32>
    %cst_194 = arith.constant 0.000000e+00 : f32
    %501 = vector.shape_cast %285 : vector<16x1xf32> to vector<16x1xf32>
    %502 = vector.broadcast %501 : vector<16x1xf32> to vector<16x16xf32>
    %503 = vector.broadcast %cst_194 : f32 to vector<16x16xf32>
    %504 = arith.select %498, %502, %503 : vector<16x16xi1>, vector<16x16xf32>
    %cst_195 = arith.constant dense<0.000000e+00> : vector<16xf32>
    %505 = vector.multi_reduction <add>, %504, %cst_195 [0] : vector<16x16xf32> to vector<16xf32>
    %506 = vector.shape_cast %505 : vector<16xf32> to vector<1x16xf32>
    %cst_196 = arith.constant 5.000000e-01 : f32
    %507 = vector.broadcast %cst_196 : f32 to vector<1x16xf32>
    %508 = arith.cmpf ogt, %506, %507 : vector<1x16xf32>
    %509 = vector.broadcast %500 : vector<16x1xi1> to vector<16x16xi1>
    %510 = vector.broadcast %508 : vector<1x16xi1> to vector<16x16xi1>
    %511 = arith.andi %509, %510 : vector<16x16xi1>
    %cst_197 = arith.constant 5.000000e-01 : f32
    %512 = vector.broadcast %cst_197 : f32 to vector<16x16xf32>
    %513 = arith.cmpf ogt, %5, %512 : vector<16x16xf32>
    %514 = arith.andi %513, %511 : vector<16x16xi1>
    %515 = vector.broadcast %500 : vector<16x1xi1> to vector<16x16xi1>
    %516 = arith.andi %498, %515 : vector<16x16xi1>
    %517 = arith.ori %514, %516 : vector<16x16xi1>
    %cst_198 = arith.constant dense<true> : vector<16x16xi1>
    %518 = arith.xori %514, %cst_198 : vector<16x16xi1>
    %519 = arith.andi %498, %518 : vector<16x16xi1>
    %cst_199 = arith.constant 1.000000e+00 : f32
    %520 = vector.broadcast %cst_199 : f32 to vector<16x16xf32>
    %521 = arith.select %519, %520, %3 : vector<16x16xi1>, vector<16x16xf32>
    %cst_200 = arith.constant -1.000000e+30 : f32
    %522 = vector.broadcast %cst_200 : f32 to vector<16x16xf32>
    %523 = arith.select %517, %521, %522 : vector<16x16xi1>, vector<16x16xf32>
    %cst_201 = arith.constant dense<0xFF800000> : vector<16xf32>
    %524 = vector.multi_reduction <maximumf>, %523, %cst_201 [1] : vector<16x16xf32> to vector<16xf32>
    %525 = vector.shape_cast %524 : vector<16xf32> to vector<16x1xf32>
    %526 = vector.broadcast %525 : vector<16x1xf32> to vector<16x16xf32>
    %527 = arith.subf %523, %526 : vector<16x16xf32>
    %528 = math.exp %527 : vector<16x16xf32>
    %cst_202 = arith.constant 0.000000e+00 : f32
    %529 = vector.broadcast %cst_202 : f32 to vector<16x16xf32>
    %530 = arith.select %517, %528, %529 : vector<16x16xi1>, vector<16x16xf32>
    %cst_203 = arith.constant dense<0.000000e+00> : vector<16xf32>
    %531 = vector.multi_reduction <add>, %530, %cst_203 [1] : vector<16x16xf32> to vector<16xf32>
    %532 = vector.shape_cast %531 : vector<16xf32> to vector<16x1xf32>
    %cst_204 = arith.constant 0.000000e+00 : f32
    %533 = vector.broadcast %cst_204 : f32 to vector<16x1xf32>
    %534 = arith.cmpf ogt, %532, %533 : vector<16x1xf32>
    %cst_205 = arith.constant 1.000000e+00 : f32
    %535 = vector.broadcast %cst_205 : f32 to vector<16x1xf32>
    %536 = arith.select %534, %532, %535 : vector<16x1xi1>, vector<16x1xf32>
    %537 = tpu.reciprocal %536 {approx = true} : vector<16x1xf32> -> vector<16x1xf32>
    %538 = vector.broadcast %537 : vector<16x1xf32> to vector<16x16xf32>
    %539 = arith.mulf %530, %538 : vector<16x16xf32>
    %540 = arith.extui %517 : vector<16x16xi1> to vector<16x16xi32>
    %541 = arith.sitofp %540 : vector<16x16xi32> to vector<16x16xf32>
    %cst_206 = arith.constant dense<0.000000e+00> : vector<16xf32>
    %542 = vector.multi_reduction <add>, %541, %cst_206 [1] : vector<16x16xf32> to vector<16xf32>
    %543 = vector.shape_cast %542 : vector<16xf32> to vector<16x1xf32>
    %cst_207 = arith.constant 1.000000e+00 : f32
    %544 = vector.broadcast %cst_207 : f32 to vector<16x1xf32>
    %545 = arith.maximumf %543, %544 : vector<16x1xf32>
    %cst_208 = arith.constant dense<0.000000e+00> : vector<16x32xf32>
    %546 = tpu.matmul %539, %495, %cst_208 {dimension_numbers = #tpu.dot_dimension_numbers<[1], [0], [0], [1], [0, 0, 1, 1], [], []>} : vector<16x16xf32>, vector<16x32xf32>, vector<16x32xf32> -> vector<16x32xf32>
    %547 = tpu.reciprocal %545 {approx = true} : vector<16x1xf32> -> vector<16x1xf32>
    %548 = vector.broadcast %547 : vector<16x1xf32> to vector<16x32xf32>
    %549 = arith.mulf %546, %548 : vector<16x32xf32>
    %550 = vector.broadcast %304 : vector<1x32xf32> to vector<16x32xf32>
    %551 = arith.addf %549, %550 : vector<16x32xf32>
    %c0_209 = arith.constant 0 : index
    %c0_210 = arith.constant 0 : index
    %552 = vector.load %arg9[%c0_209, %c0_210] : memref<1x32xf32, #tpu.memory_space<vmem>>, vector<1x32xf32>
    %553 = vector.broadcast %552 : vector<1x32xf32> to vector<16x32xf32>
    %554 = arith.mulf %551, %553 : vector<16x32xf32>
    %cst_211 = arith.constant dense<0.000000e+00> : vector<16xf32>
    %555 = vector.multi_reduction <add>, %554, %cst_211 [1] : vector<16x32xf32> to vector<16xf32>
    %556 = vector.shape_cast %555 : vector<16xf32> to vector<16x1xf32>
    %cst_212 = arith.constant 0.000000e+00 : f32
    %557 = vector.broadcast %cst_212 : f32 to vector<16x1xf32>
    %558 = arith.subf %557, %556 : vector<16x1xf32>
    %559 = math.exp %558 : vector<16x1xf32>
    %cst_213 = arith.constant 1.000000e+00 : f32
    %560 = vector.broadcast %cst_213 : f32 to vector<16x1xf32>
    %561 = arith.addf %560, %559 : vector<16x1xf32>
    %562 = tpu.reciprocal %561 {approx = true} : vector<16x1xf32> -> vector<16x1xf32>
    %563 = tpu.iota {dimensions = array<i32: 0>} : vector<16x1xi32>
    %cst_214 = arith.constant 0.000000e+00 : f32
    %564 = vector.broadcast %cst_214 : f32 to vector<16x1xf32>
    %cst_215 = arith.constant 5.000000e-01 : f32
    %565 = vector.broadcast %cst_215 : f32 to vector<16x1xf32>
    %566 = arith.cmpf ogt, %285, %565 : vector<16x1xf32>
    %cst_216 = arith.constant -1.000000e+30 : f32
    %567 = vector.broadcast %cst_216 : f32 to vector<16x1xf32>
    %568 = arith.select %566, %562, %567 : vector<16x1xi1>, vector<16x1xf32>
    %cst_217 = arith.constant dense<0xFF800000> : vector<1xf32>
    %569 = vector.multi_reduction <maximumf>, %568, %cst_217 [0] : vector<16x1xf32> to vector<1xf32>
    %570 = vector.shape_cast %569 : vector<1xf32> to vector<1x1xf32>
    %571 = vector.broadcast %570 : vector<1x1xf32> to vector<16x1xf32>
    %572 = arith.cmpf oge, %568, %571 : vector<16x1xf32>
    %c16_i32_218 = arith.constant 16 : i32
    %573 = vector.broadcast %c16_i32_218 : i32 to vector<16x1xi32>
    %574 = arith.select %572, %563, %573 : vector<16x1xi1>, vector<16x1xi32>
    %cst_219 = arith.constant dense<2147483647> : vector<1xi32>
    %575 = vector.multi_reduction <minsi>, %574, %cst_219 [0] : vector<16x1xi32> to vector<1xi32>
    %576 = vector.shape_cast %575 : vector<1xi32> to vector<1x1xi32>
    %577 = vector.broadcast %576 : vector<1x1xi32> to vector<16x1xi32>
    %578 = arith.cmpi eq, %563, %577 : vector<16x1xi32>
    %cst_220 = arith.constant 1.000000e+00 : f32
    %579 = vector.broadcast %cst_220 : f32 to vector<16x1xf32>
    %580 = arith.select %578, %579, %564 : vector<16x1xi1>, vector<16x1xf32>
    %cst_221 = arith.constant -1.000000e+30 : f32
    %581 = vector.broadcast %cst_221 : f32 to vector<16x1xf32>
    %582 = arith.select %578, %581, %568 : vector<16x1xi1>, vector<16x1xf32>
    %cst_222 = arith.constant dense<0xFF800000> : vector<1xf32>
    %583 = vector.multi_reduction <maximumf>, %582, %cst_222 [0] : vector<16x1xf32> to vector<1xf32>
    %584 = vector.shape_cast %583 : vector<1xf32> to vector<1x1xf32>
    %585 = vector.broadcast %584 : vector<1x1xf32> to vector<16x1xf32>
    %586 = arith.cmpf oge, %582, %585 : vector<16x1xf32>
    %c16_i32_223 = arith.constant 16 : i32
    %587 = vector.broadcast %c16_i32_223 : i32 to vector<16x1xi32>
    %588 = arith.select %586, %563, %587 : vector<16x1xi1>, vector<16x1xi32>
    %cst_224 = arith.constant dense<2147483647> : vector<1xi32>
    %589 = vector.multi_reduction <minsi>, %588, %cst_224 [0] : vector<16x1xi32> to vector<1xi32>
    %590 = vector.shape_cast %589 : vector<1xi32> to vector<1x1xi32>
    %591 = vector.broadcast %590 : vector<1x1xi32> to vector<16x1xi32>
    %592 = arith.cmpi eq, %563, %591 : vector<16x1xi32>
    %cst_225 = arith.constant 1.000000e+00 : f32
    %593 = vector.broadcast %cst_225 : f32 to vector<16x1xf32>
    %594 = arith.select %592, %593, %580 : vector<16x1xi1>, vector<16x1xf32>
    %cst_226 = arith.constant -1.000000e+30 : f32
    %595 = vector.broadcast %cst_226 : f32 to vector<16x1xf32>
    %596 = arith.select %592, %595, %582 : vector<16x1xi1>, vector<16x1xf32>
    %cst_227 = arith.constant dense<0xFF800000> : vector<1xf32>
    %597 = vector.multi_reduction <maximumf>, %596, %cst_227 [0] : vector<16x1xf32> to vector<1xf32>
    %598 = vector.shape_cast %597 : vector<1xf32> to vector<1x1xf32>
    %599 = vector.broadcast %598 : vector<1x1xf32> to vector<16x1xf32>
    %600 = arith.cmpf oge, %596, %599 : vector<16x1xf32>
    %c16_i32_228 = arith.constant 16 : i32
    %601 = vector.broadcast %c16_i32_228 : i32 to vector<16x1xi32>
    %602 = arith.select %600, %563, %601 : vector<16x1xi1>, vector<16x1xi32>
    %cst_229 = arith.constant dense<2147483647> : vector<1xi32>
    %603 = vector.multi_reduction <minsi>, %602, %cst_229 [0] : vector<16x1xi32> to vector<1xi32>
    %604 = vector.shape_cast %603 : vector<1xi32> to vector<1x1xi32>
    %605 = vector.broadcast %604 : vector<1x1xi32> to vector<16x1xi32>
    %606 = arith.cmpi eq, %563, %605 : vector<16x1xi32>
    %cst_230 = arith.constant 1.000000e+00 : f32
    %607 = vector.broadcast %cst_230 : f32 to vector<16x1xf32>
    %608 = arith.select %606, %607, %594 : vector<16x1xi1>, vector<16x1xf32>
    %cst_231 = arith.constant -1.000000e+30 : f32
    %609 = vector.broadcast %cst_231 : f32 to vector<16x1xf32>
    %610 = arith.select %606, %609, %596 : vector<16x1xi1>, vector<16x1xf32>
    %cst_232 = arith.constant dense<0xFF800000> : vector<1xf32>
    %611 = vector.multi_reduction <maximumf>, %610, %cst_232 [0] : vector<16x1xf32> to vector<1xf32>
    %612 = vector.shape_cast %611 : vector<1xf32> to vector<1x1xf32>
    %613 = vector.broadcast %612 : vector<1x1xf32> to vector<16x1xf32>
    %614 = arith.cmpf oge, %610, %613 : vector<16x1xf32>
    %c16_i32_233 = arith.constant 16 : i32
    %615 = vector.broadcast %c16_i32_233 : i32 to vector<16x1xi32>
    %616 = arith.select %614, %563, %615 : vector<16x1xi1>, vector<16x1xi32>
    %cst_234 = arith.constant dense<2147483647> : vector<1xi32>
    %617 = vector.multi_reduction <minsi>, %616, %cst_234 [0] : vector<16x1xi32> to vector<1xi32>
    %618 = vector.shape_cast %617 : vector<1xi32> to vector<1x1xi32>
    %619 = vector.broadcast %618 : vector<1x1xi32> to vector<16x1xi32>
    %620 = arith.cmpi eq, %563, %619 : vector<16x1xi32>
    %cst_235 = arith.constant 1.000000e+00 : f32
    %621 = vector.broadcast %cst_235 : f32 to vector<16x1xf32>
    %622 = arith.select %620, %621, %608 : vector<16x1xi1>, vector<16x1xf32>
    %623 = vector.broadcast %562 : vector<16x1xf32> to vector<16x32xf32>
    %624 = arith.mulf %551, %623 : vector<16x32xf32>
    %cst_236 = arith.constant 5.000000e-01 : f32
    %625 = vector.broadcast %cst_236 : f32 to vector<16x1xf32>
    %626 = arith.cmpf ogt, %622, %625 : vector<16x1xf32>
    %cst_237 = arith.constant -1.000000e+30 : f32
    %627 = vector.shape_cast %626 : vector<16x1xi1> to vector<16x1xi1>
    %628 = vector.broadcast %627 : vector<16x1xi1> to vector<16x32xi1>
    %629 = vector.broadcast %cst_237 : f32 to vector<16x32xf32>
    %630 = arith.select %628, %624, %629 : vector<16x32xi1>, vector<16x32xf32>
    %cst_238 = arith.constant dense<0xFF800000> : vector<32xf32>
    %631 = vector.multi_reduction <maximumf>, %630, %cst_238 [0] : vector<16x32xf32> to vector<32xf32>
    %632 = vector.shape_cast %631 : vector<32xf32> to vector<1x32xf32>
    %cst_239 = arith.constant 0.000000e+00 : f32
    %633 = vector.shape_cast %626 : vector<16x1xi1> to vector<16x1xi1>
    %634 = vector.broadcast %633 : vector<16x1xi1> to vector<16x32xi1>
    %635 = vector.broadcast %cst_239 : f32 to vector<16x32xf32>
    %636 = arith.select %634, %624, %635 : vector<16x32xi1>, vector<16x32xf32>
    %cst_240 = arith.constant dense<0.000000e+00> : vector<32xf32>
    %637 = vector.multi_reduction <add>, %636, %cst_240 [0] : vector<16x32xf32> to vector<32xf32>
    %638 = vector.shape_cast %637 : vector<32xf32> to vector<1x32xf32>
    %cst_241 = arith.constant 2.500000e-01 : f32
    %639 = vector.broadcast %cst_241 : f32 to vector<1x32xf32>
    %640 = arith.mulf %638, %639 : vector<1x32xf32>
    %641 = tpu.concatenate %295, %303, %632, %640 in 1 : vector<1x32xf32>, vector<1x32xf32>, vector<1x32xf32>, vector<1x32xf32> -> vector<1x128xf32>
    %c0_242 = arith.constant 0 : index
    %c0_243 = arith.constant 0 : index
    %642 = vector.load %arg10[%c0_242, %c0_243] : memref<128x32xf32, #tpu.memory_space<vmem>>, vector<128x32xf32>
    %cst_244 = arith.constant dense<0.000000e+00> : vector<1x32xf32>
    %643 = tpu.matmul %641, %642, %cst_244 {dimension_numbers = #tpu.dot_dimension_numbers<[1], [0], [0], [1], [0, 0, 1, 1], [], []>} : vector<1x128xf32>, vector<128x32xf32>, vector<1x32xf32> -> vector<1x32xf32>
    %c0_245 = arith.constant 0 : index
    %c0_246 = arith.constant 0 : index
    %644 = vector.load %arg11[%c0_245, %c0_246] : memref<1x32xf32, #tpu.memory_space<vmem>>, vector<1x32xf32>
    %645 = arith.addf %643, %644 : vector<1x32xf32>
    %cst_247 = arith.constant 0.000000e+00 : f32
    %646 = vector.broadcast %cst_247 : f32 to vector<1x32xf32>
    %647 = arith.maximumf %645, %646 : vector<1x32xf32>
    %c0_248 = arith.constant 0 : index
    %c0_249 = arith.constant 0 : index
    %648 = vector.load %arg12[%c0_248, %c0_249] : memref<32x512xf32, #tpu.memory_space<vmem>>, vector<32x512xf32>
    %cst_250 = arith.constant dense<0.000000e+00> : vector<1x512xf32>
    %649 = tpu.matmul %647, %648, %cst_250 {dimension_numbers = #tpu.dot_dimension_numbers<[1], [0], [0], [1], [0, 0, 1, 1], [], []>} : vector<1x32xf32>, vector<32x512xf32>, vector<1x512xf32> -> vector<1x512xf32>
    %c0_251 = arith.constant 0 : index
    %c0_252 = arith.constant 0 : index
    %650 = vector.load %arg13[%c0_251, %c0_252] : memref<1x512xf32, #tpu.memory_space<vmem>>, vector<1x512xf32>
    %651 = arith.addf %649, %650 : vector<1x512xf32>
    %cst_253 = arith.constant 0.000000e+00 : f32
    %652 = vector.broadcast %cst_253 : f32 to vector<1x512xf32>
    %653 = arith.maximumf %651, %652 : vector<1x512xf32>
    %c0_254 = arith.constant 0 : index
    %c0_255 = arith.constant 0 : index
    %654 = vector.load %arg14[%c0_254, %c0_255] : memref<512x128xf32, #tpu.memory_space<vmem>>, vector<512x128xf32>
    %cst_256 = arith.constant dense<0.000000e+00> : vector<1x128xf32>
    %655 = tpu.matmul %653, %654, %cst_256 {dimension_numbers = #tpu.dot_dimension_numbers<[1], [0], [0], [1], [0, 0, 1, 1], [], []>} : vector<1x512xf32>, vector<512x128xf32>, vector<1x128xf32> -> vector<1x128xf32>
    %c0_257 = arith.constant 0 : index
    %c0_258 = arith.constant 0 : index
    %656 = vector.load %arg15[%c0_257, %c0_258] : memref<1x128xf32, #tpu.memory_space<vmem>>, vector<1x128xf32>
    %657 = arith.addf %655, %656 : vector<1x128xf32>
    %cst_259 = arith.constant dense<0xFF800000> : vector<1xf32>
    %658 = vector.multi_reduction <maximumf>, %657, %cst_259 [1] : vector<1x128xf32> to vector<1xf32>
    %659 = vector.shape_cast %658 : vector<1xf32> to vector<1x1xf32>
    %660 = vector.broadcast %659 : vector<1x1xf32> to vector<1x128xf32>
    %661 = arith.subf %657, %660 : vector<1x128xf32>
    %662 = math.exp %661 : vector<1x128xf32>
    %cst_260 = arith.constant dense<0.000000e+00> : vector<1xf32>
    %663 = vector.multi_reduction <add>, %662, %cst_260 [1] : vector<1x128xf32> to vector<1xf32>
    %664 = vector.shape_cast %663 : vector<1xf32> to vector<1x1xf32>
    %665 = math.log %664 : vector<1x1xf32>
    %666 = vector.broadcast %665 : vector<1x1xf32> to vector<1x128xf32>
    %667 = arith.subf %661, %666 : vector<1x128xf32>
    %c0_261 = arith.constant 0 : index
    %c0_262 = arith.constant 0 : index
    %c0_263 = arith.constant 0 : index
    %668 = vector.load %arg16[%c0_261, %c0_262, %c0_263] : memref<1x1x128xf32, #tpu.memory_space<vmem>>, vector<1x1x128xf32>
    %669 = vector.shape_cast %668 : vector<1x1x128xf32> to vector<1x128xf32>
    %670 = vector.shape_cast %667 : vector<1x128xf32> to vector<1x1x128xf32>
    tpu.vector_store %arg16[%c0_261, %c0_262, %c0_263], %670 {strides = array<i32>} : memref<1x1x128xf32, #tpu.memory_space<vmem>>, vector<1x1x128xf32>,
    return
  }
  func.func @transform_0(%arg0: i32) -> (i32, i32, i32) {
    %c0_i32 = arith.constant 0 : i32
    %c0_i32_0 = arith.constant 0 : i32
    %c0_i32_1 = arith.constant 0 : i32
    return %arg0, %c0_i32, %c0_i32_0 : i32, i32, i32
  }
  func.func @transform_1(%arg0: i32) -> (i32, i32, i32) {
    %c0_i32 = arith.constant 0 : i32
    %c0_i32_0 = arith.constant 0 : i32
    %c0_i32_1 = arith.constant 0 : i32
    return %arg0, %c0_i32, %c0_i32_0 : i32, i32, i32
  }
  func.func @transform_2(%arg0: i32) -> (i32, i32, i32) {
    %c0_i32 = arith.constant 0 : i32
    %c0_i32_0 = arith.constant 0 : i32
    %c0_i32_1 = arith.constant 0 : i32
    return %arg0, %c0_i32, %c0_i32_0 : i32, i32, i32
  }
  func.func @transform_3(%arg0: i32) -> (i32, i32, i32) {
    %c0_i32 = arith.constant 0 : i32
    %c0_i32_0 = arith.constant 0 : i32
    %c0_i32_1 = arith.constant 0 : i32
    %c0_i32_2 = arith.constant 0 : i32
    return %c0_i32, %c0_i32_0, %c0_i32_1 : i32, i32, i32
  }
  func.func @transform_4(%arg0: i32) -> (i32, i32) {
    %c0_i32 = arith.constant 0 : i32
    %c0_i32_0 = arith.constant 0 : i32
    %c0_i32_1 = arith.constant 0 : i32
    return %c0_i32, %c0_i32_0 : i32, i32
  }
  func.func @transform_5(%arg0: i32) -> (i32, i32) {
    %c0_i32 = arith.constant 0 : i32
    %c0_i32_0 = arith.constant 0 : i32
    %c0_i32_1 = arith.constant 0 : i32
    return %c0_i32, %c0_i32_0 : i32, i32
  }
  func.func @transform_6(%arg0: i32) -> (i32, i32, i32) {
    %c0_i32 = arith.constant 0 : i32
    %c0_i32_0 = arith.constant 0 : i32
    %c0_i32_1 = arith.constant 0 : i32
    %c0_i32_2 = arith.constant 0 : i32
    return %c0_i32, %c0_i32_0, %c0_i32_1 : i32, i32, i32
  }
  func.func @transform_7(%arg0: i32) -> (i32, i32) {
    %c0_i32 = arith.constant 0 : i32
    %c0_i32_0 = arith.constant 0 : i32
    %c0_i32_1 = arith.constant 0 : i32
    return %c0_i32, %c0_i32_0 : i32, i32
  }
  func.func @transform_8(%arg0: i32) -> (i32, i32) {
    %c0_i32 = arith.constant 0 : i32
    %c0_i32_0 = arith.constant 0 : i32
    %c0_i32_1 = arith.constant 0 : i32
    return %c0_i32, %c0_i32_0 : i32, i32
  }
  func.func @transform_9(%arg0: i32) -> (i32, i32) {
    %c0_i32 = arith.constant 0 : i32
    %c0_i32_0 = arith.constant 0 : i32
    %c0_i32_1 = arith.constant 0 : i32
    return %c0_i32, %c0_i32_0 : i32, i32
  }
  func.func @transform_10(%arg0: i32) -> (i32, i32) {
    %c0_i32 = arith.constant 0 : i32
    %c0_i32_0 = arith.constant 0 : i32
    %c0_i32_1 = arith.constant 0 : i32
    return %c0_i32, %c0_i32_0 : i32, i32
  }
  func.func @transform_11(%arg0: i32) -> (i32, i32) {
    %c0_i32 = arith.constant 0 : i32
    %c0_i32_0 = arith.constant 0 : i32
    %c0_i32_1 = arith.constant 0 : i32
    return %c0_i32, %c0_i32_0 : i32, i32
  }
  func.func @transform_12(%arg0: i32) -> (i32, i32) {
    %c0_i32 = arith.constant 0 : i32
    %c0_i32_0 = arith.constant 0 : i32
    %c0_i32_1 = arith.constant 0 : i32
    return %c0_i32, %c0_i32_0 : i32, i32
  }
  func.func @transform_13(%arg0: i32) -> (i32, i32) {
    %c0_i32 = arith.constant 0 : i32
    %c0_i32_0 = arith.constant 0 : i32
    %c0_i32_1 = arith.constant 0 : i32
    return %c0_i32, %c0_i32_0 : i32, i32
  }
  func.func @transform_14(%arg0: i32) -> (i32, i32) {
    %c0_i32 = arith.constant 0 : i32
    %c0_i32_0 = arith.constant 0 : i32
    %c0_i32_1 = arith.constant 0 : i32
    return %c0_i32, %c0_i32_0 : i32, i32
  }
  func.func @transform_15(%arg0: i32) -> (i32, i32, i32) {
    %c0_i32 = arith.constant 0 : i32
    %c0_i32_0 = arith.constant 0 : i32
    %c0_i32_1 = arith.constant 0 : i32
    return %arg0, %c0_i32, %c0_i32_0 : i32, i32, i32
  }
}

</mosaic_0001>

<llo_original>
// kernel: tpu_custom_call.1
$region0: #{tpu_custom_call.1}
  #allocation0 [shape = 'u32[]', space=smem, size = 0x4, offset = 0x4, fixed_abs, tag = 'smem constant byte address 0x4 - core index']
  #allocation1 [shape = 'u32[144,128]{1,0:T(1,128)}', space=vmem, size = 0x12000, scoped, tag = 'internal scratch']
  %s0 = inlined_call_operand.vmem [shape: f32[2,16,16], index: 0, kind: input, shape index: {}]
  %s1 = inlined_call_operand.vmem [shape: f32[2,16,16], index: 1, kind: input, shape index: {}]
  %s2 = inlined_call_operand.hbm [shape: f32[2,16,16], index: 2, kind: input, shape index: {}]
  %s3 = inlined_call_operand.hbm [shape: f32[16,16,32], index: 3, kind: input, shape index: {}]
  %s4 = inlined_call_operand.vmem [shape: f32[1,32], index: 4, kind: input, shape index: {}]
  %s5 = inlined_call_operand.vmem [shape: f32[1,32], index: 5, kind: input, shape index: {}]
  %s6 = inlined_call_operand.hbm [shape: f32[32,16,32], index: 6, kind: input, shape index: {}]
  %s7 = inlined_call_operand.vmem [shape: f32[1,32], index: 7, kind: input, shape index: {}]
  %s8 = inlined_call_operand.vmem [shape: f32[1,32], index: 8, kind: input, shape index: {}]
  %s9 = inlined_call_operand.vmem [shape: f32[128,32], index: 9, kind: input, shape index: {}]
  %s10 = inlined_call_operand.vmem [shape: f32[1,32], index: 10, kind: input, shape index: {}]
  %s11 = inlined_call_operand.vmem [shape: f32[32,512], index: 11, kind: input, shape index: {}]
  %s12 = inlined_call_operand.vmem [shape: f32[1,512], index: 12, kind: input, shape index: {}]
  %s13 = inlined_call_operand.hbm [shape: f32[512,128], index: 13, kind: input, shape index: {}]
  %s14 = inlined_call_operand.vmem [shape: f32[1,128], index: 14, kind: input, shape index: {}]
  %s15 = inlined_call_operand.hbm [shape: f32[2,1,128], index: 15, kind: output, shape index: {}]
  %s16 = sld [smem:[#allocation0]]
  $region109: #{tpu_custom_call.1} parent=0
    _
  %s18 = ssub.s32 1, %s16
  %s19 = scalar_select 0, %s18, %s16
  $region1: #{tpu_custom_call.1} parent=0
    #allocation2 [shape = 'u8[16384]{0}', space=vmem, size = 0x4000, scoped, tag = 'input window, operand 2']
    #allocation3 [shape = 's32[2]{0}', space=sflag, size = 0x8, scoped, tag = 'scoped memory for tpu_custom_call.1']
    #allocation4 [shape = 's32[2]{0}', space=sflag, size = 0x8, scoped, tag = 'scoped memory for tpu_custom_call.1']
    #allocation5 [shape = 'u8[131072]{0}', space=vmem, size = 0x20000, scoped, tag = 'input window, operand 3, single buffered']
    #allocation6 [shape = 's32[1]{0}', space=sflag, size = 0x4, scoped, tag = 'scoped memory for tpu_custom_call.1']
    #allocation7 [shape = 'u8[262144]{0}', space=vmem, size = 0x40000, scoped, tag = 'input window, operand 6, single buffered']
    #allocation8 [shape = 'u8[262144]{0}', space=vmem, size = 0x40000, scoped, tag = 'input window, operand 13, single buffered']
    #allocation9 [shape = 's32[1]{0}', space=sflag, size = 0x4, scoped, tag = 'scoped memory for tpu_custom_call.1']
    #allocation10 [shape = 'u8[1024]{0}', space=vmem, size = 0x400, scoped, tag = 'output window, operand 0']
    %20 = vsyncpa [#allocation3], 0
    %s21 = scalar_lea.sflag [#allocation3], 1
    %22 = vsyncpa %s21, 0
    %23 = vsyncpa [#allocation6], 0
    %24 = vsyncpa [#allocation9], 0
    %25 = vsyncpa [#allocation4], 0
    %s26 = scalar_lea.sflag [#allocation4], 1
    %27 = vsyncpa %s26, 0
    loop: start=0, step=1, limit=4
    $region2: #{tpu_custom_call.1} parent=1 // loop_pre_header
      _
    $region3: #{tpu_custom_call.1} parent=1 // loop_header
      %s29 = sphi 0, %s33
      %p30 = scmp.ge.s32.totalorder %s29, 4
      %s39 = sphi 0, %s41
      %s42 = sphi 0, %s39
      %s43 = sphi 0, %s42
      %s59 = sphi 0, %s43
      %s65 = sphi 0, %s67
      %s68 = sphi 0, %s65
      %s69 = sphi 0, %s68
      %s85 = sphi 0, %s69
      %s91 = sphi 0, %s93
      %s94 = sphi 0, %s91
      %s95 = sphi 0, %s94
      %s111 = sphi 0, %s95
      %s115 = sphi 0, %s115
      %s117 = sphi 0, %s115
      %s118 = sphi 0, %s117
      %s132 = sphi 0, %s118
      %s136 = sphi 0, %s136
      %s138 = sphi 0, %s136
      %s139 = sphi 0, %s138
      %s153 = sphi 0, %s139
      %s157 = sphi 0, %s157
      %s159 = sphi 0, %s157
      %s160 = sphi 0, %s159
      %s174 = sphi 0, %s160
      %s178 = sphi 0, %s178
      %s180 = sphi 0, %s178
      %s181 = sphi 0, %s180
      %s195 = sphi 0, %s181
      %s199 = sphi 0, %s199
      %s201 = sphi 0, %s199
      %s202 = sphi 0, %s201
      %s216 = sphi 0, %s202
      %s220 = sphi 0, %s220
      %s222 = sphi 0, %s220
      %s223 = sphi 0, %s222
      %s237 = sphi 0, %s223
      %s241 = sphi 0, %s241
      %s243 = sphi 0, %s241
      %s244 = sphi 0, %s243
      %s258 = sphi 0, %s244
      %s262 = sphi 0, %s262
      %s264 = sphi 0, %s262
      %s265 = sphi 0, %s264
      %s279 = sphi 0, %s265
      %s283 = sphi 0, %s283
      %s285 = sphi 0, %s283
      %s286 = sphi 0, %s285
      %s300 = sphi 0, %s286
      %s304 = sphi 0, %s304
      %s306 = sphi 0, %s304
      %s307 = sphi 0, %s306
      %s321 = sphi 0, %s307
      %s325 = sphi 0, %s325
      %s327 = sphi 0, %s325
      %s328 = sphi 0, %s327
      %s342 = sphi 0, %s328
      %s346 = sphi 0, %s346
      %s348 = sphi 0, %s346
      %s349 = sphi 0, %s348
      %s363 = sphi 0, %s349
      %s369 = sphi 0, %s371
      %s372 = sphi 0, %s369
      %s373 = sphi 0, %s372
      %s389 = sphi 0, %s373
    $region4: #{tpu_custom_call.1} parent=1 // loop_header_branch
      %32 = sbr.rel (%p30) target = $region8
    $region5: #{tpu_custom_call.1} parent=1 // loop_body
      %s34 = ssub.s32 %s29, 1
      %s35 = ssub.s32 %s29, 2
      %s36 = sadd.s32 %s29, 1
      %s37 = ssub.s32 %s29, %s36
      %p38 = scmp.eq.s32.totalorder %s37, 0
      %s40 = sadd.s32 %s39, 1
      %s41 = scalar_select %p38, %s39, %s40
      %p44 = pneg %p38
      %p45 = scmp.eq.s32.totalorder %s29, 1
      %p46 = por %p44, %p45
      %p47 = scmp.ne.s32.totalorder %s39, %s42
      %p48 = scmp.eq.s32.totalorder %s29, 0
      %p49 = por %p47, %p48
      %p50 = scmp.ne.s32.totalorder %s39, %s42
      %p51 = scmp.eq.s32.totalorder %s34, 1
      %p52 = por %p50, %p51
      %p53 = scmp.ne.s32.totalorder %s42, %s43
      %p54 = scmp.eq.s32.totalorder %s34, 0
      %p55 = por %p53, %p54
      %p56 = scmp.ne.s32.totalorder %s42, %s43
      %p57 = scmp.eq.s32.totalorder %s35, 1
      %p58 = por %p56, %p57
      %p60 = scmp.ne.s32.totalorder %s43, %s59
      %p61 = scmp.eq.s32.totalorder %s35, 0
      %p62 = por %p60, %p61
      %s63 = ssub.s32 %s29, %s36
      %p64 = scmp.eq.s32.totalorder %s63, 0
      %s66 = sadd.s32 %s65, 1
      %s67 = scalar_select %p64, %s65, %s66
      %p70 = pneg %p64
      %p71 = scmp.eq.s32.totalorder %s29, 1
      %p72 = por %p70, %p71
      %p73 = scmp.ne.s32.totalorder %s65, %s68
      %p74 = scmp.eq.s32.totalorder %s29, 0
      %p75 = por %p73, %p74
      %p76 = scmp.ne.s32.totalorder %s65, %s68
      %p77 = scmp.eq.s32.totalorder %s34, 1
      %p78 = por %p76, %p77
      %p79 = scmp.ne.s32.totalorder %s68, %s69
      %p80 = scmp.eq.s32.totalorder %s34, 0
      %p81 = por %p79, %p80
      %p82 = scmp.ne.s32.totalorder %s68, %s69
      %p83 = scmp.eq.s32.totalorder %s35, 1
      %p84 = por %p82, %p83
      %p86 = scmp.ne.s32.totalorder %s69, %s85
      %p87 = scmp.eq.s32.totalorder %s35, 0
      %p88 = por %p86, %p87
      %s89 = ssub.s32 %s29, %s36
      %p90 = scmp.eq.s32.totalorder %s89, 0
      %s92 = sadd.s32 %s91, 1
      %s93 = scalar_select %p90, %s91, %s92
      %p96 = pneg %p90
      %p97 = scmp.eq.s32.totalorder %s29, 1
      %p98 = por %p96, %p97
      %p99 = scmp.ne.s32.totalorder %s91, %s94
      %p100 = scmp.eq.s32.totalorder %s29, 0
      %p101 = por %p99, %p100
      %p102 = scmp.ne.s32.totalorder %s91, %s94
      %p103 = scmp.eq.s32.totalorder %s34, 1
      %p104 = por %p102, %p103
      %p105 = scmp.ne.s32.totalorder %s94, %s95
      %p106 = scmp.eq.s32.totalorder %s34, 0
      %p107 = por %p105, %p106
      %p108 = scmp.ne.s32.totalorder %s94, %s95
      %p109 = scmp.eq.s32.totalorder %s35, 1
      %p110 = por %p108, %p109
      %p112 = scmp.ne.s32.totalorder %s95, %s111
      %p113 = scmp.eq.s32.totalorder %s35, 0
      %p114 = por %p112, %p113
      %s116 = sadd.s32 %s115, 1
      %p119 = scmp.eq.s32.totalorder %s29, 1
      %p120 = scmp.ne.s32.totalorder %s115, %s117
      %p121 = scmp.eq.s32.totalorder %s29, 0
      %p122 = por %p120, %p121
      %p123 = scmp.ne.s32.totalorder %s115, %s117
      %p124 = scmp.eq.s32.totalorder %s34, 1
      %p125 = por %p123, %p124
      %p126 = scmp.ne.s32.totalorder %s117, %s118
      %p127 = scmp.eq.s32.totalorder %s34, 0
      %p128 = por %p126, %p127
      %p129 = scmp.ne.s32.totalorder %s117, %s118
      %p130 = scmp.eq.s32.totalorder %s35, 1
      %p131 = por %p129, %p130
      %p133 = scmp.ne.s32.totalorder %s118, %s132
      %p134 = scmp.eq.s32.totalorder %s35, 0
      %p135 = por %p133, %p134
      %s137 = sadd.s32 %s136, 1
      %p140 = scmp.eq.s32.totalorder %s29, 1
      %p141 = scmp.ne.s32.totalorder %s136, %s138
      %p142 = scmp.eq.s32.totalorder %s29, 0
      %p143 = por %p141, %p142
      %p144 = scmp.ne.s32.totalorder %s136, %s138
      %p145 = scmp.eq.s32.totalorder %s34, 1
      %p146 = por %p144, %p145
      %p147 = scmp.ne.s32.totalorder %s138, %s139
      %p148 = scmp.eq.s32.totalorder %s34, 0
      %p149 = por %p147, %p148
      %p150 = scmp.ne.s32.totalorder %s138, %s139
      %p151 = scmp.eq.s32.totalorder %s35, 1
      %p152 = por %p150, %p151
      %p154 = scmp.ne.s32.totalorder %s139, %s153
      %p155 = scmp.eq.s32.totalorder %s35, 0
      %p156 = por %p154, %p155
      %s158 = sadd.s32 %s157, 1
      %p161 = scmp.eq.s32.totalorder %s29, 1
      %p162 = scmp.ne.s32.totalorder %s157, %s159
      %p163 = scmp.eq.s32.totalorder %s29, 0
      %p164 = por %p162, %p163
      %p165 = scmp.ne.s32.totalorder %s157, %s159
      %p166 = scmp.eq.s32.totalorder %s34, 1
      %p167 = por %p165, %p166
      %p168 = scmp.ne.s32.totalorder %s159, %s160
      %p169 = scmp.eq.s32.totalorder %s34, 0
      %p170 = por %p168, %p169
      %p171 = scmp.ne.s32.totalorder %s159, %s160
      %p172 = scmp.eq.s32.totalorder %s35, 1
      %p173 = por %p171, %p172
      %p175 = scmp.ne.s32.totalorder %s160, %s174
      %p176 = scmp.eq.s32.totalorder %s35, 0
      %p177 = por %p175, %p176
      %s179 = sadd.s32 %s178, 1
      %p182 = scmp.eq.s32.totalorder %s29, 1
      %p183 = scmp.ne.s32.totalorder %s178, %s180
      %p184 = scmp.eq.s32.totalorder %s29, 0
      %p185 = por %p183, %p184
      %p186 = scmp.ne.s32.totalorder %s178, %s180
      %p187 = scmp.eq.s32.totalorder %s34, 1
      %p188 = por %p186, %p187
      %p189 = scmp.ne.s32.totalorder %s180, %s181
      %p190 = scmp.eq.s32.totalorder %s34, 0
      %p191 = por %p189, %p190
      %p192 = scmp.ne.s32.totalorder %s180, %s181
      %p193 = scmp.eq.s32.totalorder %s35, 1
      %p194 = por %p192, %p193
      %p196 = scmp.ne.s32.totalorder %s181, %s195
      %p197 = scmp.eq.s32.totalorder %s35, 0
      %p198 = por %p196, %p197
      %s200 = sadd.s32 %s199, 1
      %p203 = scmp.eq.s32.totalorder %s29, 1
      %p204 = scmp.ne.s32.totalorder %s199, %s201
      %p205 = scmp.eq.s32.totalorder %s29, 0
      %p206 = por %p204, %p205
      %p207 = scmp.ne.s32.totalorder %s199, %s201
      %p208 = scmp.eq.s32.totalorder %s34, 1
      %p209 = por %p207, %p208
      %p210 = scmp.ne.s32.totalorder %s201, %s202
      %p211 = scmp.eq.s32.totalorder %s34, 0
      %p212 = por %p210, %p211
      %p213 = scmp.ne.s32.totalorder %s201, %s202
      %p214 = scmp.eq.s32.totalorder %s35, 1
      %p215 = por %p213, %p214
      %p217 = scmp.ne.s32.totalorder %s202, %s216
      %p218 = scmp.eq.s32.totalorder %s35, 0
      %p219 = por %p217, %p218
      %s221 = sadd.s32 %s220, 1
      %p224 = scmp.eq.s32.totalorder %s29, 1
      %p225 = scmp.ne.s32.totalorder %s220, %s222
      %p226 = scmp.eq.s32.totalorder %s29, 0
      %p227 = por %p225, %p226
      %p228 = scmp.ne.s32.totalorder %s220, %s222
      %p229 = scmp.eq.s32.totalorder %s34, 1
      %p230 = por %p228, %p229
      %p231 = scmp.ne.s32.totalorder %s222, %s223
      %p232 = scmp.eq.s32.totalorder %s34, 0
      %p233 = por %p231, %p232
      %p234 = scmp.ne.s32.totalorder %s222, %s223
      %p235 = scmp.eq.s32.totalorder %s35, 1
      %p236 = por %p234, %p235
      %p238 = scmp.ne.s32.totalorder %s223, %s237
      %p239 = scmp.eq.s32.totalorder %s35, 0
      %p240 = por %p238, %p239
      %s242 = sadd.s32 %s241, 1
      %p245 = scmp.eq.s32.totalorder %s29, 1
      %p246 = scmp.ne.s32.totalorder %s241, %s243
      %p247 = scmp.eq.s32.totalorder %s29, 0
      %p248 = por %p246, %p247
      %p249 = scmp.ne.s32.totalorder %s241, %s243
      %p250 = scmp.eq.s32.totalorder %s34, 1
      %p251 = por %p249, %p250
      %p252 = scmp.ne.s32.totalorder %s243, %s244
      %p253 = scmp.eq.s32.totalorder %s34, 0
      %p254 = por %p252, %p253
      %p255 = scmp.ne.s32.totalorder %s243, %s244
      %p256 = scmp.eq.s32.totalorder %s35, 1
      %p257 = por %p255, %p256
      %p259 = scmp.ne.s32.totalorder %s244, %s258
      %p260 = scmp.eq.s32.totalorder %s35, 0
      %p261 = por %p259, %p260
      %s263 = sadd.s32 %s262, 1
      %p266 = scmp.eq.s32.totalorder %s29, 1
      %p267 = scmp.ne.s32.totalorder %s262, %s264
      %p268 = scmp.eq.s32.totalorder %s29, 0
      %p269 = por %p267, %p268
      %p270 = scmp.ne.s32.totalorder %s262, %s264
      %p271 = scmp.eq.s32.totalorder %s34, 1
      %p272 = por %p270, %p271
      %p273 = scmp.ne.s32.totalorder %s264, %s265
      %p274 = scmp.eq.s32.totalorder %s34, 0
      %p275 = por %p273, %p274
      %p276 = scmp.ne.s32.totalorder %s264, %s265
      %p277 = scmp.eq.s32.totalorder %s35, 1
      %p278 = por %p276, %p277
      %p280 = scmp.ne.s32.totalorder %s265, %s279
      %p281 = scmp.eq.s32.totalorder %s35, 0
      %p282 = por %p280, %p281
      %s284 = sadd.s32 %s283, 1
      %p287 = scmp.eq.s32.totalorder %s29, 1
      %p288 = scmp.ne.s32.totalorder %s283, %s285
      %p289 = scmp.eq.s32.totalorder %s29, 0
      %p290 = por %p288, %p289
      %p291 = scmp.ne.s32.totalorder %s283, %s285
      %p292 = scmp.eq.s32.totalorder %s34, 1
      %p293 = por %p291, %p292
      %p294 = scmp.ne.s32.totalorder %s285, %s286
      %p295 = scmp.eq.s32.totalorder %s34, 0
      %p296 = por %p294, %p295
      %p297 = scmp.ne.s32.totalorder %s285, %s286
      %p298 = scmp.eq.s32.totalorder %s35, 1
      %p299 = por %p297, %p298
      %p301 = scmp.ne.s32.totalorder %s286, %s300
      %p302 = scmp.eq.s32.totalorder %s35, 0
      %p303 = por %p301, %p302
      %s305 = sadd.s32 %s304, 1
      %p308 = scmp.eq.s32.totalorder %s29, 1
      %p309 = scmp.ne.s32.totalorder %s304, %s306
      %p310 = scmp.eq.s32.totalorder %s29, 0
      %p311 = por %p309, %p310
      %p312 = scmp.ne.s32.totalorder %s304, %s306
      %p313 = scmp.eq.s32.totalorder %s34, 1
      %p314 = por %p312, %p313
      %p315 = scmp.ne.s32.totalorder %s306, %s307
      %p316 = scmp.eq.s32.totalorder %s34, 0
      %p317 = por %p315, %p316
      %p318 = scmp.ne.s32.totalorder %s306, %s307
      %p319 = scmp.eq.s32.totalorder %s35, 1
      %p320 = por %p318, %p319
      %p322 = scmp.ne.s32.totalorder %s307, %s321
      %p323 = scmp.eq.s32.totalorder %s35, 0
      %p324 = por %p322, %p323
      %s326 = sadd.s32 %s325, 1
      %p329 = scmp.eq.s32.totalorder %s29, 1
      %p330 = scmp.ne.s32.totalorder %s325, %s327
      %p331 = scmp.eq.s32.totalorder %s29, 0
      %p332 = por %p330, %p331
      %p333 = scmp.ne.s32.totalorder %s325, %s327
      %p334 = scmp.eq.s32.totalorder %s34, 1
      %p335 = por %p333, %p334
      %p336 = scmp.ne.s32.totalorder %s327, %s328
      %p337 = scmp.eq.s32.totalorder %s34, 0
      %p338 = por %p336, %p337
      %p339 = scmp.ne.s32.totalorder %s327, %s328
      %p340 = scmp.eq.s32.totalorder %s35, 1
      %p341 = por %p339, %p340
      %p343 = scmp.ne.s32.totalorder %s328, %s342
      %p344 = scmp.eq.s32.totalorder %s35, 0
      %p345 = por %p343, %p344
      %s347 = sadd.s32 %s346, 1
      %p350 = scmp.eq.s32.totalorder %s29, 1
      %p351 = scmp.ne.s32.totalorder %s346, %s348
      %p352 = scmp.eq.s32.totalorder %s29, 0
      %p353 = por %p351, %p352
      %p354 = scmp.ne.s32.totalorder %s346, %s348
      %p355 = scmp.eq.s32.totalorder %s34, 1
      %p356 = por %p354, %p355
      %p357 = scmp.ne.s32.totalorder %s348, %s349
      %p358 = scmp.eq.s32.totalorder %s34, 0
      %p359 = por %p357, %p358
      %p360 = scmp.ne.s32.totalorder %s348, %s349
      %p361 = scmp.eq.s32.totalorder %s35, 1
      %p362 = por %p360, %p361
      %p364 = scmp.ne.s32.totalorder %s349, %s363
      %p365 = scmp.eq.s32.totalorder %s35, 0
      %p366 = por %p364, %p365
      %s367 = ssub.s32 %s29, %s36
      %p368 = scmp.eq.s32.totalorder %s367, 0
      %s370 = sadd.s32 %s369, 1
      %s371 = scalar_select %p368, %s369, %s370
      %p374 = pneg %p368
      %p375 = scmp.eq.s32.totalorder %s29, 1
      %p376 = por %p374, %p375
      %p377 = scmp.ne.s32.totalorder %s369, %s372
      %p378 = scmp.eq.s32.totalorder %s29, 0
      %p379 = por %p377, %p378
      %p380 = scmp.ne.s32.totalorder %s369, %s372
      %p381 = scmp.eq.s32.totalorder %s34, 1
      %p382 = por %p380, %p381
      %p383 = scmp.ne.s32.totalorder %s372, %s373
      %p384 = scmp.eq.s32.totalorder %s34, 0
      %p385 = por %p383, %p384
      %p386 = scmp.ne.s32.totalorder %s372, %s373
      %p387 = scmp.eq.s32.totalorder %s35, 1
      %p388 = por %p386, %p387
      %p390 = scmp.ne.s32.totalorder %s373, %s389
      %p391 = scmp.eq.s32.totalorder %s35, 0
      %p392 = por %p390, %p391
      %p393 = scmp.le.s32.totalorder 1, %s29
      %p394 = scmp.lt.s32.totalorder %s29, 3
      %p395 = pnand %p393, %p394
      %p396 = pneg %p395
      // Predicated region
      $region9: #{tpu_custom_call.1} parent=5 // pred_check
        _
      $region10: #{tpu_custom_call.1} parent=5 // pred_check_branch
        %398 = sbr.rel (%p395) target = $region12
      $region11: #{tpu_custom_call.1} parent=5 // pred_region
        %s399 = ssub.s32 %s29, 1
        // Predicated region
        $region13: #{tpu_custom_call.1} parent=11 // pred_check
          %p400 = pneg %p128
        $region14: #{tpu_custom_call.1} parent=11 // pred_check_branch
          %402 = sbr.rel (%p400) target = $region16
        $region15: #{tpu_custom_call.1} parent=11 // pred_region
          %s404 = ssub.s32 4096, 4096
          %405 = vsyncadd [#allocation6], %s404
          %s406 = sshll.u32 [#allocation5], 4
          %s407 = int_to_ptr.vmem [resolvable:$true] %s406
          %412 = dma.hbm_to_vmem [thread:$0]  %s3, 4096, %s407, [#allocation6], 128, 128, 8
        $region16: #{tpu_custom_call.1} parent=11 // pred_fallthru
          _
        // Predicated region
        $region17: #{tpu_custom_call.1} parent=11 // pred_check
          %p413 = pneg %p149
        $region18: #{tpu_custom_call.1} parent=11 // pred_check_branch
          %415 = sbr.rel (%p413) target = $region20
        $region19: #{tpu_custom_call.1} parent=11 // pred_region
          _
        $region20: #{tpu_custom_call.1} parent=11 // pred_fallthru
          _
        // Predicated region
        $region21: #{tpu_custom_call.1} parent=11 // pred_check
          %p416 = pneg %p170
        $region22: #{tpu_custom_call.1} parent=11 // pred_check_branch
          %418 = sbr.rel (%p416) target = $region24
        $region23: #{tpu_custom_call.1} parent=11 // pred_region
          _
        $region24: #{tpu_custom_call.1} parent=11 // pred_fallthru
          _
        // Predicated region
        $region25: #{tpu_custom_call.1} parent=11 // pred_check
          %p419 = pneg %p191
        $region26: #{tpu_custom_call.1} parent=11 // pred_check_branch
          %421 = sbr.rel (%p419) target = $region28
        $region27: #{tpu_custom_call.1} parent=11 // pred_region
          %s423 = ssub.s32 8192, 8192
          %424 = vsyncadd [#allocation6], %s423
          %s425 = sshll.u32 [#allocation7], 4
          %s426 = int_to_ptr.vmem [resolvable:$true] %s425
          %431 = dma.hbm_to_vmem [thread:$0]  %s6, 8192, %s426, [#allocation6], 128, 128, 8
        $region28: #{tpu_custom_call.1} parent=11 // pred_fallthru
          _
        // Predicated region
        $region29: #{tpu_custom_call.1} parent=11 // pred_check
          %p432 = pneg %p212
        $region30: #{tpu_custom_call.1} parent=11 // pred_check_branch
          %434 = sbr.rel (%p432) target = $region32
        $region31: #{tpu_custom_call.1} parent=11 // pred_region
          _
        $region32: #{tpu_custom_call.1} parent=11 // pred_fallthru
          _
        // Predicated region
        $region33: #{tpu_custom_call.1} parent=11 // pred_check
          %p435 = pneg %p233
        $region34: #{tpu_custom_call.1} parent=11 // pred_check_branch
          %437 = sbr.rel (%p435) target = $region36
        $region35: #{tpu_custom_call.1} parent=11 // pred_region
          _
        $region36: #{tpu_custom_call.1} parent=11 // pred_fallthru
          _
        // Predicated region
        $region37: #{tpu_custom_call.1} parent=11 // pred_check
          %p438 = pneg %p254
        $region38: #{tpu_custom_call.1} parent=11 // pred_check_branch
          %440 = sbr.rel (%p438) target = $region40
        $region39: #{tpu_custom_call.1} parent=11 // pred_region
          _
        $region40: #{tpu_custom_call.1} parent=11 // pred_fallthru
          _
        // Predicated region
        $region41: #{tpu_custom_call.1} parent=11 // pred_check
          %p441 = pneg %p275
        $region42: #{tpu_custom_call.1} parent=11 // pred_check_branch
          %443 = sbr.rel (%p441) target = $region44
        $region43: #{tpu_custom_call.1} parent=11 // pred_region
          _
        $region44: #{tpu_custom_call.1} parent=11 // pred_fallthru
          _
        // Predicated region
        $region45: #{tpu_custom_call.1} parent=11 // pred_check
          %p444 = pneg %p296
        $region46: #{tpu_custom_call.1} parent=11 // pred_check_branch
          %446 = sbr.rel (%p444) target = $region48
        $region47: #{tpu_custom_call.1} parent=11 // pred_region
          _
        $region48: #{tpu_custom_call.1} parent=11 // pred_fallthru
          _
        // Predicated region
        $region49: #{tpu_custom_call.1} parent=11 // pred_check
          %p447 = pneg %p317
        $region50: #{tpu_custom_call.1} parent=11 // pred_check_branch
          %449 = sbr.rel (%p447) target = $region52
        $region51: #{tpu_custom_call.1} parent=11 // pred_region
          _
        $region52: #{tpu_custom_call.1} parent=11 // pred_fallthru
          _
        // Predicated region
        $region53: #{tpu_custom_call.1} parent=11 // pred_check
          %p450 = pneg %p338
        $region54: #{tpu_custom_call.1} parent=11 // pred_check_branch
          %452 = sbr.rel (%p450) target = $region56
        $region55: #{tpu_custom_call.1} parent=11 // pred_region
          %s454 = ssub.s32 8192, 8192
          %455 = vsyncadd [#allocation9], %s454
          %s456 = sshll.u32 [#allocation8], 4
          %s457 = int_to_ptr.vmem [resolvable:$true] %s456
          %462 = dma.hbm_to_vmem [thread:$0]  %s13, 8192, %s457, [#allocation9], 128, 128, 8
        $region56: #{tpu_custom_call.1} parent=11 // pred_fallthru
          _
        // Predicated region
        $region57: #{tpu_custom_call.1} parent=11 // pred_check
          %p463 = pneg %p359
        $region58: #{tpu_custom_call.1} parent=11 // pred_check_branch
          %465 = sbr.rel (%p463) target = $region60
        $region59: #{tpu_custom_call.1} parent=11 // pred_region
          _
        $region60: #{tpu_custom_call.1} parent=11 // pred_fallthru
          _
      $region12: #{tpu_custom_call.1} parent=5 // pred_fallthru
        _
      %p466 = scmp.lt.s32.totalorder %s29, 2
      // Predicated region
      $region61: #{tpu_custom_call.1} parent=5 // pred_check
        %p467 = pneg %p466
      $region62: #{tpu_custom_call.1} parent=5 // pred_check_branch
        %469 = sbr.rel (%p467) target = $region64
      $region63: #{tpu_custom_call.1} parent=5 // pred_region
        // Predicated region
        $region65: #{tpu_custom_call.1} parent=63 // pred_check
          %p470 = pneg %p49
        $region66: #{tpu_custom_call.1} parent=63 // pred_check_branch
          %472 = sbr.rel (%p470) target = $region68
        $region67: #{tpu_custom_call.1} parent=63 // pred_region
          %p473 = scmp.lt.s32.totalorder %s29, 1
          %s474 = scalar_select %p473, %s29, 1
          %s475 = smul.addr %s474, 2
          %s476 = smul.addr %s475, 8
          %s477 = scalar_lea.vmem %s0, %s476
        $region68: #{tpu_custom_call.1} parent=63 // pred_fallthru
          _
        // Predicated region
        $region69: #{tpu_custom_call.1} parent=63 // pred_check
          %p478 = pneg %p75
        $region70: #{tpu_custom_call.1} parent=63 // pred_check_branch
          %480 = sbr.rel (%p478) target = $region72
        $region71: #{tpu_custom_call.1} parent=63 // pred_region
          %p481 = scmp.lt.s32.totalorder %s29, 1
          %s482 = scalar_select %p481, %s29, 1
          %s483 = smul.addr %s482, 2
          %s484 = smul.addr %s483, 8
          %s485 = scalar_lea.vmem %s1, %s484
        $region72: #{tpu_custom_call.1} parent=63 // pred_fallthru
          _
        // Predicated region
        $region73: #{tpu_custom_call.1} parent=63 // pred_check
          %p486 = pneg %p101
        $region74: #{tpu_custom_call.1} parent=63 // pred_check_branch
          %488 = sbr.rel (%p486) target = $region76
        $region75: #{tpu_custom_call.1} parent=63 // pred_region
          %s489 = sand.u32 %s91, 1
          %s490 = scalar_lea.sflag [#allocation3], %s489
          %s491 = sand.u32 %s91, 1
          %s492 = smul.addr %s491, 16
          %s493 = scalar_lea.vmem [#allocation2], %s492
          %s495 = ssub.s32 256, 256
          %496 = vsyncadd %s490, %s495
          %s497 = smul.addr %s29, 2
          %s498 = smul.addr %s497, 128
          %s499 = scalar_lea.hbm %s2, %s498
          %s500 = sshll.u32 %s493, 4
          %s501 = int_to_ptr.vmem [resolvable:$true] %s500
          %506 = dma.hbm_to_vmem [thread:$0]  %s499, 256, %s501, %s490, 128, 128, 8
        $region76: #{tpu_custom_call.1} parent=63 // pred_fallthru
          _
      $region64: #{tpu_custom_call.1} parent=5 // pred_fallthru
        _
      %p507 = scmp.le.s32.totalorder 1, %s29
      %p508 = scmp.lt.s32.totalorder %s29, 3
      %p509 = pnand %p507, %p508
      %p510 = pneg %p509
      // Predicated region
      $region77: #{tpu_custom_call.1} parent=5 // pred_check
        _
      $region78: #{tpu_custom_call.1} parent=5 // pred_check_branch
        %512 = sbr.rel (%p509) target = $region80
      $region79: #{tpu_custom_call.1} parent=5 // pred_region
        %s513 = ssub.s32 %s29, 1
        %s514 = sand.u32 %s94, 1
        %s515 = scalar_lea.sflag [#allocation3], %s514
        %s516 = sand.u32 %s94, 1
        %s517 = smul.addr %s516, 16
        %s518 = scalar_lea.vmem [#allocation2], %s517
        // Predicated region
        $region81: #{tpu_custom_call.1} parent=79 // pred_check
          %p519 = pneg %p107
        $region82: #{tpu_custom_call.1} parent=79 // pred_check_branch
          %521 = sbr.rel (%p519) target = $region84
        $region83: #{tpu_custom_call.1} parent=79 // pred_region
          %522 = dma.done %s515, 256
        $region84: #{tpu_custom_call.1} parent=79 // pred_fallthru
          _
        // Predicated region
        $region85: #{tpu_custom_call.1} parent=79 // pred_check
          %p523 = pneg %p128
        $region86: #{tpu_custom_call.1} parent=79 // pred_check_branch
          %525 = sbr.rel (%p523) target = $region88
        $region87: #{tpu_custom_call.1} parent=79 // pred_region
          %526 = dma.done [#allocation6], 4096
        $region88: #{tpu_custom_call.1} parent=79 // pred_fallthru
          _
        // Predicated region
        $region89: #{tpu_custom_call.1} parent=79 // pred_check
          %p527 = pneg %p191
        $region90: #{tpu_custom_call.1} parent=79 // pred_check_branch
          %529 = sbr.rel (%p527) target = $region92
        $region91: #{tpu_custom_call.1} parent=79 // pred_region
          %530 = dma.done [#allocation6], 8192
        $region92: #{tpu_custom_call.1} parent=79 // pred_fallthru
          _
        // Predicated region
        $region93: #{tpu_custom_call.1} parent=79 // pred_check
          %p531 = pneg %p338
        $region94: #{tpu_custom_call.1} parent=79 // pred_check_branch
          %533 = sbr.rel (%p531) target = $region96
        $region95: #{tpu_custom_call.1} parent=79 // pred_region
          %534 = dma.done [#allocation9], 8192
        $region96: #{tpu_custom_call.1} parent=79 // pred_fallthru
          _
        %p535 = scmp.lt.s32.totalorder %s34, 1
        %s536 = scalar_select %p535, %s34, 1
        %s537 = smul.addr %s536, 2
        %s538 = smul.addr %s537, 8
        %s539 = scalar_lea.vmem %s0, %s538
        %p540 = pneg %p55
        %p541 = pneg %p52
        %p542 = scmp.lt.s32.totalorder %s34, 1
        %s543 = scalar_select %p542, %s34, 1
        %s544 = smul.addr %s543, 2
        %s545 = smul.addr %s544, 8
        %s546 = scalar_lea.vmem %s1, %s545
        %p547 = pneg %p81
        %p548 = pneg %p78
        %s549 = sand.u32 %s94, 1
        %s550 = scalar_lea.sflag [#allocation3], %s549
        %s551 = sand.u32 %s94, 1
        %s552 = smul.addr %s551, 16
        %s553 = scalar_lea.vmem [#allocation2], %s552
        %p554 = pneg %p107
        %p555 = pneg %p104
        %p556 = pneg %p128
        %p557 = pneg %p125
        %p558 = pneg %p149
        %p559 = pneg %p146
        %p560 = pneg %p170
        %p561 = pneg %p167
        %p562 = pneg %p191
        %p563 = pneg %p188
        %p564 = pneg %p212
        %p565 = pneg %p209
        %p566 = pneg %p233
        %p567 = pneg %p230
        %p568 = pneg %p254
        %p569 = pneg %p251
        %p570 = pneg %p275
        %p571 = pneg %p272
        %p572 = pneg %p296
        %p573 = pneg %p293
        %p574 = pneg %p317
        %p575 = pneg %p314
        %p576 = pneg %p338
        %p577 = pneg %p335
        %p578 = pneg %p359
        %p579 = pneg %p356
        %p580 = pneg %p385
        %p581 = pneg %p382
        %s582 = sand.u32 %s372, 1
        %s583 = scalar_lea.sflag [#allocation4], %s582
        %s584 = sand.u32 %s372, 1
        %s585 = scalar_lea.vmem [#allocation10], %s584
        %p586 = scmp.lt.s32.totalorder %s34, 1
        %s587 = scalar_select %p586, %s34, 1
        %s588 = smul.addr %s587, 2
        %s589 = smul.addr %s588, 8
        %s590 = scalar_lea.vmem %s0, %s589
        %p591 = scmp.lt.s32.totalorder %s34, 1
        %s592 = scalar_select %p591, %s34, 1
        %s593 = smul.addr %s592, 2
        %s594 = smul.addr %s593, 8
        %s595 = scalar_lea.vmem %s1, %s594
        %v596 = vld [vmem:[%s590] sm:$0xff]
        %v597 = vld [vmem:[%s590 + $0x8] sm:$0xff]
        %v598 = vld [vmem:[%s595] sm:$0xff]
        %v599 = vld [vmem:[%s595 + $0x8] sm:$0xff]
        %v600 = vld [vmem:[%s518] sm:$0xff]
        %v601 = vld [vmem:[%s518 + $0x8] sm:$0xff]
        %v602 = vld [vmem:[%s4] sm:$0x1]
        %v603 = vld [vmem:[#allocation5] sm:$0xff]
        %v604 = vld [vmem:[#allocation5 + $0x8] sm:$0xff]
        %606 = vset.pattern.permute.xlu0 0
        %607 = vperm.xlu0 %606, %v596
        %v608 = vpop.permute.xlu0 %607
        %611 = vset.pattern.permute.xlu0 0
        %612 = vperm.xlu0 %611, %v597
        %v613 = vpop.permute.xlu0 %612
        %v615 = vmul.f32 %v608, %v603
        %v616 = vmul.f32 %v613, %v604
        %s617 = scalar_lea.vmem [#allocation5], 16
        %v618 = vld [vmem:[%s617] sm:$0xff]
        %v619 = vld [vmem:[%s617 + $0x8] sm:$0xff]
        %620 = vset.pattern.permute.xlu0 1
        %621 = vperm.xlu0 %620, %v596
        %v622 = vpop.permute.xlu0 %621
        %624 = vset.pattern.permute.xlu0 1
        %625 = vperm.xlu0 %624, %v597
        %v626 = vpop.permute.xlu0 %625
        %v628 = vmul.f32 %v622, %v618
        %v629 = vmul.f32 %v626, %v619
        %v630 = vadd.f32 %v615, %v628
        %v631 = vadd.f32 %v616, %v629
        %s632 = scalar_lea.vmem [#allocation5], 32
        %v633 = vld [vmem:[%s632] sm:$0xff]
        %v634 = vld [vmem:[%s632 + $0x8] sm:$0xff]
        %635 = vset.pattern.permute.xlu0 2
        %636 = vperm.xlu0 %635, %v596
        %v637 = vpop.permute.xlu0 %636
        %639 = vset.pattern.permute.xlu0 2
        %640 = vperm.xlu0 %639, %v597
        %v641 = vpop.permute.xlu0 %640
        %v643 = vmul.f32 %v637, %v633
        %v644 = vmul.f32 %v641, %v634
        %v645 = vadd.f32 %v630, %v643
        %v646 = vadd.f32 %v631, %v644
        %s647 = scalar_lea.vmem [#allocation5], 48
        %v648 = vld [vmem:[%s647] sm:$0xff]
        %v649 = vld [vmem:[%s647 + $0x8] sm:$0xff]
        %650 = vset.pattern.permute.xlu0 3
        %651 = vperm.xlu0 %650, %v596
        %v652 = vpop.permute.xlu0 %651
        %654 = vset.pattern.permute.xlu0 3
        %655 = vperm.xlu0 %654, %v597
        %v656 = vpop.permute.xlu0 %655
        %v658 = vmul.f32 %v652, %v648
        %v659 = vmul.f32 %v656, %v649
        %v660 = vadd.f32 %v645, %v658
        %v661 = vadd.f32 %v646, %v659
        %s662 = scalar_lea.vmem [#allocation5], 64
        %v663 = vld [vmem:[%s662] sm:$0xff]
        %v664 = vld [vmem:[%s662 + $0x8] sm:$0xff]
        %665 = vset.pattern.permute.xlu0 4
        %666 = vperm.xlu0 %665, %v596
        %v667 = vpop.permute.xlu0 %666
        %669 = vset.pattern.permute.xlu0 4
        %670 = vperm.xlu0 %669, %v597
        %v671 = vpop.permute.xlu0 %670
        %v673 = vmul.f32 %v667, %v663
        %v674 = vmul.f32 %v671, %v664
        %v675 = vadd.f32 %v660, %v673
        %v676 = vadd.f32 %v661, %v674
        %s677 = scalar_lea.vmem [#allocation5], 80
        %v678 = vld [vmem:[%s677] sm:$0xff]
        %v679 = vld [vmem:[%s677 + $0x8] sm:$0xff]
        %680 = vset.pattern.permute.xlu0 5
        %681 = vperm.xlu0 %680, %v596
        %v682 = vpop.permute.xlu0 %681
        %684 = vset.pattern.permute.xlu0 5
        %685 = vperm.xlu0 %684, %v597
        %v686 = vpop.permute.xlu0 %685
        %v688 = vmul.f32 %v682, %v678
        %v689 = vmul.f32 %v686, %v679
        %v690 = vadd.f32 %v675, %v688
        %v691 = vadd.f32 %v676, %v689
        %s692 = scalar_lea.vmem [#allocation5], 96
        %v693 = vld [vmem:[%s692] sm:$0xff]
        %v694 = vld [vmem:[%s692 + $0x8] sm:$0xff]
        %695 = vset.pattern.permute.xlu0 6
        %696 = vperm.xlu0 %695, %v596
        %v697 = vpop.permute.xlu0 %696
        %699 = vset.pattern.permute.xlu0 6
        %700 = vperm.xlu0 %699, %v597
        %v701 = vpop.permute.xlu0 %700
        %v703 = vmul.f32 %v697, %v693
        %v704 = vmul.f32 %v701, %v694
        %v705 = vadd.f32 %v690, %v703
        %v706 = vadd.f32 %v691, %v704
        %s707 = scalar_lea.vmem [#allocation5], 112
        %v708 = vld [vmem:[%s707] sm:$0xff]
        %v709 = vld [vmem:[%s707 + $0x8] sm:$0xff]
        %710 = vset.pattern.permute.xlu0 7
        %711 = vperm.xlu0 %710, %v596
        %v712 = vpop.permute.xlu0 %711
        %714 = vset.pattern.permute.xlu0 7
        %715 = vperm.xlu0 %714, %v597
        %v716 = vpop.permute.xlu0 %715
        %v718 = vmul.f32 %v712, %v708
        %v719 = vmul.f32 %v716, %v709
        %v720 = vadd.f32 %v705, %v718
        %v721 = vadd.f32 %v706, %v719
        %s722 = scalar_lea.vmem [#allocation5], 128
        %v723 = vld [vmem:[%s722] sm:$0xff]
        %v724 = vld [vmem:[%s722 + $0x8] sm:$0xff]
        %725 = vset.pattern.permute.xlu0 8
        %726 = vperm.xlu0 %725, %v596
        %v727 = vpop.permute.xlu0 %726
        %729 = vset.pattern.permute.xlu0 8
        %730 = vperm.xlu0 %729, %v597
        %v731 = vpop.permute.xlu0 %730
        %v733 = vmul.f32 %v727, %v723
        %v734 = vmul.f32 %v731, %v724
        %v735 = vadd.f32 %v720, %v733
        %v736 = vadd.f32 %v721, %v734
        %s737 = scalar_lea.vmem [#allocation5], 144
        %v738 = vld [vmem:[%s737] sm:$0xff]
        %v739 = vld [vmem:[%s737 + $0x8] sm:$0xff]
        %740 = vset.pattern.permute.xlu0 9
        %741 = vperm.xlu0 %740, %v596
        %v742 = vpop.permute.xlu0 %741
        %744 = vset.pattern.permute.xlu0 9
        %745 = vperm.xlu0 %744, %v597
        %v746 = vpop.permute.xlu0 %745
        %v748 = vmul.f32 %v742, %v738
        %v749 = vmul.f32 %v746, %v739
        %v750 = vadd.f32 %v735, %v748
        %v751 = vadd.f32 %v736, %v749
        %s752 = scalar_lea.vmem [#allocation5], 160
        %v753 = vld [vmem:[%s752] sm:$0xff]
        %v754 = vld [vmem:[%s752 + $0x8] sm:$0xff]
        %755 = vset.pattern.permute.xlu0 10
        %756 = vperm.xlu0 %755, %v596
        %v757 = vpop.permute.xlu0 %756
        %759 = vset.pattern.permute.xlu0 10
        %760 = vperm.xlu0 %759, %v597
        %v761 = vpop.permute.xlu0 %760
        %v763 = vmul.f32 %v757, %v753
        %v764 = vmul.f32 %v761, %v754
        %v765 = vadd.f32 %v750, %v763
        %v766 = vadd.f32 %v751, %v764
        %s767 = scalar_lea.vmem [#allocation5], 176
        %v768 = vld [vmem:[%s767] sm:$0xff]
        %v769 = vld [vmem:[%s767 + $0x8] sm:$0xff]
        %770 = vset.pattern.permute.xlu0 11
        %771 = vperm.xlu0 %770, %v596
        %v772 = vpop.permute.xlu0 %771
        %774 = vset.pattern.permute.xlu0 11
        %775 = vperm.xlu0 %774, %v597
        %v776 = vpop.permute.xlu0 %775
        %v778 = vmul.f32 %v772, %v768
        %v779 = vmul.f32 %v776, %v769
        %v780 = vadd.f32 %v765, %v778
        %v781 = vadd.f32 %v766, %v779
        %s782 = scalar_lea.vmem [#allocation5], 192
        %v783 = vld [vmem:[%s782] sm:$0xff]
        %v784 = vld [vmem:[%s782 + $0x8] sm:$0xff]
        %785 = vset.pattern.permute.xlu0 12
        %786 = vperm.xlu0 %785, %v596
        %v787 = vpop.permute.xlu0 %786
        %789 = vset.pattern.permute.xlu0 12
        %790 = vperm.xlu0 %789, %v597
        %v791 = vpop.permute.xlu0 %790
        %v793 = vmul.f32 %v787, %v783
        %v794 = vmul.f32 %v791, %v784
        %v795 = vadd.f32 %v780, %v793
        %v796 = vadd.f32 %v781, %v794
        %s797 = scalar_lea.vmem [#allocation5], 208
        %v798 = vld [vmem:[%s797] sm:$0xff]
        %v799 = vld [vmem:[%s797 + $0x8] sm:$0xff]
        %800 = vset.pattern.permute.xlu0 13
        %801 = vperm.xlu0 %800, %v596
        %v802 = vpop.permute.xlu0 %801
        %804 = vset.pattern.permute.xlu0 13
        %805 = vperm.xlu0 %804, %v597
        %v806 = vpop.permute.xlu0 %805
        %v808 = vmul.f32 %v802, %v798
        %v809 = vmul.f32 %v806, %v799
        %v810 = vadd.f32 %v795, %v808
        %v811 = vadd.f32 %v796, %v809
        %s812 = scalar_lea.vmem [#allocation5], 224
        %v813 = vld [vmem:[%s812] sm:$0xff]
        %v814 = vld [vmem:[%s812 + $0x8] sm:$0xff]
        %815 = vset.pattern.permute.xlu0 14
        %816 = vperm.xlu0 %815, %v596
        %v817 = vpop.permute.xlu0 %816
        %819 = vset.pattern.permute.xlu0 14
        %820 = vperm.xlu0 %819, %v597
        %v821 = vpop.permute.xlu0 %820
        %v823 = vmul.f32 %v817, %v813
        %v824 = vmul.f32 %v821, %v814
        %v825 = vadd.f32 %v810, %v823
        %v826 = vadd.f32 %v811, %v824
        %s827 = scalar_lea.vmem [#allocation5], 240
        %v828 = vld [vmem:[%s827] sm:$0xff]
        %v829 = vld [vmem:[%s827 + $0x8] sm:$0xff]
        %830 = vset.pattern.permute.xlu0 15
        %831 = vperm.xlu0 %830, %v596
        %v832 = vpop.permute.xlu0 %831
        %834 = vset.pattern.permute.xlu0 15
        %835 = vperm.xlu0 %834, %v597
        %v836 = vpop.permute.xlu0 %835
        %v838 = vmul.f32 %v832, %v828
        %v839 = vmul.f32 %v836, %v829
        %v840 = vadd.f32 %v825, %v838
        %v841 = vadd.f32 %v826, %v839
        %v842 = vlaneseq
        %v843 = vshrl.u32 %v842, 7
        %v844 = vadd.s32 %v843, 8
        %v845 = vlaneseq
        %v846 = vand.u32 %v845, 127
        %vm847 = vcmp.eq.s32.totalorder %v843, %v846
        %vm848 = vcmp.eq.s32.totalorder %v844, %v846
        %vm849 = vcmp.gt.f32.partialorder 1.0, 0.5
        %v850 = vsel %vm847, 1.0, 0.0
        %v851 = vsel %vm848, 1.0, 0.0
        %vm852 = vcmask 130048
        %v853 = vsel %vm852, %v850, 0.0
        %v854 = vsel %vm852, %v851, 0.0
        %v855 = vadd.f32 %v853, %v854
        %v856 = vrot.slane %v855, 4
        %v857 = vadd.f32 %v855, %v856
        %v858 = vrot.slane %v857, 2
        %v859 = vadd.f32 %v857, %v858
        %v860 = vrot.slane %v859, 1
        %v861 = vadd.f32 %v859, %v860
        %vm862 = vcmp.gt.f32.partialorder %v861, 0.5
        %v863 = vsel %vm849, 1, 0
        %vm864 = vcmp.eq.s32.totalorder %v863, 1
        %v865 = vsel %vm862, 1, 0
        %vm866 = vcmp.eq.s32.totalorder %v865, 1
        %vm867 = vmand %vm864, %vm866
        %vm868 = vcmp.gt.f32.partialorder %v600, 0.5
        %vm869 = vcmp.gt.f32.partialorder %v601, 0.5
        %vm870 = vmand %vm868, %vm867
        %vm871 = vmand %vm869, %vm867
        %vm872 = vmand %vm847, %vm864
        %vm873 = vmand %vm848, %vm864
        %vm874 = vmor %vm870, %vm872
        %vm875 = vmor %vm871, %vm873
        %vm876 = vmxor %vm870, 1
        %vm877 = vmxor %vm871, 1
        %vm878 = vmand %vm847, %vm876
        %vm879 = vmand %vm848, %vm877
        %v880 = vsel %vm878, 1.0, %v598
        %v881 = vsel %vm879, 1.0, %v599
        %v882 = vsel %vm874, %v880, -1e+30
        %v883 = vsel %vm875, %v881, -1e+30
        %v884 = vsel %vm852, %v882, -inf
        %885 = vmax.xlane.f32.xlu0 %v884
        %v886 = vpop.xlane.xlu0 %885
        %v887 = vsel %vm852, %v883, -inf
        %888 = vmax.xlane.f32.xlu0 %v887
        %v889 = vpop.xlane.xlu0 %888
        %v890 = vsub.f32 %v882, %v886
        %v891 = vsub.f32 %v883, %v889
        %v892 = vmul.f32 %v890, 1.442695
        %v893 = vpow.pop %v892
        %v894 = vmul.f32 %v891, 1.442695
        %v895 = vpow.pop %v894
        %v896 = vsel %vm874, %v893, 0.0
        %v897 = vsel %vm875, %v895, 0.0
        %v898 = vsel %vm852, %v896, 0.0
        %899 = vadd.xlane.f32.xlu0 %v898
        %v900 = vpop.xlane.xlu0 %899
        %v901 = vsel %vm852, %v897, 0.0
        %902 = vadd.xlane.f32.xlu0 %v901
        %v903 = vpop.xlane.xlu0 %902
        %vm904 = vcmp.gt.f32.partialorder %v900, 0.0
        %vm905 = vcmp.gt.f32.partialorder %v903, 0.0
        %v906 = vsel %vm904, %v900, 1.0
        %v907 = vsel %vm905, %v903, 1.0
        %v908 = vrcp.pop %v906
        %v909 = vrcp.pop %v907
        %v910 = vmul.f32 %v896, %v908
        %v911 = vmul.f32 %v897, %v909
        %v912 = vsel %vm874, 1, 0
        %v913 = vsel %vm875, 1, 0
        %v914 = vcvt.s32.f32 %v912
        %v915 = vcvt.s32.f32 %v913
        %v916 = vsel %vm852, %v914, 0.0
        %917 = vadd.xlane.f32.xlu0 %v916
        %v918 = vpop.xlane.xlu0 %917
        %v919 = vsel %vm852, %v915, 0.0
        %920 = vadd.xlane.f32.xlu0 %v919
        %v921 = vpop.xlane.xlu0 %920
        %v922 = vmax.f32 %v918, 1.0
        %v923 = vmax.f32 %v921, 1.0
        %v925 = vsel %vm852, %v910, 0
        %v928 = vsel %vm852, %v911, 0
        %930 = vmatprep.subr.mxu0 0.0
        %931 = vmatpush1.msra.mxu0 %v840
        %932 = vmatprep.subr.mxu0 0.0
        %933 = vmatpush1.msra.mxu0 %v841
        %934 = vmatprep.subr.mxu0 0.0
        %935 = vmatpush1.msra.mxu0 0.0
        %936 = vmatprep.subr.mxu0 0.0
        %937 = vmatpush1.msra.mxu0 0.0
        %938 = vmatprep.subr.mxu0 0.0
        %939 = vmatpush1.msra.mxu0 0.0
        %940 = vmatprep.subr.mxu0 0.0
        %941 = vmatpush1.msra.mxu0 0.0
        %942 = vmatprep.subr.mxu0 0.0
        %943 = vmatpush1.msra.mxu0 0.0
        %944 = vmatprep.subr.mxu0 0.0
        %945 = vmatpush1.msra.mxu0 0.0
        %946 = vmatprep.subr.mxu0 0.0
        %947 = vmatpush1.msra.mxu0 0.0
        %948 = vmatprep.subr.mxu0 0.0
        %949 = vmatpush1.msra.mxu0 0.0
        %950 = vmatprep.subr.mxu0 0.0
        %951 = vmatpush1.msra.mxu0 0.0
        %952 = vmatprep.subr.mxu0 0.0
        %953 = vmatpush1.msra.mxu0 0.0
        %954 = vmatprep.subr.mxu0 0.0
        %955 = vmatpush1.msra.mxu0 0.0
        %956 = vmatprep.subr.mxu0 0.0
        %957 = vmatpush1.msra.mxu0 0.0
        %958 = vmatprep.subr.mxu0 0.0
        %959 = vmatpush1.msra.mxu0 0.0
        %960 = vmatprep.subr.mxu0 0.0
        %961 = vmatpush1.msra.mxu0 0.0
        %962 = vmatprep.subr.mxu0 0.0
        %963 = vmatpush1.msra.mxu0 0.0
        %964 = vmatprep.subr.mxu0 0.0
        %965 = vmatpush1.msra.mxu0 0.0
        %966 = vmatprep.subr.mxu0 0.0
        %967 = vmatpush1.msra.mxu0 0.0
        %968 = vmatprep.subr.mxu0 0.0
        %969 = vmatpush1.msra.mxu0 0.0
        %970 = vmatprep.subr.mxu0 0.0
        %971 = vmatpush1.msra.mxu0 0.0
        %972 = vmatprep.subr.mxu0 0.0
        %973 = vmatpush1.msra.mxu0 0.0
        %974 = vmatprep.subr.mxu0 0.0
        %975 = vmatpush1.msra.mxu0 0.0
        %976 = vmatprep.subr.mxu0 0.0
        %977 = vmatpush1.msra.mxu0 0.0
        %978 = vmatprep.subr.mxu0 0.0
        %979 = vmatpush1.msra.mxu0 0.0
        %980 = vmatprep.subr.mxu0 0.0
        %981 = vmatpush1.msra.mxu0 0.0
        %982 = vmatprep.subr.mxu0 0.0
        %983 = vmatpush1.msra.mxu0 0.0
        %984 = vmatprep.subr.mxu0 0.0
        %985 = vmatpush1.msra.mxu0 0.0
        %986 = vmatprep.subr.mxu0 0.0
        %987 = vmatpush1.msra.mxu0 0.0
        %988 = vmatprep.subr.mxu0 0.0
        %989 = vmatpush1.msra.mxu0 0.0
        %990 = vmatprep.subr.mxu0 0.0
        %991 = vmatpush1.msra.mxu0 0.0
        %992 = vmatprep.subr.mxu0 0.0
        %993 = vmatpush1.msra.mxu0 0.0
        %994 = vmatprep.mubr.f32.mxu0 0.0
        %995 = vmatmul.mubr.f32.gmra.mrb[0].mxu0 %v925
        %v996 = vpop.f32.mrb[0].mxu0
        %v997 = vadd.f32 0.0, %v996
        %v998 = vpop.f32.mrb[0].mxu0
        %999 = vmatprep.mubr.f32.mxu0 0.0
        %1000 = vmatmul.mubr.f32.gmra.mrb[0].mxu0 %v928
        %v1001 = vpop.f32.mrb[0].mxu0
        %v1002 = vadd.f32 0.0, %v1001
        %v1003 = vpop.f32.mrb[0].mxu0
        %1004 = vdwg.mxu0
        %v1005 = vrcp.pop %v922
        %v1006 = vrcp.pop %v923
        %v1007 = vmul.f32 %v997, %v1005
        %v1008 = vmul.f32 %v1002, %v1006
        %v1010 = vlaneseq
        %v1011 = vshrl.u32 %v1010, 7
        %v1012 = vsub.s32 0, %v1011
        %v1013 = vrot.slane %v602, %v1012
        %v1015 = vadd.f32 %v1007, %v1013
        %v1016 = vadd.f32 %v1008, %v1013
        %v1017 = vld [vmem:[%s5] sm:$0x1]
        %v1019 = vlaneseq
        %v1020 = vshrl.u32 %v1019, 7
        %v1021 = vsub.s32 0, %v1020
        %v1022 = vrot.slane %v1017, %v1021
        %v1024 = vmul.f32 %v1015, %v1022
        %v1025 = vmul.f32 %v1016, %v1022
        %vm1026 = vcmask 261120
        %v1027 = vsel %vm1026, %v1024, 0.0
        %1028 = vadd.xlane.f32.xlu0 %v1027
        %v1029 = vpop.xlane.xlu0 %1028
        %v1030 = vsel %vm1026, %v1025, 0.0
        %1031 = vadd.xlane.f32.xlu0 %v1030
        %v1032 = vpop.xlane.xlu0 %1031
        %v1033 = vsub.f32 0.0, %v1029
        %v1034 = vsub.f32 0.0, %v1032
        %v1035 = vmul.f32 %v1033, 1.442695
        %v1036 = vpow.pop %v1035
        %v1037 = vmul.f32 %v1034, 1.442695
        %v1038 = vpow.pop %v1037
        %v1039 = vadd.f32 %v1036, 1.0
        %v1040 = vadd.f32 %v1038, 1.0
        %v1041 = vrcp.pop %v1039
        %v1042 = vrcp.pop %v1040
        %v1043 = vsel %vm849, %v1041, -1e+30
        %v1044 = vsel %vm849, %v1042, -1e+30
        %v1045 = vmax.f32 %v1043, %v1044
        %v1046 = vrot.slane %v1045, 4
        %v1047 = vmax.f32 %v1045, %v1046
        %v1048 = vrot.slane %v1047, 2
        %v1049 = vmax.f32 %v1047, %v1048
        %v1050 = vrot.slane %v1049, 1
        %v1051 = vmax.f32 %v1049, %v1050
        %vm1052 = vcmp.ge.f32.partialorder %v1043, %v1051
        %vm1053 = vcmp.ge.f32.partialorder %v1044, %v1051
        %v1054 = vsel %vm1052, %v843, 16
        %v1055 = vsel %vm1053, %v844, 16
        %vm1056 = vcmp.lt.s32.totalorder %v1054, %v1055
        %v1057 = vsel %vm1056, %v1054, %v1055
        %v1058 = vrot.slane %v1057, 4
        %vm1059 = vcmp.lt.s32.totalorder %v1057, %v1058
        %v1060 = vsel %vm1059, %v1057, %v1058
        %v1061 = vrot.slane %v1060, 2
        %vm1062 = vcmp.lt.s32.totalorder %v1060, %v1061
        %v1063 = vsel %vm1062, %v1060, %v1061
        %v1064 = vrot.slane %v1063, 1
        %vm1065 = vcmp.lt.s32.totalorder %v1063, %v1064
        %v1066 = vsel %vm1065, %v1063, %v1064
        %vm1067 = vcmp.eq.s32.totalorder %v843, %v1066
        %vm1068 = vcmp.eq.s32.totalorder %v844, %v1066
        %v1069 = vsel %vm1067, 1.0, 0.0
        %v1070 = vsel %vm1068, 1.0, 0.0
        %v1071 = vsel %vm1067, -1e+30, %v1043
        %v1072 = vsel %vm1068, -1e+30, %v1044
        %v1073 = vmax.f32 %v1071, %v1072
        %v1074 = vrot.slane %v1073, 4
        %v1075 = vmax.f32 %v1073, %v1074
        %v1076 = vrot.slane %v1075, 2
        %v1077 = vmax.f32 %v1075, %v1076
        %v1078 = vrot.slane %v1077, 1
        %v1079 = vmax.f32 %v1077, %v1078
        %vm1080 = vcmp.ge.f32.partialorder %v1071, %v1079
        %vm1081 = vcmp.ge.f32.partialorder %v1072, %v1079
        %v1082 = vsel %vm1080, %v843, 16
        %v1083 = vsel %vm1081, %v844, 16
        %vm1084 = vcmp.lt.s32.totalorder %v1082, %v1083
        %v1085 = vsel %vm1084, %v1082, %v1083
        %v1086 = vrot.slane %v1085, 4
        %vm1087 = vcmp.lt.s32.totalorder %v1085, %v1086
        %v1088 = vsel %vm1087, %v1085, %v1086
        %v1089 = vrot.slane %v1088, 2
        %vm1090 = vcmp.lt.s32.totalorder %v1088, %v1089
        %v1091 = vsel %vm1090, %v1088, %v1089
        %v1092 = vrot.slane %v1091, 1
        %vm1093 = vcmp.lt.s32.totalorder %v1091, %v1092
        %v1094 = vsel %vm1093, %v1091, %v1092
        %vm1095 = vcmp.eq.s32.totalorder %v843, %v1094
        %vm1096 = vcmp.eq.s32.totalorder %v844, %v1094
        %v1097 = vsel %vm1095, 1.0, %v1069
        %v1098 = vsel %vm1096, 1.0, %v1070
        %v1099 = vsel %vm1095, -1e+30, %v1071
        %v1100 = vsel %vm1096, -1e+30, %v1072
        %v1101 = vmax.f32 %v1099, %v1100
        %v1102 = vrot.slane %v1101, 4
        %v1103 = vmax.f32 %v1101, %v1102
        %v1104 = vrot.slane %v1103, 2
        %v1105 = vmax.f32 %v1103, %v1104
        %v1106 = vrot.slane %v1105, 1
        %v1107 = vmax.f32 %v1105, %v1106
        %vm1108 = vcmp.ge.f32.partialorder %v1099, %v1107
        %vm1109 = vcmp.ge.f32.partialorder %v1100, %v1107
        %v1110 = vsel %vm1108, %v843, 16
        %v1111 = vsel %vm1109, %v844, 16
        %vm1112 = vcmp.lt.s32.totalorder %v1110, %v1111
        %v1113 = vsel %vm1112, %v1110, %v1111
        %v1114 = vrot.slane %v1113, 4
        %vm1115 = vcmp.lt.s32.totalorder %v1113, %v1114
        %v1116 = vsel %vm1115, %v1113, %v1114
        %v1117 = vrot.slane %v1116, 2
        %vm1118 = vcmp.lt.s32.totalorder %v1116, %v1117
        %v1119 = vsel %vm1118, %v1116, %v1117
        %v1120 = vrot.slane %v1119, 1
        %vm1121 = vcmp.lt.s32.totalorder %v1119, %v1120
        %v1122 = vsel %vm1121, %v1119, %v1120
        %vm1123 = vcmp.eq.s32.totalorder %v843, %v1122
        %vm1124 = vcmp.eq.s32.totalorder %v844, %v1122
        %v1125 = vsel %vm1123, 1.0, %v1097
        %v1126 = vsel %vm1124, 1.0, %v1098
        %v1127 = vsel %vm1123, -1e+30, %v1099
        %v1128 = vsel %vm1124, -1e+30, %v1100
        %v1129 = vmax.f32 %v1127, %v1128
        %v1130 = vrot.slane %v1129, 4
        %v1131 = vmax.f32 %v1129, %v1130
        %v1132 = vrot.slane %v1131, 2
        %v1133 = vmax.f32 %v1131, %v1132
        %v1134 = vrot.slane %v1133, 1
        %v1135 = vmax.f32 %v1133, %v1134
        %vm1136 = vcmp.ge.f32.partialorder %v1127, %v1135
        %vm1137 = vcmp.ge.f32.partialorder %v1128, %v1135
        %v1138 = vsel %vm1136, %v843, 16
        %v1139 = vsel %vm1137, %v844, 16
        %vm1140 = vcmp.lt.s32.totalorder %v1138, %v1139
        %v1141 = vsel %vm1140, %v1138, %v1139
        %v1142 = vrot.slane %v1141, 4
        %vm1143 = vcmp.lt.s32.totalorder %v1141, %v1142
        %v1144 = vsel %vm1143, %v1141, %v1142
        %v1145 = vrot.slane %v1144, 2
        %vm1146 = vcmp.lt.s32.totalorder %v1144, %v1145
        %v1147 = vsel %vm1146, %v1144, %v1145
        %v1148 = vrot.slane %v1147, 1
        %vm1149 = vcmp.lt.s32.totalorder %v1147, %v1148
        %v1150 = vsel %vm1149, %v1147, %v1148
        %vm1151 = vcmp.eq.s32.totalorder %v843, %v1150
        %vm1152 = vcmp.eq.s32.totalorder %v844, %v1150
        %v1153 = vsel %vm1151, 1.0, %v1125
        %v1154 = vsel %vm1152, 1.0, %v1126
        %v1155 = vsel %vm1151, -1e+30, %v1127
        %v1156 = vsel %vm1152, -1e+30, %v1128
        %v1157 = vmax.f32 %v1155, %v1156
        %v1158 = vrot.slane %v1157, 4
        %v1159 = vmax.f32 %v1157, %v1158
        %v1160 = vrot.slane %v1159, 2
        %v1161 = vmax.f32 %v1159, %v1160
        %v1162 = vrot.slane %v1161, 1
        %v1163 = vmax.f32 %v1161, %v1162
        %vm1164 = vcmp.ge.f32.partialorder %v1155, %v1163
        %vm1165 = vcmp.ge.f32.partialorder %v1156, %v1163
        %v1166 = vsel %vm1164, %v843, 16
        %v1167 = vsel %vm1165, %v844, 16
        %vm1168 = vcmp.lt.s32.totalorder %v1166, %v1167
        %v1169 = vsel %vm1168, %v1166, %v1167
        %v1170 = vrot.slane %v1169, 4
        %vm1171 = vcmp.lt.s32.totalorder %v1169, %v1170
        %v1172 = vsel %vm1171, %v1169, %v1170
        %v1173 = vrot.slane %v1172, 2
        %vm1174 = vcmp.lt.s32.totalorder %v1172, %v1173
        %v1175 = vsel %vm1174, %v1172, %v1173
        %v1176 = vrot.slane %v1175, 1
        %vm1177 = vcmp.lt.s32.totalorder %v1175, %v1176
        %v1178 = vsel %vm1177, %v1175, %v1176
        %vm1179 = vcmp.eq.s32.totalorder %v843, %v1178
        %vm1180 = vcmp.eq.s32.totalorder %v844, %v1178
        %v1181 = vsel %vm1179, 1.0, %v1153
        %v1182 = vsel %vm1180, 1.0, %v1154
        %v1183 = vsel %vm1179, -1e+30, %v1155
        %v1184 = vsel %vm1180, -1e+30, %v1156
        %v1185 = vmax.f32 %v1183, %v1184
        %v1186 = vrot.slane %v1185, 4
        %v1187 = vmax.f32 %v1185, %v1186
        %v1188 = vrot.slane %v1187, 2
        %v1189 = vmax.f32 %v1187, %v1188
        %v1190 = vrot.slane %v1189, 1
        %v1191 = vmax.f32 %v1189, %v1190
        %vm1192 = vcmp.ge.f32.partialorder %v1183, %v1191
        %vm1193 = vcmp.ge.f32.partialorder %v1184, %v1191
        %v1194 = vsel %vm1192, %v843, 16
        %v1195 = vsel %vm1193, %v844, 16
        %vm1196 = vcmp.lt.s32.totalorder %v1194, %v1195
        %v1197 = vsel %vm1196, %v1194, %v1195
        %v1198 = vrot.slane %v1197, 4
        %vm1199 = vcmp.lt.s32.totalorder %v1197, %v1198
        %v1200 = vsel %vm1199, %v1197, %v1198
        %v1201 = vrot.slane %v1200, 2
        %vm1202 = vcmp.lt.s32.totalorder %v1200, %v1201
        %v1203 = vsel %vm1202, %v1200, %v1201
        %v1204 = vrot.slane %v1203, 1
        %vm1205 = vcmp.lt.s32.totalorder %v1203, %v1204
        %v1206 = vsel %vm1205, %v1203, %v1204
        %vm1207 = vcmp.eq.s32.totalorder %v843, %v1206
        %vm1208 = vcmp.eq.s32.totalorder %v844, %v1206
        %v1209 = vsel %vm1207, 1.0, %v1181
        %v1210 = vsel %vm1208, 1.0, %v1182
        %v1211 = vsel %vm1207, -1e+30, %v1183
        %v1212 = vsel %vm1208, -1e+30, %v1184
        %v1213 = vmax.f32 %v1211, %v1212
        %v1214 = vrot.slane %v1213, 4
        %v1215 = vmax.f32 %v1213, %v1214
        %v1216 = vrot.slane %v1215, 2
        %v1217 = vmax.f32 %v1215, %v1216
        %v1218 = vrot.slane %v1217, 1
        %v1219 = vmax.f32 %v1217, %v1218
        %vm1220 = vcmp.ge.f32.partialorder %v1211, %v1219
        %vm1221 = vcmp.ge.f32.partialorder %v1212, %v1219
        %v1222 = vsel %vm1220, %v843, 16
        %v1223 = vsel %vm1221, %v844, 16
        %vm1224 = vcmp.lt.s32.totalorder %v1222, %v1223
        %v1225 = vsel %vm1224, %v1222, %v1223
        %v1226 = vrot.slane %v1225, 4
        %vm1227 = vcmp.lt.s32.totalorder %v1225, %v1226
        %v1228 = vsel %vm1227, %v1225, %v1226
        %v1229 = vrot.slane %v1228, 2
        %vm1230 = vcmp.lt.s32.totalorder %v1228, %v1229
        %v1231 = vsel %vm1230, %v1228, %v1229
        %v1232 = vrot.slane %v1231, 1
        %vm1233 = vcmp.lt.s32.totalorder %v1231, %v1232
        %v1234 = vsel %vm1233, %v1231, %v1232
        %vm1235 = vcmp.eq.s32.totalorder %v843, %v1234
        %vm1236 = vcmp.eq.s32.totalorder %v844, %v1234
        %v1237 = vsel %vm1235, 1.0, %v1209
        %v1238 = vsel %vm1236, 1.0, %v1210
        %v1239 = vsel %vm1235, -1e+30, %v1211
        %v1240 = vsel %vm1236, -1e+30, %v1212
        %v1241 = vmax.f32 %v1239, %v1240
        %v1242 = vrot.slane %v1241, 4
        %v1243 = vmax.f32 %v1241, %v1242
        %v1244 = vrot.slane %v1243, 2
        %v1245 = vmax.f32 %v1243, %v1244
        %v1246 = vrot.slane %v1245, 1
        %v1247 = vmax.f32 %v1245, %v1246
        %vm1248 = vcmp.ge.f32.partialorder %v1239, %v1247
        %vm1249 = vcmp.ge.f32.partialorder %v1240, %v1247
        %v1250 = vsel %vm1248, %v843, 16
        %v1251 = vsel %vm1249, %v844, 16
        %vm1252 = vcmp.lt.s32.totalorder %v1250, %v1251
        %v1253 = vsel %vm1252, %v1250, %v1251
        %v1254 = vrot.slane %v1253, 4
        %vm1255 = vcmp.lt.s32.totalorder %v1253, %v1254
        %v1256 = vsel %vm1255, %v1253, %v1254
        %v1257 = vrot.slane %v1256, 2
        %vm1258 = vcmp.lt.s32.totalorder %v1256, %v1257
        %v1259 = vsel %vm1258, %v1256, %v1257
        %v1260 = vrot.slane %v1259, 1
        %vm1261 = vcmp.lt.s32.totalorder %v1259, %v1260
        %v1262 = vsel %vm1261, %v1259, %v1260
        %vm1263 = vcmp.eq.s32.totalorder %v843, %v1262
        %vm1264 = vcmp.eq.s32.totalorder %v844, %v1262
        %v1265 = vsel %vm1263, 1.0, %v1237
        %v1266 = vsel %vm1264, 1.0, %v1238
        %v1267 = vmul.f32 %v1015, %v1041
        %v1268 = vmul.f32 %v1016, %v1042
        %vm1269 = vcmp.gt.f32.partialorder %v1265, 0.5
        %vm1270 = vcmp.gt.f32.partialorder %v1266, 0.5
        %v1271 = vsel %vm1269, 1, 0
        %v1272 = vsel %vm1270, 1, 0
        %vm1273 = vcmp.eq.s32.totalorder %v1271, 1
        %vm1274 = vcmp.eq.s32.totalorder %v1272, 1
        %v1275 = vsel %vm1273, %v1267, -1e+30
        %v1276 = vsel %vm1274, %v1268, -1e+30
        %v1277 = vsel %vm1026, %v1275, -inf
        %v1278 = vsel %vm1026, %v1276, -inf
        %v1279 = vmax.f32 %v1277, %v1278
        %v1280 = vrot.slane %v1279, 4
        %v1281 = vmax.f32 %v1279, %v1280
        %v1282 = vrot.slane %v1281, 2
        %v1283 = vmax.f32 %v1281, %v1282
        %v1284 = vrot.slane %v1283, 1
        %v1285 = vmax.f32 %v1283, %v1284
        %v1286 = vsel %vm1273, %v1267, 0.0
        %v1287 = vsel %vm1274, %v1268, 0.0
        %v1288 = vsel %vm1026, %v1286, 0.0
        %v1289 = vsel %vm1026, %v1287, 0.0
        %v1290 = vadd.f32 %v1288, %v1289
        %v1291 = vrot.slane %v1290, 4
        %v1292 = vadd.f32 %v1290, %v1291
        %v1293 = vrot.slane %v1292, 2
        %v1294 = vadd.f32 %v1292, %v1293
        %v1295 = vrot.slane %v1294, 1
        %v1296 = vadd.f32 %v1294, %v1295
        %v1297 = vmul.f32 %v1296, 0.125
        %v1298 = vld [vmem:[%s7] sm:$0x1]
        %v1299 = vld [vmem:[#allocation7] sm:$0xff]
        %v1300 = vld [vmem:[#allocation7 + $0x8] sm:$0xff]
        %1302 = vset.pattern.permute.xlu0 0
        %1303 = vperm.xlu0 %1302, %v1267
        %v1304 = vpop.permute.xlu0 %1303
        %1307 = vset.pattern.permute.xlu0 0
        %1308 = vperm.xlu0 %1307, %v1268
        %v1309 = vpop.permute.xlu0 %1308
        %v1311 = vmul.f32 %v1304, %v1299
        %v1312 = vmul.f32 %v1309, %v1300
        %s1313 = scalar_lea.vmem [#allocation7], 16
        %v1314 = vld [vmem:[%s1313] sm:$0xff]
        %v1315 = vld [vmem:[%s1313 + $0x8] sm:$0xff]
        %1316 = vset.pattern.permute.xlu0 1
        %1317 = vperm.xlu0 %1316, %v1267
        %v1318 = vpop.permute.xlu0 %1317
        %1320 = vset.pattern.permute.xlu0 1
        %1321 = vperm.xlu0 %1320, %v1268
        %v1322 = vpop.permute.xlu0 %1321
        %v1324 = vmul.f32 %v1318, %v1314
        %v1325 = vmul.f32 %v1322, %v1315
        %v1326 = vadd.f32 %v1311, %v1324
        %v1327 = vadd.f32 %v1312, %v1325
        %s1328 = scalar_lea.vmem [#allocation7], 32
        %v1329 = vld [vmem:[%s1328] sm:$0xff]
        %v1330 = vld [vmem:[%s1328 + $0x8] sm:$0xff]
        %1331 = vset.pattern.permute.xlu0 2
        %1332 = vperm.xlu0 %1331, %v1267
        %v1333 = vpop.permute.xlu0 %1332
        %1335 = vset.pattern.permute.xlu0 2
        %1336 = vperm.xlu0 %1335, %v1268
        %v1337 = vpop.permute.xlu0 %1336
        %v1339 = vmul.f32 %v1333, %v1329
        %v1340 = vmul.f32 %v1337, %v1330
        %v1341 = vadd.f32 %v1326, %v1339
        %v1342 = vadd.f32 %v1327, %v1340
        %s1343 = scalar_lea.vmem [#allocation7], 48
        %v1344 = vld [vmem:[%s1343] sm:$0xff]
        %v1345 = vld [vmem:[%s1343 + $0x8] sm:$0xff]
        %1346 = vset.pattern.permute.xlu0 3
        %1347 = vperm.xlu0 %1346, %v1267
        %v1348 = vpop.permute.xlu0 %1347
        %1350 = vset.pattern.permute.xlu0 3
        %1351 = vperm.xlu0 %1350, %v1268
        %v1352 = vpop.permute.xlu0 %1351
        %v1354 = vmul.f32 %v1348, %v1344
        %v1355 = vmul.f32 %v1352, %v1345
        %v1356 = vadd.f32 %v1341, %v1354
        %v1357 = vadd.f32 %v1342, %v1355
        %s1358 = scalar_lea.vmem [#allocation7], 64
        %v1359 = vld [vmem:[%s1358] sm:$0xff]
        %v1360 = vld [vmem:[%s1358 + $0x8] sm:$0xff]
        %1361 = vset.pattern.permute.xlu0 4
        %1362 = vperm.xlu0 %1361, %v1267
        %v1363 = vpop.permute.xlu0 %1362
        %1365 = vset.pattern.permute.xlu0 4
        %1366 = vperm.xlu0 %1365, %v1268
        %v1367 = vpop.permute.xlu0 %1366
        %v1369 = vmul.f32 %v1363, %v1359
        %v1370 = vmul.f32 %v1367, %v1360
        %v1371 = vadd.f32 %v1356, %v1369
        %v1372 = vadd.f32 %v1357, %v1370
        %s1373 = scalar_lea.vmem [#allocation7], 80
        %v1374 = vld [vmem:[%s1373] sm:$0xff]
        %v1375 = vld [vmem:[%s1373 + $0x8] sm:$0xff]
        %1376 = vset.pattern.permute.xlu0 5
        %1377 = vperm.xlu0 %1376, %v1267
        %v1378 = vpop.permute.xlu0 %1377
        %1380 = vset.pattern.permute.xlu0 5
        %1381 = vperm.xlu0 %1380, %v1268
        %v1382 = vpop.permute.xlu0 %1381
        %v1384 = vmul.f32 %v1378, %v1374
        %v1385 = vmul.f32 %v1382, %v1375
        %v1386 = vadd.f32 %v1371, %v1384
        %v1387 = vadd.f32 %v1372, %v1385
        %s1388 = scalar_lea.vmem [#allocation7], 96
        %v1389 = vld [vmem:[%s1388] sm:$0xff]
        %v1390 = vld [vmem:[%s1388 + $0x8] sm:$0xff]
        %1391 = vset.pattern.permute.xlu0 6
        %1392 = vperm.xlu0 %1391, %v1267
        %v1393 = vpop.permute.xlu0 %1392
        %1395 = vset.pattern.permute.xlu0 6
        %1396 = vperm.xlu0 %1395, %v1268
        %v1397 = vpop.permute.xlu0 %1396
        %v1399 = vmul.f32 %v1393, %v1389
        %v1400 = vmul.f32 %v1397, %v1390
        %v1401 = vadd.f32 %v1386, %v1399
        %v1402 = vadd.f32 %v1387, %v1400
        %s1403 = scalar_lea.vmem [#allocation7], 112
        %v1404 = vld [vmem:[%s1403] sm:$0xff]
        %v1405 = vld [vmem:[%s1403 + $0x8] sm:$0xff]
        %1406 = vset.pattern.permute.xlu0 7
        %1407 = vperm.xlu0 %1406, %v1267
        %v1408 = vpop.permute.xlu0 %1407
        %1410 = vset.pattern.permute.xlu0 7
        %1411 = vperm.xlu0 %1410, %v1268
        %v1412 = vpop.permute.xlu0 %1411
        %v1414 = vmul.f32 %v1408, %v1404
        %v1415 = vmul.f32 %v1412, %v1405
        %v1416 = vadd.f32 %v1401, %v1414
        %v1417 = vadd.f32 %v1402, %v1415
        %s1418 = scalar_lea.vmem [#allocation7], 128
        %v1419 = vld [vmem:[%s1418] sm:$0xff]
        %v1420 = vld [vmem:[%s1418 + $0x8] sm:$0xff]
        %1421 = vset.pattern.permute.xlu0 8
        %1422 = vperm.xlu0 %1421, %v1267
        %v1423 = vpop.permute.xlu0 %1422
        %1425 = vset.pattern.permute.xlu0 8
        %1426 = vperm.xlu0 %1425, %v1268
        %v1427 = vpop.permute.xlu0 %1426
        %v1429 = vmul.f32 %v1423, %v1419
        %v1430 = vmul.f32 %v1427, %v1420
        %v1431 = vadd.f32 %v1416, %v1429
        %v1432 = vadd.f32 %v1417, %v1430
        %s1433 = scalar_lea.vmem [#allocation7], 144
        %v1434 = vld [vmem:[%s1433] sm:$0xff]
        %v1435 = vld [vmem:[%s1433 + $0x8] sm:$0xff]
        %1436 = vset.pattern.permute.xlu0 9
        %1437 = vperm.xlu0 %1436, %v1267
        %v1438 = vpop.permute.xlu0 %1437
        %1440 = vset.pattern.permute.xlu0 9
        %1441 = vperm.xlu0 %1440, %v1268
        %v1442 = vpop.permute.xlu0 %1441
        %v1444 = vmul.f32 %v1438, %v1434
        %v1445 = vmul.f32 %v1442, %v1435
        %v1446 = vadd.f32 %v1431, %v1444
        %v1447 = vadd.f32 %v1432, %v1445
        %s1448 = scalar_lea.vmem [#allocation7], 160
        %v1449 = vld [vmem:[%s1448] sm:$0xff]
        %v1450 = vld [vmem:[%s1448 + $0x8] sm:$0xff]
        %1451 = vset.pattern.permute.xlu0 10
        %1452 = vperm.xlu0 %1451, %v1267
        %v1453 = vpop.permute.xlu0 %1452
        %1455 = vset.pattern.permute.xlu0 10
        %1456 = vperm.xlu0 %1455, %v1268
        %v1457 = vpop.permute.xlu0 %1456
        %v1459 = vmul.f32 %v1453, %v1449
        %v1460 = vmul.f32 %v1457, %v1450
        %v1461 = vadd.f32 %v1446, %v1459
        %v1462 = vadd.f32 %v1447, %v1460
        %s1463 = scalar_lea.vmem [#allocation7], 176
        %v1464 = vld [vmem:[%s1463] sm:$0xff]
        %v1465 = vld [vmem:[%s1463 + $0x8] sm:$0xff]
        %1466 = vset.pattern.permute.xlu0 11
        %1467 = vperm.xlu0 %1466, %v1267
        %v1468 = vpop.permute.xlu0 %1467
        %1470 = vset.pattern.permute.xlu0 11
        %1471 = vperm.xlu0 %1470, %v1268
        %v1472 = vpop.permute.xlu0 %1471
        %v1474 = vmul.f32 %v1468, %v1464
        %v1475 = vmul.f32 %v1472, %v1465
        %v1476 = vadd.f32 %v1461, %v1474
        %v1477 = vadd.f32 %v1462, %v1475
        %s1478 = scalar_lea.vmem [#allocation7], 192
        %v1479 = vld [vmem:[%s1478] sm:$0xff]
        %v1480 = vld [vmem:[%s1478 + $0x8] sm:$0xff]
        %1481 = vset.pattern.permute.xlu0 12
        %1482 = vperm.xlu0 %1481, %v1267
        %v1483 = vpop.permute.xlu0 %1482
        %1485 = vset.pattern.permute.xlu0 12
        %1486 = vperm.xlu0 %1485, %v1268
        %v1487 = vpop.permute.xlu0 %1486
        %v1489 = vmul.f32 %v1483, %v1479
        %v1490 = vmul.f32 %v1487, %v1480
        %v1491 = vadd.f32 %v1476, %v1489
        %v1492 = vadd.f32 %v1477, %v1490
        %s1493 = scalar_lea.vmem [#allocation7], 208
        %v1494 = vld [vmem:[%s1493] sm:$0xff]
        %v1495 = vld [vmem:[%s1493 + $0x8] sm:$0xff]
        %1496 = vset.pattern.permute.xlu0 13
        %1497 = vperm.xlu0 %1496, %v1267
        %v1498 = vpop.permute.xlu0 %1497
        %1500 = vset.pattern.permute.xlu0 13
        %1501 = vperm.xlu0 %1500, %v1268
        %v1502 = vpop.permute.xlu0 %1501
        %v1504 = vmul.f32 %v1498, %v1494
        %v1505 = vmul.f32 %v1502, %v1495
        %v1506 = vadd.f32 %v1491, %v1504
        %v1507 = vadd.f32 %v1492, %v1505
        %s1508 = scalar_lea.vmem [#allocation7], 224
        %v1509 = vld [vmem:[%s1508] sm:$0xff]
        %v1510 = vld [vmem:[%s1508 + $0x8] sm:$0xff]
        %1511 = vset.pattern.permute.xlu0 14
        %1512 = vperm.xlu0 %1511, %v1267
        %v1513 = vpop.permute.xlu0 %1512
        %1515 = vset.pattern.permute.xlu0 14
        %1516 = vperm.xlu0 %1515, %v1268
        %v1517 = vpop.permute.xlu0 %1516
        %v1519 = vmul.f32 %v1513, %v1509
        %v1520 = vmul.f32 %v1517, %v1510
        %v1521 = vadd.f32 %v1506, %v1519
        %v1522 = vadd.f32 %v1507, %v1520
        %s1523 = scalar_lea.vmem [#allocation7], 240
        %v1524 = vld [vmem:[%s1523] sm:$0xff]
        %v1525 = vld [vmem:[%s1523 + $0x8] sm:$0xff]
        %1526 = vset.pattern.permute.xlu0 15
        %1527 = vperm.xlu0 %1526, %v1267
        %v1528 = vpop.permute.xlu0 %1527
        %1530 = vset.pattern.permute.xlu0 15
        %1531 = vperm.xlu0 %1530, %v1268
        %v1532 = vpop.permute.xlu0 %1531
        %v1534 = vmul.f32 %v1528, %v1524
        %v1535 = vmul.f32 %v1532, %v1525
        %v1536 = vadd.f32 %v1521, %v1534
        %v1537 = vadd.f32 %v1522, %v1535
        %s1538 = scalar_lea.vmem [#allocation7], 256
        %v1539 = vld [vmem:[%s1538] sm:$0xff]
        %v1540 = vld [vmem:[%s1538 + $0x8] sm:$0xff]
        %1541 = vset.pattern.permute.xlu0 16
        %1542 = vperm.xlu0 %1541, %v1267
        %v1543 = vpop.permute.xlu0 %1542
        %1545 = vset.pattern.permute.xlu0 16
        %1546 = vperm.xlu0 %1545, %v1268
        %v1547 = vpop.permute.xlu0 %1546
        %v1549 = vmul.f32 %v1543, %v1539
        %v1550 = vmul.f32 %v1547, %v1540
        %v1551 = vadd.f32 %v1536, %v1549
        %v1552 = vadd.f32 %v1537, %v1550
        %s1553 = scalar_lea.vmem [#allocation7], 272
        %v1554 = vld [vmem:[%s1553] sm:$0xff]
        %v1555 = vld [vmem:[%s1553 + $0x8] sm:$0xff]
        %1556 = vset.pattern.permute.xlu0 17
        %1557 = vperm.xlu0 %1556, %v1267
        %v1558 = vpop.permute.xlu0 %1557
        %1560 = vset.pattern.permute.xlu0 17
        %1561 = vperm.xlu0 %1560, %v1268
        %v1562 = vpop.permute.xlu0 %1561
        %v1564 = vmul.f32 %v1558, %v1554
        %v1565 = vmul.f32 %v1562, %v1555
        %v1566 = vadd.f32 %v1551, %v1564
        %v1567 = vadd.f32 %v1552, %v1565
        %s1568 = scalar_lea.vmem [#allocation7], 288
        %v1569 = vld [vmem:[%s1568] sm:$0xff]
        %v1570 = vld [vmem:[%s1568 + $0x8] sm:$0xff]
        %1571 = vset.pattern.permute.xlu0 18
        %1572 = vperm.xlu0 %1571, %v1267
        %v1573 = vpop.permute.xlu0 %1572
        %1575 = vset.pattern.permute.xlu0 18
        %1576 = vperm.xlu0 %1575, %v1268
        %v1577 = vpop.permute.xlu0 %1576
        %v1579 = vmul.f32 %v1573, %v1569
        %v1580 = vmul.f32 %v1577, %v1570
        %v1581 = vadd.f32 %v1566, %v1579
        %v1582 = vadd.f32 %v1567, %v1580
        %s1583 = scalar_lea.vmem [#allocation7], 304
        %v1584 = vld [vmem:[%s1583] sm:$0xff]
        %v1585 = vld [vmem:[%s1583 + $0x8] sm:$0xff]
        %1586 = vset.pattern.permute.xlu0 19
        %1587 = vperm.xlu0 %1586, %v1267
        %v1588 = vpop.permute.xlu0 %1587
        %1590 = vset.pattern.permute.xlu0 19
        %1591 = vperm.xlu0 %1590, %v1268
        %v1592 = vpop.permute.xlu0 %1591
        %v1594 = vmul.f32 %v1588, %v1584
        %v1595 = vmul.f32 %v1592, %v1585
        %v1596 = vadd.f32 %v1581, %v1594
        %v1597 = vadd.f32 %v1582, %v1595
        %s1598 = scalar_lea.vmem [#allocation7], 320
        %v1599 = vld [vmem:[%s1598] sm:$0xff]
        %v1600 = vld [vmem:[%s1598 + $0x8] sm:$0xff]
        %1601 = vset.pattern.permute.xlu0 20
        %1602 = vperm.xlu0 %1601, %v1267
        %v1603 = vpop.permute.xlu0 %1602
        %1605 = vset.pattern.permute.xlu0 20
        %1606 = vperm.xlu0 %1605, %v1268
        %v1607 = vpop.permute.xlu0 %1606
        %v1609 = vmul.f32 %v1603, %v1599
        %v1610 = vmul.f32 %v1607, %v1600
        %v1611 = vadd.f32 %v1596, %v1609
        %v1612 = vadd.f32 %v1597, %v1610
        %s1613 = scalar_lea.vmem [#allocation7], 336
        %v1614 = vld [vmem:[%s1613] sm:$0xff]
        %v1615 = vld [vmem:[%s1613 + $0x8] sm:$0xff]
        %1616 = vset.pattern.permute.xlu0 21
        %1617 = vperm.xlu0 %1616, %v1267
        %v1618 = vpop.permute.xlu0 %1617
        %1620 = vset.pattern.permute.xlu0 21
        %1621 = vperm.xlu0 %1620, %v1268
        %v1622 = vpop.permute.xlu0 %1621
        %v1624 = vmul.f32 %v1618, %v1614
        %v1625 = vmul.f32 %v1622, %v1615
        %v1626 = vadd.f32 %v1611, %v1624
        %v1627 = vadd.f32 %v1612, %v1625
        %s1628 = scalar_lea.vmem [#allocation7], 352
        %v1629 = vld [vmem:[%s1628] sm:$0xff]
        %v1630 = vld [vmem:[%s1628 + $0x8] sm:$0xff]
        %1631 = vset.pattern.permute.xlu0 22
        %1632 = vperm.xlu0 %1631, %v1267
        %v1633 = vpop.permute.xlu0 %1632
        %1635 = vset.pattern.permute.xlu0 22
        %1636 = vperm.xlu0 %1635, %v1268
        %v1637 = vpop.permute.xlu0 %1636
        %v1639 = vmul.f32 %v1633, %v1629
        %v1640 = vmul.f32 %v1637, %v1630
        %v1641 = vadd.f32 %v1626, %v1639
        %v1642 = vadd.f32 %v1627, %v1640
        %s1643 = scalar_lea.vmem [#allocation7], 368
        %v1644 = vld [vmem:[%s1643] sm:$0xff]
        %v1645 = vld [vmem:[%s1643 + $0x8] sm:$0xff]
        %1646 = vset.pattern.permute.xlu0 23
        %1647 = vperm.xlu0 %1646, %v1267
        %v1648 = vpop.permute.xlu0 %1647
        %1650 = vset.pattern.permute.xlu0 23
        %1651 = vperm.xlu0 %1650, %v1268
        %v1652 = vpop.permute.xlu0 %1651
        %v1654 = vmul.f32 %v1648, %v1644
        %v1655 = vmul.f32 %v1652, %v1645
        %v1656 = vadd.f32 %v1641, %v1654
        %v1657 = vadd.f32 %v1642, %v1655
        %s1658 = scalar_lea.vmem [#allocation7], 384
        %v1659 = vld [vmem:[%s1658] sm:$0xff]
        %v1660 = vld [vmem:[%s1658 + $0x8] sm:$0xff]
        %1661 = vset.pattern.permute.xlu0 24
        %1662 = vperm.xlu0 %1661, %v1267
        %v1663 = vpop.permute.xlu0 %1662
        %1665 = vset.pattern.permute.xlu0 24
        %1666 = vperm.xlu0 %1665, %v1268
        %v1667 = vpop.permute.xlu0 %1666
        %v1669 = vmul.f32 %v1663, %v1659
        %v1670 = vmul.f32 %v1667, %v1660
        %v1671 = vadd.f32 %v1656, %v1669
        %v1672 = vadd.f32 %v1657, %v1670
        %s1673 = scalar_lea.vmem [#allocation7], 400
        %v1674 = vld [vmem:[%s1673] sm:$0xff]
        %v1675 = vld [vmem:[%s1673 + $0x8] sm:$0xff]
        %1676 = vset.pattern.permute.xlu0 25
        %1677 = vperm.xlu0 %1676, %v1267
        %v1678 = vpop.permute.xlu0 %1677
        %1680 = vset.pattern.permute.xlu0 25
        %1681 = vperm.xlu0 %1680, %v1268
        %v1682 = vpop.permute.xlu0 %1681
        %v1684 = vmul.f32 %v1678, %v1674
        %v1685 = vmul.f32 %v1682, %v1675
        %v1686 = vadd.f32 %v1671, %v1684
        %v1687 = vadd.f32 %v1672, %v1685
        %s1688 = scalar_lea.vmem [#allocation7], 416
        %v1689 = vld [vmem:[%s1688] sm:$0xff]
        %v1690 = vld [vmem:[%s1688 + $0x8] sm:$0xff]
        %1691 = vset.pattern.permute.xlu0 26
        %1692 = vperm.xlu0 %1691, %v1267
        %v1693 = vpop.permute.xlu0 %1692
        %1695 = vset.pattern.permute.xlu0 26
        %1696 = vperm.xlu0 %1695, %v1268
        %v1697 = vpop.permute.xlu0 %1696
        %v1699 = vmul.f32 %v1693, %v1689
        %v1700 = vmul.f32 %v1697, %v1690
        %v1701 = vadd.f32 %v1686, %v1699
        %v1702 = vadd.f32 %v1687, %v1700
        %s1703 = scalar_lea.vmem [#allocation7], 432
        %v1704 = vld [vmem:[%s1703] sm:$0xff]
        %v1705 = vld [vmem:[%s1703 + $0x8] sm:$0xff]
        %1706 = vset.pattern.permute.xlu0 27
        %1707 = vperm.xlu0 %1706, %v1267
        %v1708 = vpop.permute.xlu0 %1707
        %1710 = vset.pattern.permute.xlu0 27
        %1711 = vperm.xlu0 %1710, %v1268
        %v1712 = vpop.permute.xlu0 %1711
        %v1714 = vmul.f32 %v1708, %v1704
        %v1715 = vmul.f32 %v1712, %v1705
        %v1716 = vadd.f32 %v1701, %v1714
        %v1717 = vadd.f32 %v1702, %v1715
        %s1718 = scalar_lea.vmem [#allocation7], 448
        %v1719 = vld [vmem:[%s1718] sm:$0xff]
        %v1720 = vld [vmem:[%s1718 + $0x8] sm:$0xff]
        %1721 = vset.pattern.permute.xlu0 28
        %1722 = vperm.xlu0 %1721, %v1267
        %v1723 = vpop.permute.xlu0 %1722
        %1725 = vset.pattern.permute.xlu0 28
        %1726 = vperm.xlu0 %1725, %v1268
        %v1727 = vpop.permute.xlu0 %1726
        %v1729 = vmul.f32 %v1723, %v1719
        %v1730 = vmul.f32 %v1727, %v1720
        %v1731 = vadd.f32 %v1716, %v1729
        %v1732 = vadd.f32 %v1717, %v1730
        %s1733 = scalar_lea.vmem [#allocation7], 464
        %v1734 = vld [vmem:[%s1733] sm:$0xff]
        %v1735 = vld [vmem:[%s1733 + $0x8] sm:$0xff]
        %1736 = vset.pattern.permute.xlu0 29
        %1737 = vperm.xlu0 %1736, %v1267
        %v1738 = vpop.permute.xlu0 %1737
        %1740 = vset.pattern.permute.xlu0 29
        %1741 = vperm.xlu0 %1740, %v1268
        %v1742 = vpop.permute.xlu0 %1741
        %v1744 = vmul.f32 %v1738, %v1734
        %v1745 = vmul.f32 %v1742, %v1735
        %v1746 = vadd.f32 %v1731, %v1744
        %v1747 = vadd.f32 %v1732, %v1745
        %s1748 = scalar_lea.vmem [#allocation7], 480
        %v1749 = vld [vmem:[%s1748] sm:$0xff]
        %v1750 = vld [vmem:[%s1748 + $0x8] sm:$0xff]
        %1751 = vset.pattern.permute.xlu0 30
        %1752 = vperm.xlu0 %1751, %v1267
        %v1753 = vpop.permute.xlu0 %1752
        %1755 = vset.pattern.permute.xlu0 30
        %1756 = vperm.xlu0 %1755, %v1268
        %v1757 = vpop.permute.xlu0 %1756
        %v1759 = vmul.f32 %v1753, %v1749
        %v1760 = vmul.f32 %v1757, %v1750
        %v1761 = vadd.f32 %v1746, %v1759
        %v1762 = vadd.f32 %v1747, %v1760
        %s1763 = scalar_lea.vmem [#allocation7], 496
        %v1764 = vld [vmem:[%s1763] sm:$0xff]
        %v1765 = vld [vmem:[%s1763 + $0x8] sm:$0xff]
        %1766 = vset.pattern.permute.xlu0 31
        %1767 = vperm.xlu0 %1766, %v1267
        %v1768 = vpop.permute.xlu0 %1767
        %1770 = vset.pattern.permute.xlu0 31
        %1771 = vperm.xlu0 %1770, %v1268
        %v1772 = vpop.permute.xlu0 %1771
        %v1774 = vmul.f32 %v1768, %v1764
        %v1775 = vmul.f32 %v1772, %v1765
        %v1776 = vadd.f32 %v1761, %v1774
        %v1777 = vadd.f32 %v1762, %v1775
        %v1778 = vsel %vm847, %v1265, 0.0
        %v1779 = vsel %vm848, %v1266, 0.0
        %v1780 = vsel %vm852, %v1778, 0.0
        %v1781 = vsel %vm852, %v1779, 0.0
        %v1782 = vadd.f32 %v1780, %v1781
        %v1783 = vrot.slane %v1782, 4
        %v1784 = vadd.f32 %v1782, %v1783
        %v1785 = vrot.slane %v1784, 2
        %v1786 = vadd.f32 %v1784, %v1785
        %v1787 = vrot.slane %v1786, 1
        %v1788 = vadd.f32 %v1786, %v1787
        %vm1789 = vcmp.gt.f32.partialorder %v1788, 0.5
        %v1790 = vsel %vm1789, 1, 0
        %vm1791 = vcmp.eq.s32.totalorder %v1790, 1
        %vm1792 = vmand %vm1273, %vm1791
        %vm1793 = vmand %vm1274, %vm1791
        %vm1794 = vmand %vm868, %vm1792
        %vm1795 = vmand %vm869, %vm1793
        %vm1796 = vmand %vm847, %vm1273
        %vm1797 = vmand %vm848, %vm1274
        %vm1798 = vmor %vm1794, %vm1796
        %vm1799 = vmor %vm1795, %vm1797
        %vm1800 = vmxor %vm1794, 1
        %vm1801 = vmxor %vm1795, 1
        %vm1802 = vmand %vm847, %vm1800
        %vm1803 = vmand %vm848, %vm1801
        %v1804 = vsel %vm1802, 1.0, %v598
        %v1805 = vsel %vm1803, 1.0, %v599
        %v1806 = vsel %vm1798, %v1804, -1e+30
        %v1807 = vsel %vm1799, %v1805, -1e+30
        %v1808 = vsel %vm852, %v1806, -inf
        %1809 = vmax.xlane.f32.xlu0 %v1808
        %v1810 = vpop.xlane.xlu0 %1809
        %v1811 = vsel %vm852, %v1807, -inf
        %1812 = vmax.xlane.f32.xlu0 %v1811
        %v1813 = vpop.xlane.xlu0 %1812
        %v1814 = vsub.f32 %v1806, %v1810
        %v1815 = vsub.f32 %v1807, %v1813
        %v1816 = vmul.f32 %v1814, 1.442695
        %v1817 = vpow.pop %v1816
        %v1818 = vmul.f32 %v1815, 1.442695
        %v1819 = vpow.pop %v1818
        %v1820 = vsel %vm1798, %v1817, 0.0
        %v1821 = vsel %vm1799, %v1819, 0.0
        %v1822 = vsel %vm852, %v1820, 0.0
        %1823 = vadd.xlane.f32.xlu0 %v1822
        %v1824 = vpop.xlane.xlu0 %1823
        %v1825 = vsel %vm852, %v1821, 0.0
        %1826 = vadd.xlane.f32.xlu0 %v1825
        %v1827 = vpop.xlane.xlu0 %1826
        %vm1828 = vcmp.gt.f32.partialorder %v1824, 0.0
        %vm1829 = vcmp.gt.f32.partialorder %v1827, 0.0
        %v1830 = vsel %vm1828, %v1824, 1.0
        %v1831 = vsel %vm1829, %v1827, 1.0
        %v1832 = vrcp.pop %v1830
        %v1833 = vrcp.pop %v1831
        %v1834 = vmul.f32 %v1820, %v1832
        %v1835 = vmul.f32 %v1821, %v1833
        %v1836 = vsel %vm1798, 1, 0
        %v1837 = vsel %vm1799, 1, 0
        %v1838 = vcvt.s32.f32 %v1836
        %v1839 = vcvt.s32.f32 %v1837
        %v1840 = vsel %vm852, %v1838, 0.0
        %1841 = vadd.xlane.f32.xlu0 %v1840
        %v1842 = vpop.xlane.xlu0 %1841
        %v1843 = vsel %vm852, %v1839, 0.0
        %1844 = vadd.xlane.f32.xlu0 %v1843
        %v1845 = vpop.xlane.xlu0 %1844
        %v1846 = vmax.f32 %v1842, 1.0
        %v1847 = vmax.f32 %v1845, 1.0
        %v1849 = vsel %vm852, %v1834, 0
        %v1852 = vsel %vm852, %v1835, 0
        %1854 = vmatprep.subr.mxu0 0.0
        %1855 = vmatpush1.msra.mxu0 %v1776
        %1856 = vmatprep.subr.mxu0 0.0
        %1857 = vmatpush1.msra.mxu0 %v1777
        %1858 = vmatprep.subr.mxu0 0.0
        %1859 = vmatpush1.msra.mxu0 0.0
        %1860 = vmatprep.subr.mxu0 0.0
        %1861 = vmatpush1.msra.mxu0 0.0
        %1862 = vmatprep.subr.mxu0 0.0
        %1863 = vmatpush1.msra.mxu0 0.0
        %1864 = vmatprep.subr.mxu0 0.0
        %1865 = vmatpush1.msra.mxu0 0.0
        %1866 = vmatprep.subr.mxu0 0.0
        %1867 = vmatpush1.msra.mxu0 0.0
        %1868 = vmatprep.subr.mxu0 0.0
        %1869 = vmatpush1.msra.mxu0 0.0
        %1870 = vmatprep.subr.mxu0 0.0
        %1871 = vmatpush1.msra.mxu0 0.0
        %1872 = vmatprep.subr.mxu0 0.0
        %1873 = vmatpush1.msra.mxu0 0.0
        %1874 = vmatprep.subr.mxu0 0.0
        %1875 = vmatpush1.msra.mxu0 0.0
        %1876 = vmatprep.subr.mxu0 0.0
        %1877 = vmatpush1.msra.mxu0 0.0
        %1878 = vmatprep.subr.mxu0 0.0
        %1879 = vmatpush1.msra.mxu0 0.0
        %1880 = vmatprep.subr.mxu0 0.0
        %1881 = vmatpush1.msra.mxu0 0.0
        %1882 = vmatprep.subr.mxu0 0.0
        %1883 = vmatpush1.msra.mxu0 0.0
        %1884 = vmatprep.subr.mxu0 0.0
        %1885 = vmatpush1.msra.mxu0 0.0
        %1886 = vmatprep.subr.mxu0 0.0
        %1887 = vmatpush1.msra.mxu0 0.0
        %1888 = vmatprep.subr.mxu0 0.0
        %1889 = vmatpush1.msra.mxu0 0.0
        %1890 = vmatprep.subr.mxu0 0.0
        %1891 = vmatpush1.msra.mxu0 0.0
        %1892 = vmatprep.subr.mxu0 0.0
        %1893 = vmatpush1.msra.mxu0 0.0
        %1894 = vmatprep.subr.mxu0 0.0
        %1895 = vmatpush1.msra.mxu0 0.0
        %1896 = vmatprep.subr.mxu0 0.0
        %1897 = vmatpush1.msra.mxu0 0.0
        %1898 = vmatprep.subr.mxu0 0.0
        %1899 = vmatpush1.msra.mxu0 0.0
        %1900 = vmatprep.subr.mxu0 0.0
        %1901 = vmatpush1.msra.mxu0 0.0
        %1902 = vmatprep.subr.mxu0 0.0
        %1903 = vmatpush1.msra.mxu0 0.0
        %1904 = vmatprep.subr.mxu0 0.0
        %1905 = vmatpush1.msra.mxu0 0.0
        %1906 = vmatprep.subr.mxu0 0.0
        %1907 = vmatpush1.msra.mxu0 0.0
        %1908 = vmatprep.subr.mxu0 0.0
        %1909 = vmatpush1.msra.mxu0 0.0
        %1910 = vmatprep.subr.mxu0 0.0
        %1911 = vmatpush1.msra.mxu0 0.0
        %1912 = vmatprep.subr.mxu0 0.0
        %1913 = vmatpush1.msra.mxu0 0.0
        %1914 = vmatprep.subr.mxu0 0.0
        %1915 = vmatpush1.msra.mxu0 0.0
        %1916 = vmatprep.subr.mxu0 0.0
        %1917 = vmatpush1.msra.mxu0 0.0
        %1918 = vmatprep.mubr.f32.mxu0 0.0
        %1919 = vmatmul.mubr.f32.gmra.mrb[0].mxu0 %v1849
        %v1920 = vpop.f32.mrb[0].mxu0
        %v1921 = vadd.f32 0.0, %v1920
        %v1922 = vpop.f32.mrb[0].mxu0
        %1923 = vmatprep.mubr.f32.mxu0 0.0
        %1924 = vmatmul.mubr.f32.gmra.mrb[0].mxu0 %v1852
        %v1925 = vpop.f32.mrb[0].mxu0
        %v1926 = vadd.f32 0.0, %v1925
        %v1927 = vpop.f32.mrb[0].mxu0
        %1928 = vdwg.mxu0
        %v1929 = vrcp.pop %v1846
        %v1930 = vrcp.pop %v1847
        %v1931 = vmul.f32 %v1921, %v1929
        %v1932 = vmul.f32 %v1926, %v1930
        %v1934 = vlaneseq
        %v1935 = vshrl.u32 %v1934, 7
        %v1936 = vsub.s32 0, %v1935
        %v1937 = vrot.slane %v1298, %v1936
        %v1939 = vadd.f32 %v1931, %v1937
        %v1940 = vadd.f32 %v1932, %v1937
        %v1941 = vld [vmem:[%s8] sm:$0x1]
        %v1943 = vlaneseq
        %v1944 = vshrl.u32 %v1943, 7
        %v1945 = vsub.s32 0, %v1944
        %v1946 = vrot.slane %v1941, %v1945
        %v1948 = vmul.f32 %v1939, %v1946
        %v1949 = vmul.f32 %v1940, %v1946
        %v1950 = vsel %vm1026, %v1948, 0.0
        %1951 = vadd.xlane.f32.xlu0 %v1950
        %v1952 = vpop.xlane.xlu0 %1951
        %v1953 = vsel %vm1026, %v1949, 0.0
        %1954 = vadd.xlane.f32.xlu0 %v1953
        %v1955 = vpop.xlane.xlu0 %1954
        %v1956 = vsub.f32 0.0, %v1952
        %v1957 = vsub.f32 0.0, %v1955
        %v1958 = vmul.f32 %v1956, 1.442695
        %v1959 = vpow.pop %v1958
        %v1960 = vmul.f32 %v1957, 1.442695
        %v1961 = vpow.pop %v1960
        %v1962 = vadd.f32 %v1959, 1.0
        %v1963 = vadd.f32 %v1961, 1.0
        %v1964 = vrcp.pop %v1962
        %v1965 = vrcp.pop %v1963
        %v1966 = vsel %vm1269, %v1964, -1e+30
        %v1967 = vsel %vm1270, %v1965, -1e+30
        %v1968 = vmax.f32 %v1966, %v1967
        %v1969 = vrot.slane %v1968, 4
        %v1970 = vmax.f32 %v1968, %v1969
        %v1971 = vrot.slane %v1970, 2
        %v1972 = vmax.f32 %v1970, %v1971
        %v1973 = vrot.slane %v1972, 1
        %v1974 = vmax.f32 %v1972, %v1973
        %vm1975 = vcmp.ge.f32.partialorder %v1966, %v1974
        %vm1976 = vcmp.ge.f32.partialorder %v1967, %v1974
        %v1977 = vsel %vm1975, %v843, 16
        %v1978 = vsel %vm1976, %v844, 16
        %vm1979 = vcmp.lt.s32.totalorder %v1977, %v1978
        %v1980 = vsel %vm1979, %v1977, %v1978
        %v1981 = vrot.slane %v1980, 4
        %vm1982 = vcmp.lt.s32.totalorder %v1980, %v1981
        %v1983 = vsel %vm1982, %v1980, %v1981
        %v1984 = vrot.slane %v1983, 2
        %vm1985 = vcmp.lt.s32.totalorder %v1983, %v1984
        %v1986 = vsel %vm1985, %v1983, %v1984
        %v1987 = vrot.slane %v1986, 1
        %vm1988 = vcmp.lt.s32.totalorder %v1986, %v1987
        %v1989 = vsel %vm1988, %v1986, %v1987
        %vm1990 = vcmp.eq.s32.totalorder %v843, %v1989
        %vm1991 = vcmp.eq.s32.totalorder %v844, %v1989
        %v1992 = vsel %vm1990, 1.0, 0.0
        %v1993 = vsel %vm1991, 1.0, 0.0
        %v1994 = vsel %vm1990, -1e+30, %v1966
        %v1995 = vsel %vm1991, -1e+30, %v1967
        %v1996 = vmax.f32 %v1994, %v1995
        %v1997 = vrot.slane %v1996, 4
        %v1998 = vmax.f32 %v1996, %v1997
        %v1999 = vrot.slane %v1998, 2
        %v2000 = vmax.f32 %v1998, %v1999
        %v2001 = vrot.slane %v2000, 1
        %v2002 = vmax.f32 %v2000, %v2001
        %vm2003 = vcmp.ge.f32.partialorder %v1994, %v2002
        %vm2004 = vcmp.ge.f32.partialorder %v1995, %v2002
        %v2005 = vsel %vm2003, %v843, 16
        %v2006 = vsel %vm2004, %v844, 16
        %vm2007 = vcmp.lt.s32.totalorder %v2005, %v2006
        %v2008 = vsel %vm2007, %v2005, %v2006
        %v2009 = vrot.slane %v2008, 4
        %vm2010 = vcmp.lt.s32.totalorder %v2008, %v2009
        %v2011 = vsel %vm2010, %v2008, %v2009
        %v2012 = vrot.slane %v2011, 2
        %vm2013 = vcmp.lt.s32.totalorder %v2011, %v2012
        %v2014 = vsel %vm2013, %v2011, %v2012
        %v2015 = vrot.slane %v2014, 1
        %vm2016 = vcmp.lt.s32.totalorder %v2014, %v2015
        %v2017 = vsel %vm2016, %v2014, %v2015
        %vm2018 = vcmp.eq.s32.totalorder %v843, %v2017
        %vm2019 = vcmp.eq.s32.totalorder %v844, %v2017
        %v2020 = vsel %vm2018, 1.0, %v1992
        %v2021 = vsel %vm2019, 1.0, %v1993
        %v2022 = vsel %vm2018, -1e+30, %v1994
        %v2023 = vsel %vm2019, -1e+30, %v1995
        %v2024 = vmax.f32 %v2022, %v2023
        %v2025 = vrot.slane %v2024, 4
        %v2026 = vmax.f32 %v2024, %v2025
        %v2027 = vrot.slane %v2026, 2
        %v2028 = vmax.f32 %v2026, %v2027
        %v2029 = vrot.slane %v2028, 1
        %v2030 = vmax.f32 %v2028, %v2029
        %vm2031 = vcmp.ge.f32.partialorder %v2022, %v2030
        %vm2032 = vcmp.ge.f32.partialorder %v2023, %v2030
        %v2033 = vsel %vm2031, %v843, 16
        %v2034 = vsel %vm2032, %v844, 16
        %vm2035 = vcmp.lt.s32.totalorder %v2033, %v2034
        %v2036 = vsel %vm2035, %v2033, %v2034
        %v2037 = vrot.slane %v2036, 4
        %vm2038 = vcmp.lt.s32.totalorder %v2036, %v2037
        %v2039 = vsel %vm2038, %v2036, %v2037
        %v2040 = vrot.slane %v2039, 2
        %vm2041 = vcmp.lt.s32.totalorder %v2039, %v2040
        %v2042 = vsel %vm2041, %v2039, %v2040
        %v2043 = vrot.slane %v2042, 1
        %vm2044 = vcmp.lt.s32.totalorder %v2042, %v2043
        %v2045 = vsel %vm2044, %v2042, %v2043
        %vm2046 = vcmp.eq.s32.totalorder %v843, %v2045
        %vm2047 = vcmp.eq.s32.totalorder %v844, %v2045
        %v2048 = vsel %vm2046, 1.0, %v2020
        %v2049 = vsel %vm2047, 1.0, %v2021
        %v2050 = vsel %vm2046, -1e+30, %v2022
        %v2051 = vsel %vm2047, -1e+30, %v2023
        %v2052 = vmax.f32 %v2050, %v2051
        %v2053 = vrot.slane %v2052, 4
        %v2054 = vmax.f32 %v2052, %v2053
        %v2055 = vrot.slane %v2054, 2
        %v2056 = vmax.f32 %v2054, %v2055
        %v2057 = vrot.slane %v2056, 1
        %v2058 = vmax.f32 %v2056, %v2057
        %vm2059 = vcmp.ge.f32.partialorder %v2050, %v2058
        %vm2060 = vcmp.ge.f32.partialorder %v2051, %v2058
        %v2061 = vsel %vm2059, %v843, 16
        %v2062 = vsel %vm2060, %v844, 16
        %vm2063 = vcmp.lt.s32.totalorder %v2061, %v2062
        %v2064 = vsel %vm2063, %v2061, %v2062
        %v2065 = vrot.slane %v2064, 4
        %vm2066 = vcmp.lt.s32.totalorder %v2064, %v2065
        %v2067 = vsel %vm2066, %v2064, %v2065
        %v2068 = vrot.slane %v2067, 2
        %vm2069 = vcmp.lt.s32.totalorder %v2067, %v2068
        %v2070 = vsel %vm2069, %v2067, %v2068
        %v2071 = vrot.slane %v2070, 1
        %vm2072 = vcmp.lt.s32.totalorder %v2070, %v2071
        %v2073 = vsel %vm2072, %v2070, %v2071
        %vm2074 = vcmp.eq.s32.totalorder %v843, %v2073
        %vm2075 = vcmp.eq.s32.totalorder %v844, %v2073
        %v2076 = vsel %vm2074, 1.0, %v2048
        %v2077 = vsel %vm2075, 1.0, %v2049
        %v2078 = vmul.f32 %v1939, %v1964
        %v2079 = vmul.f32 %v1940, %v1965
        %vm2080 = vcmp.gt.f32.partialorder %v2076, 0.5
        %vm2081 = vcmp.gt.f32.partialorder %v2077, 0.5
        %v2082 = vsel %vm2080, 1, 0
        %v2083 = vsel %vm2081, 1, 0
        %vm2084 = vcmp.eq.s32.totalorder %v2082, 1
        %vm2085 = vcmp.eq.s32.totalorder %v2083, 1
        %v2086 = vsel %vm2084, %v2078, -1e+30
        %v2087 = vsel %vm2085, %v2079, -1e+30
        %v2088 = vsel %vm1026, %v2086, -inf
        %v2089 = vsel %vm1026, %v2087, -inf
        %v2090 = vmax.f32 %v2088, %v2089
        %v2091 = vrot.slane %v2090, 4
        %v2092 = vmax.f32 %v2090, %v2091
        %v2093 = vrot.slane %v2092, 2
        %v2094 = vmax.f32 %v2092, %v2093
        %v2095 = vrot.slane %v2094, 1
        %v2096 = vmax.f32 %v2094, %v2095
        %v2097 = vsel %vm2084, %v2078, 0.0
        %v2098 = vsel %vm2085, %v2079, 0.0
        %v2099 = vsel %vm1026, %v2097, 0.0
        %v2100 = vsel %vm1026, %v2098, 0.0
        %v2101 = vadd.f32 %v2099, %v2100
        %v2102 = vrot.slane %v2101, 4
        %v2103 = vadd.f32 %v2101, %v2102
        %v2104 = vrot.slane %v2103, 2
        %v2105 = vadd.f32 %v2103, %v2104
        %v2106 = vrot.slane %v2105, 1
        %v2107 = vadd.f32 %v2105, %v2106
        %v2108 = vmul.f32 %v2107, 0.25
        %2110 = vrot.lane.b32.xlu0 %v1297, 32
        %v2111 = vpop.permute.xlu0 %2110
        %2114 = vrot.lane.b32.xlu0 %v2096, 64
        %v2115 = vpop.permute.xlu0 %2114
        %2118 = vrot.lane.b32.xlu0 %v2108, 96
        %v2119 = vpop.permute.xlu0 %2118
        %v2121 = vsel %vm1026, %v1285, %v2111
        %vm2122 = vcmask 523264
        %v2123 = vsel %vm2122, %v2121, %v2115
        %vm2124 = vcmask 785408
        %v2125 = vsel %vm2124, %v2123, %v2119
        %v2126 = vld [vmem:[%s9] sm:$0xff]
        %v2127 = vld [vmem:[%s9 + $0x8] sm:$0xff]
        %v2128 = vld [vmem:[%s9 + $0x10] sm:$0xff]
        %v2129 = vld [vmem:[%s9 + $0x18] sm:$0xff]
        %v2130 = vld [vmem:[%s9 + $0x20] sm:$0xff]
        %v2131 = vld [vmem:[%s9 + $0x28] sm:$0xff]
        %v2132 = vld [vmem:[%s9 + $0x30] sm:$0xff]
        %v2133 = vld [vmem:[%s9 + $0x38] sm:$0xff]
        %v2134 = vld [vmem:[%s9 + $0x40] sm:$0xff]
        %v2135 = vld [vmem:[%s9 + $0x48] sm:$0xff]
        %v2136 = vld [vmem:[%s9 + $0x50] sm:$0xff]
        %v2137 = vld [vmem:[%s9 + $0x58] sm:$0xff]
        %v2138 = vld [vmem:[%s9 + $0x60] sm:$0xff]
        %v2139 = vld [vmem:[%s9 + $0x68] sm:$0xff]
        %v2140 = vld [vmem:[%s9 + $0x70] sm:$0xff]
        %v2141 = vld [vmem:[%s9 + $0x78] sm:$0xff]
        %v2142 = vld [vmem:[%s10] sm:$0x1]
        %2143 = vmatprep.subr.mxu0 0.0
        %2144 = vmatpush1.msra.mxu0 %v2126
        %2145 = vmatprep.subr.mxu0 0.0
        %2146 = vmatpush1.msra.mxu0 %v2127
        %2147 = vmatprep.subr.mxu0 0.0
        %2148 = vmatpush1.msra.mxu0 %v2128
        %2149 = vmatprep.subr.mxu0 0.0
        %2150 = vmatpush1.msra.mxu0 %v2129
        %2151 = vmatprep.subr.mxu0 0.0
        %2152 = vmatpush1.msra.mxu0 %v2130
        %2153 = vmatprep.subr.mxu0 0.0
        %2154 = vmatpush1.msra.mxu0 %v2131
        %2155 = vmatprep.subr.mxu0 0.0
        %2156 = vmatpush1.msra.mxu0 %v2132
        %2157 = vmatprep.subr.mxu0 0.0
        %2158 = vmatpush1.msra.mxu0 %v2133
        %2159 = vmatprep.subr.mxu0 0.0
        %2160 = vmatpush1.msra.mxu0 %v2134
        %2161 = vmatprep.subr.mxu0 0.0
        %2162 = vmatpush1.msra.mxu0 %v2135
        %2163 = vmatprep.subr.mxu0 0.0
        %2164 = vmatpush1.msra.mxu0 %v2136
        %2165 = vmatprep.subr.mxu0 0.0
        %2166 = vmatpush1.msra.mxu0 %v2137
        %2167 = vmatprep.subr.mxu0 0.0
        %2168 = vmatpush1.msra.mxu0 %v2138
        %2169 = vmatprep.subr.mxu0 0.0
        %2170 = vmatpush1.msra.mxu0 %v2139
        %2171 = vmatprep.subr.mxu0 0.0
        %2172 = vmatpush1.msra.mxu0 %v2140
        %2173 = vmatprep.subr.mxu0 0.0
        %2174 = vmatpush1.msra.mxu0 %v2141
        %2175 = vmatprep.subr.mxu0 0.0
        %2176 = vmatpush1.msra.mxu0 0.0
        %2177 = vmatprep.subr.mxu0 0.0
        %2178 = vmatpush1.msra.mxu0 0.0
        %2179 = vmatprep.subr.mxu0 0.0
        %2180 = vmatpush1.msra.mxu0 0.0
        %2181 = vmatprep.subr.mxu0 0.0
        %2182 = vmatpush1.msra.mxu0 0.0
        %2183 = vmatprep.subr.mxu0 0.0
        %2184 = vmatpush1.msra.mxu0 0.0
        %2185 = vmatprep.subr.mxu0 0.0
        %2186 = vmatpush1.msra.mxu0 0.0
        %2187 = vmatprep.subr.mxu0 0.0
        %2188 = vmatpush1.msra.mxu0 0.0
        %2189 = vmatprep.subr.mxu0 0.0
        %2190 = vmatpush1.msra.mxu0 0.0
        %2191 = vmatprep.subr.mxu0 0.0
        %2192 = vmatpush1.msra.mxu0 0.0
        %2193 = vmatprep.subr.mxu0 0.0
        %2194 = vmatpush1.msra.mxu0 0.0
        %2195 = vmatprep.subr.mxu0 0.0
        %2196 = vmatpush1.msra.mxu0 0.0
        %2197 = vmatprep.subr.mxu0 0.0
        %2198 = vmatpush1.msra.mxu0 0.0
        %2199 = vmatprep.subr.mxu0 0.0
        %2200 = vmatpush1.msra.mxu0 0.0
        %2201 = vmatprep.subr.mxu0 0.0
        %2202 = vmatpush1.msra.mxu0 0.0
        %2203 = vmatprep.subr.mxu0 0.0
        %2204 = vmatpush1.msra.mxu0 0.0
        %2205 = vmatprep.subr.mxu0 0.0
        %2206 = vmatpush1.msra.mxu0 0.0
        %2207 = vmatprep.mubr.f32.mxu0 0.0
        %2208 = vmatmul.mubr.f32.gmra.mrb[0].mxu0 %v2125
        %v2209 = vpop.f32.mrb[0].mxu0
        %v2210 = vadd.f32 %v2142, %v2209
        %v2211 = vpop.f32.mrb[0].mxu0
        %2212 = vdwg.mxu0
        %v2213 = vmax.f32 %v2210, 0.0
        %v2214 = vld [vmem:[%s11] sm:$0xff]
        %v2215 = vld [vmem:[%s11 + $0x8] sm:$0xff]
        %v2216 = vld [vmem:[%s11 + $0x10] sm:$0xff]
        %v2217 = vld [vmem:[%s11 + $0x18] sm:$0xff]
        %v2218 = vld [vmem:[%s11 + $0x20] sm:$0xff]
        %v2219 = vld [vmem:[%s11 + $0x28] sm:$0xff]
        %v2220 = vld [vmem:[%s11 + $0x30] sm:$0xff]
        %v2221 = vld [vmem:[%s11 + $0x38] sm:$0xff]
        %v2222 = vld [vmem:[%s11 + $0x40] sm:$0xff]
        %v2223 = vld [vmem:[%s11 + $0x48] sm:$0xff]
        %v2224 = vld [vmem:[%s11 + $0x50] sm:$0xff]
        %v2225 = vld [vmem:[%s11 + $0x58] sm:$0xff]
        %v2226 = vld [vmem:[%s11 + $0x60] sm:$0xff]
        %v2227 = vld [vmem:[%s11 + $0x68] sm:$0xff]
        %v2228 = vld [vmem:[%s11 + $0x70] sm:$0xff]
        %v2229 = vld [vmem:[%s11 + $0x78] sm:$0xff]
        %v2230 = vld [vmem:[%s12] sm:$0xf]
        %v2232 = vlaneseq
        %v2233 = vshrl.u32 %v2232, 7
        %v2234 = vsub.s32 0, %v2233
        %v2235 = vrot.slane %v2230, %v2234
        %v2236 = vlaneseq
        %v2237 = vshrl.u32 %v2236, 7
        %v2238 = vsub.s32 1, %v2237
        %v2239 = vrot.slane %v2230, %v2238
        %v2240 = vlaneseq
        %v2241 = vshrl.u32 %v2240, 7
        %v2242 = vsub.s32 2, %v2241
        %v2243 = vrot.slane %v2230, %v2242
        %v2244 = vlaneseq
        %v2245 = vshrl.u32 %v2244, 7
        %v2246 = vsub.s32 3, %v2245
        %v2247 = vrot.slane %v2230, %v2246
        %v2253 = vsel %vm1026, %v2213, 0
        %2255 = vmatprep.subr.mxu0 %v2215
        %2256 = vmatpush1.msra.mxu0 %v2214
        %2257 = vmatprep.subr.mxu0 %v2219
        %2258 = vmatpush1.msra.mxu0 %v2218
        %2259 = vmatprep.subr.mxu0 %v2223
        %2260 = vmatpush1.msra.mxu0 %v2222
        %2261 = vmatprep.subr.mxu0 %v2227
        %2262 = vmatpush1.msra.mxu0 %v2226
        %2263 = vmatprep.subr.mxu0 0.0
        %2264 = vmatpush1.msra.mxu0 0.0
        %2265 = vmatprep.subr.mxu0 0.0
        %2266 = vmatpush1.msra.mxu0 0.0
        %2267 = vmatprep.subr.mxu0 0.0
        %2268 = vmatpush1.msra.mxu0 0.0
        %2269 = vmatprep.subr.mxu0 0.0
        %2270 = vmatpush1.msra.mxu0 0.0
        %2271 = vmatprep.subr.mxu0 0.0
        %2272 = vmatpush1.msra.mxu0 0.0
        %2273 = vmatprep.subr.mxu0 0.0
        %2274 = vmatpush1.msra.mxu0 0.0
        %2275 = vmatprep.subr.mxu0 0.0
        %2276 = vmatpush1.msra.mxu0 0.0
        %2277 = vmatprep.subr.mxu0 0.0
        %2278 = vmatpush1.msra.mxu0 0.0
        %2279 = vmatprep.subr.mxu0 0.0
        %2280 = vmatpush1.msra.mxu0 0.0
        %2281 = vmatprep.subr.mxu0 0.0
        %2282 = vmatpush1.msra.mxu0 0.0
        %2283 = vmatprep.subr.mxu0 0.0
        %2284 = vmatpush1.msra.mxu0 0.0
        %2285 = vmatprep.subr.mxu0 0.0
        %2286 = vmatpush1.msra.mxu0 0.0
        %2287 = vmatprep.subr.mxu0 0.0
        %2288 = vmatpush1.msra.mxu0 0.0
        %2289 = vmatprep.subr.mxu0 0.0
        %2290 = vmatpush1.msra.mxu0 0.0
        %2291 = vmatprep.subr.mxu0 0.0
        %2292 = vmatpush1.msra.mxu0 0.0
        %2293 = vmatprep.subr.mxu0 0.0
        %2294 = vmatpush1.msra.mxu0 0.0
        %2295 = vmatprep.subr.mxu0 0.0
        %2296 = vmatpush1.msra.mxu0 0.0
        %2297 = vmatprep.subr.mxu0 0.0
        %2298 = vmatpush1.msra.mxu0 0.0
        %2299 = vmatprep.subr.mxu0 0.0
        %2300 = vmatpush1.msra.mxu0 0.0
        %2301 = vmatprep.subr.mxu0 0.0
        %2302 = vmatpush1.msra.mxu0 0.0
        %2303 = vmatprep.subr.mxu0 0.0
        %2304 = vmatpush1.msra.mxu0 0.0
        %2305 = vmatprep.subr.mxu0 0.0
        %2306 = vmatpush1.msra.mxu0 0.0
        %2307 = vmatprep.subr.mxu0 0.0
        %2308 = vmatpush1.msra.mxu0 0.0
        %2309 = vmatprep.subr.mxu0 0.0
        %2310 = vmatpush1.msra.mxu0 0.0
        %2311 = vmatprep.subr.mxu0 0.0
        %2312 = vmatpush1.msra.mxu0 0.0
        %2313 = vmatprep.subr.mxu0 0.0
        %2314 = vmatpush1.msra.mxu0 0.0
        %2315 = vmatprep.subr.mxu0 0.0
        %2316 = vmatpush1.msra.mxu0 0.0
        %2317 = vmatprep.subr.mxu0 0.0
        %2318 = vmatpush1.msra.mxu0 0.0
        %2319 = vmatprep.mubr.f32.mxu0 0.0
        %2320 = vmatmul.mubr.f32.gmra.mrb[0].mxu0 %v2253
        %v2321 = vpop.f32.mrb[0].mxu0
        %v2322 = vadd.f32 %v2235, %v2321
        %v2323 = vpop.f32.mrb[0].mxu0
        %v2324 = vadd.f32 %v2239, %v2323
        %2325 = vdwg.mxu0
        %2326 = vmatprep.subr.mxu0 %v2217
        %2327 = vmatpush1.msra.mxu0 %v2216
        %2328 = vmatprep.subr.mxu0 %v2221
        %2329 = vmatpush1.msra.mxu0 %v2220
        %2330 = vmatprep.subr.mxu0 %v2225
        %2331 = vmatpush1.msra.mxu0 %v2224
        %2332 = vmatprep.subr.mxu0 %v2229
        %2333 = vmatpush1.msra.mxu0 %v2228
        %2334 = vmatprep.subr.mxu0 0.0
        %2335 = vmatpush1.msra.mxu0 0.0
        %2336 = vmatprep.subr.mxu0 0.0
        %2337 = vmatpush1.msra.mxu0 0.0
        %2338 = vmatprep.subr.mxu0 0.0
        %2339 = vmatpush1.msra.mxu0 0.0
        %2340 = vmatprep.subr.mxu0 0.0
        %2341 = vmatpush1.msra.mxu0 0.0
        %2342 = vmatprep.subr.mxu0 0.0
        %2343 = vmatpush1.msra.mxu0 0.0
        %2344 = vmatprep.subr.mxu0 0.0
        %2345 = vmatpush1.msra.mxu0 0.0
        %2346 = vmatprep.subr.mxu0 0.0
        %2347 = vmatpush1.msra.mxu0 0.0
        %2348 = vmatprep.subr.mxu0 0.0
        %2349 = vmatpush1.msra.mxu0 0.0
        %2350 = vmatprep.subr.mxu0 0.0
        %2351 = vmatpush1.msra.mxu0 0.0
        %2352 = vmatprep.subr.mxu0 0.0
        %2353 = vmatpush1.msra.mxu0 0.0
        %2354 = vmatprep.subr.mxu0 0.0
        %2355 = vmatpush1.msra.mxu0 0.0
        %2356 = vmatprep.subr.mxu0 0.0
        %2357 = vmatpush1.msra.mxu0 0.0
        %2358 = vmatprep.subr.mxu0 0.0
        %2359 = vmatpush1.msra.mxu0 0.0
        %2360 = vmatprep.subr.mxu0 0.0
        %2361 = vmatpush1.msra.mxu0 0.0
        %2362 = vmatprep.subr.mxu0 0.0
        %2363 = vmatpush1.msra.mxu0 0.0
        %2364 = vmatprep.subr.mxu0 0.0
        %2365 = vmatpush1.msra.mxu0 0.0
        %2366 = vmatprep.subr.mxu0 0.0
        %2367 = vmatpush1.msra.mxu0 0.0
        %2368 = vmatprep.subr.mxu0 0.0
        %2369 = vmatpush1.msra.mxu0 0.0
        %2370 = vmatprep.subr.mxu0 0.0
        %2371 = vmatpush1.msra.mxu0 0.0
        %2372 = vmatprep.subr.mxu0 0.0
        %2373 = vmatpush1.msra.mxu0 0.0
        %2374 = vmatprep.subr.mxu0 0.0
        %2375 = vmatpush1.msra.mxu0 0.0
        %2376 = vmatprep.subr.mxu0 0.0
        %2377 = vmatpush1.msra.mxu0 0.0
        %2378 = vmatprep.subr.mxu0 0.0
        %2379 = vmatpush1.msra.mxu0 0.0
        %2380 = vmatprep.subr.mxu0 0.0
        %2381 = vmatpush1.msra.mxu0 0.0
        %2382 = vmatprep.subr.mxu0 0.0
        %2383 = vmatpush1.msra.mxu0 0.0
        %2384 = vmatprep.subr.mxu0 0.0
        %2385 = vmatpush1.msra.mxu0 0.0
        %2386 = vmatprep.subr.mxu0 0.0
        %2387 = vmatpush1.msra.mxu0 0.0
        %2388 = vmatprep.subr.mxu0 0.0
        %2389 = vmatpush1.msra.mxu0 0.0
        %2390 = vmatprep.mubr.f32.mxu0 0.0
        %2391 = vmatmul.mubr.f32.gmra.mrb[0].mxu0 %v2253
        %v2392 = vpop.f32.mrb[0].mxu0
        %v2393 = vadd.f32 %v2243, %v2392
        %v2394 = vpop.f32.mrb[0].mxu0
        %v2395 = vadd.f32 %v2247, %v2394
        %2396 = vdwg.mxu0
        %v2397 = vmax.f32 %v2322, 0.0
        %v2398 = vmax.f32 %v2324, 0.0
        %v2399 = vmax.f32 %v2393, 0.0
        %v2400 = vmax.f32 %v2395, 0.0
        %v2401 = vld [vmem:[#allocation8] sm:$0xff]
        %v2402 = vld [vmem:[#allocation8 + $0x8] sm:$0xff]
        %v2403 = vld [vmem:[#allocation8 + $0x10] sm:$0xff]
        %v2404 = vld [vmem:[#allocation8 + $0x18] sm:$0xff]
        %v2405 = vld [vmem:[#allocation8 + $0x20] sm:$0xff]
        %v2406 = vld [vmem:[#allocation8 + $0x28] sm:$0xff]
        %v2407 = vld [vmem:[#allocation8 + $0x30] sm:$0xff]
        %v2408 = vld [vmem:[#allocation8 + $0x38] sm:$0xff]
        %v2409 = vld [vmem:[#allocation8 + $0x40] sm:$0xff]
        %v2410 = vld [vmem:[#allocation8 + $0x48] sm:$0xff]
        %v2411 = vld [vmem:[#allocation8 + $0x50] sm:$0xff]
        %v2412 = vld [vmem:[#allocation8 + $0x58] sm:$0xff]
        %v2413 = vld [vmem:[#allocation8 + $0x60] sm:$0xff]
        %v2414 = vld [vmem:[#allocation8 + $0x68] sm:$0xff]
        %v2415 = vld [vmem:[#allocation8 + $0x70] sm:$0xff]
        %v2416 = vld [vmem:[#allocation8 + $0x78] sm:$0xff]
        %v2417 = vld [vmem:[#allocation8 + $0x80] sm:$0xff]
        %v2418 = vld [vmem:[#allocation8 + $0x88] sm:$0xff]
        %v2419 = vld [vmem:[#allocation8 + $0x90] sm:$0xff]
        %v2420 = vld [vmem:[#allocation8 + $0x98] sm:$0xff]
        %v2421 = vld [vmem:[#allocation8 + $0xa0] sm:$0xff]
        %v2422 = vld [vmem:[#allocation8 + $0xa8] sm:$0xff]
        %v2423 = vld [vmem:[#allocation8 + $0xb0] sm:$0xff]
        %v2424 = vld [vmem:[#allocation8 + $0xb8] sm:$0xff]
        %v2425 = vld [vmem:[#allocation8 + $0xc0] sm:$0xff]
        %v2426 = vld [vmem:[#allocation8 + $0xc8] sm:$0xff]
        %v2427 = vld [vmem:[#allocation8 + $0xd0] sm:$0xff]
        %v2428 = vld [vmem:[#allocation8 + $0xd8] sm:$0xff]
        %v2429 = vld [vmem:[#allocation8 + $0xe0] sm:$0xff]
        %v2430 = vld [vmem:[#allocation8 + $0xe8] sm:$0xff]
        %v2431 = vld [vmem:[#allocation8 + $0xf0] sm:$0xff]
        %v2432 = vld [vmem:[#allocation8 + $0xf8] sm:$0xff]
        %v2433 = vld [vmem:[#allocation8 + $0x100] sm:$0xff]
        %v2434 = vld [vmem:[#allocation8 + $0x108] sm:$0xff]
        %v2435 = vld [vmem:[#allocation8 + $0x110] sm:$0xff]
        %v2436 = vld [vmem:[#allocation8 + $0x118] sm:$0xff]
        %v2437 = vld [vmem:[#allocation8 + $0x120] sm:$0xff]
        %v2438 = vld [vmem:[#allocation8 + $0x128] sm:$0xff]
        %v2439 = vld [vmem:[#allocation8 + $0x130] sm:$0xff]
        %v2440 = vld [vmem:[#allocation8 + $0x138] sm:$0xff]
        %v2441 = vld [vmem:[#allocation8 + $0x140] sm:$0xff]
        %v2442 = vld [vmem:[#allocation8 + $0x148] sm:$0xff]
        %v2443 = vld [vmem:[#allocation8 + $0x150] sm:$0xff]
        %v2444 = vld [vmem:[#allocation8 + $0x158] sm:$0xff]
        %v2445 = vld [vmem:[#allocation8 + $0x160] sm:$0xff]
        %v2446 = vld [vmem:[#allocation8 + $0x168] sm:$0xff]
        %v2447 = vld [vmem:[#allocation8 + $0x170] sm:$0xff]
        %v2448 = vld [vmem:[#allocation8 + $0x178] sm:$0xff]
        %v2449 = vld [vmem:[#allocation8 + $0x180] sm:$0xff]
        %v2450 = vld [vmem:[#allocation8 + $0x188] sm:$0xff]
        %v2451 = vld [vmem:[#allocation8 + $0x190] sm:$0xff]
        %v2452 = vld [vmem:[#allocation8 + $0x198] sm:$0xff]
        %v2453 = vld [vmem:[#allocation8 + $0x1a0] sm:$0xff]
        %v2454 = vld [vmem:[#allocation8 + $0x1a8] sm:$0xff]
        %v2455 = vld [vmem:[#allocation8 + $0x1b0] sm:$0xff]
        %v2456 = vld [vmem:[#allocation8 + $0x1b8] sm:$0xff]
        %v2457 = vld [vmem:[#allocation8 + $0x1c0] sm:$0xff]
        %v2458 = vld [vmem:[#allocation8 + $0x1c8] sm:$0xff]
        %v2459 = vld [vmem:[#allocation8 + $0x1d0] sm:$0xff]
        %v2460 = vld [vmem:[#allocation8 + $0x1d8] sm:$0xff]
        %v2461 = vld [vmem:[#allocation8 + $0x1e0] sm:$0xff]
        %v2462 = vld [vmem:[#allocation8 + $0x1e8] sm:$0xff]
        %v2463 = vld [vmem:[#allocation8 + $0x1f0] sm:$0xff]
        %v2464 = vld [vmem:[#allocation8 + $0x1f8] sm:$0xff]
        %v2465 = vld [vmem:[%s14] sm:$0x1]
        %2466 = vmatprep.subr.mxu0 0.0
        %2467 = vmatpush1.msra.mxu0 %v2401
        %2468 = vmatprep.subr.mxu0 0.0
        %2469 = vmatpush1.msra.mxu0 %v2402
        %2470 = vmatprep.subr.mxu0 0.0
        %2471 = vmatpush1.msra.mxu0 %v2403
        %2472 = vmatprep.subr.mxu0 0.0
        %2473 = vmatpush1.msra.mxu0 %v2404
        %2474 = vmatprep.subr.mxu0 0.0
        %2475 = vmatpush1.msra.mxu0 %v2405
        %2476 = vmatprep.subr.mxu0 0.0
        %2477 = vmatpush1.msra.mxu0 %v2406
        %2478 = vmatprep.subr.mxu0 0.0
        %2479 = vmatpush1.msra.mxu0 %v2407
        %2480 = vmatprep.subr.mxu0 0.0
        %2481 = vmatpush1.msra.mxu0 %v2408
        %2482 = vmatprep.subr.mxu0 0.0
        %2483 = vmatpush1.msra.mxu0 %v2409
        %2484 = vmatprep.subr.mxu0 0.0
        %2485 = vmatpush1.msra.mxu0 %v2410
        %2486 = vmatprep.subr.mxu0 0.0
        %2487 = vmatpush1.msra.mxu0 %v2411
        %2488 = vmatprep.subr.mxu0 0.0
        %2489 = vmatpush1.msra.mxu0 %v2412
        %2490 = vmatprep.subr.mxu0 0.0
        %2491 = vmatpush1.msra.mxu0 %v2413
        %2492 = vmatprep.subr.mxu0 0.0
        %2493 = vmatpush1.msra.mxu0 %v2414
        %2494 = vmatprep.subr.mxu0 0.0
        %2495 = vmatpush1.msra.mxu0 %v2415
        %2496 = vmatprep.subr.mxu0 0.0
        %2497 = vmatpush1.msra.mxu0 %v2416
        %2498 = vmatprep.subr.mxu0 0.0
        %2499 = vmatpush1.msra.mxu0 %v2417
        %2500 = vmatprep.subr.mxu0 0.0
        %2501 = vmatpush1.msra.mxu0 %v2418
        %2502 = vmatprep.subr.mxu0 0.0
        %2503 = vmatpush1.msra.mxu0 %v2419
        %2504 = vmatprep.subr.mxu0 0.0
        %2505 = vmatpush1.msra.mxu0 %v2420
        %2506 = vmatprep.subr.mxu0 0.0
        %2507 = vmatpush1.msra.mxu0 %v2421
        %2508 = vmatprep.subr.mxu0 0.0
        %2509 = vmatpush1.msra.mxu0 %v2422
        %2510 = vmatprep.subr.mxu0 0.0
        %2511 = vmatpush1.msra.mxu0 %v2423
        %2512 = vmatprep.subr.mxu0 0.0
        %2513 = vmatpush1.msra.mxu0 %v2424
        %2514 = vmatprep.subr.mxu0 0.0
        %2515 = vmatpush1.msra.mxu0 %v2425
        %2516 = vmatprep.subr.mxu0 0.0
        %2517 = vmatpush1.msra.mxu0 %v2426
        %2518 = vmatprep.subr.mxu0 0.0
        %2519 = vmatpush1.msra.mxu0 %v2427
        %2520 = vmatprep.subr.mxu0 0.0
        %2521 = vmatpush1.msra.mxu0 %v2428
        %2522 = vmatprep.subr.mxu0 0.0
        %2523 = vmatpush1.msra.mxu0 %v2429
        %2524 = vmatprep.subr.mxu0 0.0
        %2525 = vmatpush1.msra.mxu0 %v2430
        %2526 = vmatprep.subr.mxu0 0.0
        %2527 = vmatpush1.msra.mxu0 %v2431
        %2528 = vmatprep.subr.mxu0 0.0
        %2529 = vmatpush1.msra.mxu0 %v2432
        %2530 = vmatprep.mubr.f32.mxu0 %v2398
        %2531 = vmatmul.mubr.f32.gmra.mrb[0].mxu0 %v2397
        %v2532 = vpop.f32.mrb[0].mxu0
        %v2533 = vadd.f32 %v2465, %v2532
        %v2534 = vpop.f32.mrb[0].mxu0
        %2535 = vdwg.mxu0
        %2536 = vmatprep.subr.mxu0 0.0
        %2537 = vmatpush1.msra.mxu0 %v2433
        %2538 = vmatprep.subr.mxu0 0.0
        %2539 = vmatpush1.msra.mxu0 %v2434
        %2540 = vmatprep.subr.mxu0 0.0
        %2541 = vmatpush1.msra.mxu0 %v2435
        %2542 = vmatprep.subr.mxu0 0.0
        %2543 = vmatpush1.msra.mxu0 %v2436
        %2544 = vmatprep.subr.mxu0 0.0
        %2545 = vmatpush1.msra.mxu0 %v2437
        %2546 = vmatprep.subr.mxu0 0.0
        %2547 = vmatpush1.msra.mxu0 %v2438
        %2548 = vmatprep.subr.mxu0 0.0
        %2549 = vmatpush1.msra.mxu0 %v2439
        %2550 = vmatprep.subr.mxu0 0.0
        %2551 = vmatpush1.msra.mxu0 %v2440
        %2552 = vmatprep.subr.mxu0 0.0
        %2553 = vmatpush1.msra.mxu0 %v2441
        %2554 = vmatprep.subr.mxu0 0.0
        %2555 = vmatpush1.msra.mxu0 %v2442
        %2556 = vmatprep.subr.mxu0 0.0
        %2557 = vmatpush1.msra.mxu0 %v2443
        %2558 = vmatprep.subr.mxu0 0.0
        %2559 = vmatpush1.msra.mxu0 %v2444
        %2560 = vmatprep.subr.mxu0 0.0
        %2561 = vmatpush1.msra.mxu0 %v2445
        %2562 = vmatprep.subr.mxu0 0.0
        %2563 = vmatpush1.msra.mxu0 %v2446
        %2564 = vmatprep.subr.mxu0 0.0
        %2565 = vmatpush1.msra.mxu0 %v2447
        %2566 = vmatprep.subr.mxu0 0.0
        %2567 = vmatpush1.msra.mxu0 %v2448
        %2568 = vmatprep.subr.mxu0 0.0
        %2569 = vmatpush1.msra.mxu0 %v2449
        %2570 = vmatprep.subr.mxu0 0.0
        %2571 = vmatpush1.msra.mxu0 %v2450
        %2572 = vmatprep.subr.mxu0 0.0
        %2573 = vmatpush1.msra.mxu0 %v2451
        %2574 = vmatprep.subr.mxu0 0.0
        %2575 = vmatpush1.msra.mxu0 %v2452
        %2576 = vmatprep.subr.mxu0 0.0
        %2577 = vmatpush1.msra.mxu0 %v2453
        %2578 = vmatprep.subr.mxu0 0.0
        %2579 = vmatpush1.msra.mxu0 %v2454
        %2580 = vmatprep.subr.mxu0 0.0
        %2581 = vmatpush1.msra.mxu0 %v2455
        %2582 = vmatprep.subr.mxu0 0.0
        %2583 = vmatpush1.msra.mxu0 %v2456
        %2584 = vmatprep.subr.mxu0 0.0
        %2585 = vmatpush1.msra.mxu0 %v2457
        %2586 = vmatprep.subr.mxu0 0.0
        %2587 = vmatpush1.msra.mxu0 %v2458
        %2588 = vmatprep.subr.mxu0 0.0
        %2589 = vmatpush1.msra.mxu0 %v2459
        %2590 = vmatprep.subr.mxu0 0.0
        %2591 = vmatpush1.msra.mxu0 %v2460
        %2592 = vmatprep.subr.mxu0 0.0
        %2593 = vmatpush1.msra.mxu0 %v2461
        %2594 = vmatprep.subr.mxu0 0.0
        %2595 = vmatpush1.msra.mxu0 %v2462
        %2596 = vmatprep.subr.mxu0 0.0
        %2597 = vmatpush1.msra.mxu0 %v2463
        %2598 = vmatprep.subr.mxu0 0.0
        %2599 = vmatpush1.msra.mxu0 %v2464
        %2600 = vmatprep.mubr.f32.mxu0 %v2400
        %2601 = vmatmul.mubr.f32.gmra.mrb[0].mxu0 %v2399
        %v2602 = vpop.f32.mrb[0].mxu0
        %v2603 = vadd.f32 %v2533, %v2602
        %v2604 = vpop.f32.mrb[0].mxu0
        %2605 = vdwg.mxu0
        %vm2606 = vcmask 1040384
        %v2607 = vsel %vm2606, %v2603, -inf
        %2608 = vmax.xlane.f32.xlu0 %v2607
        %v2609 = vpop.xlane.xlu0 %2608
        %v2610 = vsub.f32 %v2603, %v2609
        %v2611 = vmul.f32 %v2610, 1.442695
        %v2612 = vpow.pop %v2611
        %v2613 = vsel %vm2606, %v2612, 0.0
        %2614 = vadd.xlane.f32.xlu0 %v2613
        %v2615 = vpop.xlane.xlu0 %2614
        %v2616 = vlog2.pop %v2615
        %v2617 = vmul.f32 %v2616, 0.6931472
        %v2618 = vsub.f32 %v2610, %v2617
        %2619 = vst [vmem:[%s585] sm:$0x1] %v2618
        %s2620 = sand.u32 %s372, 1
        %s2621 = scalar_lea.sflag [#allocation4], %s2620
        %s2622 = sand.u32 %s372, 1
        %s2623 = scalar_lea.vmem [#allocation10], %s2622
        // Predicated region
        $region97: #{tpu_custom_call.1} parent=79 // pred_check
          %p2624 = pneg %p382
        $region98: #{tpu_custom_call.1} parent=79 // pred_check_branch
          %2626 = sbr.rel (%p2624) target = $region100
        $region99: #{tpu_custom_call.1} parent=79 // pred_region
          %s2628 = ssub.s32 16, 16
          %2629 = vsyncadd %s2621, %s2628
          %s2630 = smul.addr %s34, 16
          %s2631 = scalar_lea.hbm %s15, %s2630
          %s2633 = sshll.u32 %s2623, 4
          %s2634 = int_to_ptr.vmem [resolvable:$true] %s2633
          %2636 = dma.vmem_to_hbm [thread:$0]  %s2634, 16, %s2631, %s2621
        $region100: #{tpu_custom_call.1} parent=79 // pred_fallthru
          _
      $region80: #{tpu_custom_call.1} parent=5 // pred_fallthru
        _
      %p2637 = scmp.le.s32.totalorder 2, %s29
      // Predicated region
      $region101: #{tpu_custom_call.1} parent=5 // pred_check
        %p2638 = pneg %p2637
      $region102: #{tpu_custom_call.1} parent=5 // pred_check_branch
        %2640 = sbr.rel (%p2638) target = $region104
      $region103: #{tpu_custom_call.1} parent=5 // pred_region
        %s2641 = ssub.s32 %s29, 2
        // Predicated region
        $region105: #{tpu_custom_call.1} parent=103 // pred_check
          %p2642 = pneg %p388
        $region106: #{tpu_custom_call.1} parent=103 // pred_check_branch
          %2644 = sbr.rel (%p2642) target = $region108
        $region107: #{tpu_custom_call.1} parent=103 // pred_region
          %s2645 = sand.u32 %s373, 1
          %s2646 = scalar_lea.sflag [#allocation4], %s2645
          %s2647 = sand.u32 %s373, 1
          %s2648 = scalar_lea.vmem [#allocation10], %s2647
          %2649 = dma.done %s2646, 16
        $region108: #{tpu_custom_call.1} parent=103 // pred_fallthru
          _
      $region104: #{tpu_custom_call.1} parent=5 // pred_fallthru
        _
    $region6: #{tpu_custom_call.1} parent=1 // loop_footer
      %s33 = sadd.s32 1, %s29
    $region7: #{tpu_custom_call.1} parent=1 // loop_footer_branch
      %28 = sbr.rel target = $region3
    $region8: #{tpu_custom_call.1} parent=1 // loop_exit
      _
    %2650 = vsyncpa [#allocation3], 1
    %s2651 = scalar_lea.sflag [#allocation3], 1
    %2652 = vsyncpa %s2651, 1
    %2653 = vsyncpa [#allocation6], 1
    %2654 = vsyncpa [#allocation9], 1
    %2655 = vsyncpa [#allocation4], 1
    %s2656 = scalar_lea.sflag [#allocation4], 1
    %2657 = vsyncpa %s2656, 1

</llo_original>
